<compile_context>
chip_gen: v7x
topology: tpu7x:2x2x1
jax: 0.10.0
libtpu: 0.0.40
codegen_flags: <defaults>
</compile_context>

<pallas_src>
import functools

import jax
import jax.numpy as jnp
from jax.experimental import pallas as pl
from jax.experimental.pallas import tpu as pltpu


def _cbl_kernel(x_hbm, w_ref, scale_ref, bias_ref, o_ref, xband, sem,
                *, K, TH, W, Wm, Cin_p):
    # x_hbm:     (N, Hp, Wb, Cin_p) bf16, stays in HBM (pl.ANY)
    # w_ref:     (K, K, Cin_p, BCout) bf16 weight block (index depends only on co)
    # scale_ref: (1, BCout) f32 folded BN scale ; bias_ref: (1, BCout) f32 folded bias
    # o_ref:     (1, TH, W, BCout) f32 output tile
    # xband:     (TH+K-1, Wb, Cin_p) bf16 VMEM halo'd row band (full padded Cin)
    n = pl.program_id(0)
    th = pl.program_id(1)
    co = pl.program_id(2)
    THK = TH + K - 1

    # Fetch the input band once per (n, th); it is reused for every Cout block.
    # TODO(synk): prefetch the next band into a second slot once cross-step iteration
    #             order can be assumed (needs all-'arbitrary' semantics / per-core seq).
    @pl.when(co == 0)
    def _():
        row0 = pl.multiple_of(th * TH, TH)
        cp = pltpu.make_async_copy(
            x_hbm.at[n, pl.ds(row0, THK), :, :], xband, sem)
        cp.start()
        cp.wait()

    # Conv as K*K MXU matmuls chained into one f32 accumulator value.
    bcout = w_ref.shape[-1]
    acc = jnp.zeros((TH * Wm, bcout), jnp.float32)
    for kh in range(K):
        for kw in range(K):
            # TODO(synk): replace the kw window slice with pltpu.roll on full-width rows
            #             (or a per-band im2col) if relayout copies show up in the dump.
            patch = xband[kh:kh + TH, kw:kw + Wm, :].reshape(TH * Wm, Cin_p)
            acc = acc + jnp.dot(patch, w_ref[kh, kw],
                                preferred_element_type=jnp.float32)

    y = acc * scale_ref[...] + bias_ref[...]        # folded eval-BN, f32 epilogue
    y = jnp.where(y > 0, y, 0.1 * y)                # LeakyReLU(0.1)
    y = y.reshape(TH, Wm, bcout)[:, :W, :]
    # TODO(synk): emit bf16 here if the consumer tolerates it (halves HBM writeback).
    o_ref[0] = y.astype(o_ref.dtype)


def _round_up(x, m):
    return (x + m - 1) // m * m


def _largest_divisor_leq(n, cap):
    best = 1
    for d in range(1, min(n, cap) + 1):
        if n % d == 0:
            best = d
    return best


def _estimate_vmem(TH, W, K, Cin_p, BCout):
    Wm = _round_up(W, 8)
    Wb = _round_up(Wm + K - 1, 8)
    THK = TH + K - 1
    band = THK * Wb * Cin_p * 2                      # bf16 scratch (single buffer)
    w_blk = K * K * Cin_p * BCout * 2                # bf16, double-buffered
    out_blk = TH * W * BCout * 4                     # f32, double-buffered
    acc = TH * Wm * BCout * 4                        # f32 local accumulator
    patch = TH * Wm * Cin_p * 2                      # bf16 matmul LHS temporary
    sb = 2 * BCout * 4
    return band + 2 * w_blk + 2 * out_blk + acc + patch + 2 * sb


def _choose_tiling(H, W, K, Cin_p, Cout_p):
    kind = ""
    try:
        kind = jax.devices()[0].device_kind.lower()
    except Exception:
        pass
    big_vmem = ("v4" in kind or "v5" in kind or "v6" in kind) and "v7" not in kind
    prefer_128 = "v5" in kind                        # v5e: 128x128-native MXU tiles
    budget = (96 << 20) if big_vmem else (40 << 20)  # v7x has only 64 MiB physical VMEM
    th_target = 32 if big_vmem else 16

    if Cout_p % 256 == 0 and not prefer_128:
        bcouts = (256, 128)
    else:
        bcouts = (128,)
    th_opts = [t for t in (32, 16, 8, 4, 2, 1) if t <= th_target]

    TH, BCout, need = 1, 128, _estimate_vmem(1, W, K, Cin_p, 128)
    for bc in bcouts:
        for t in th_opts:
            th = _largest_divisor_leq(H, t)
            nd = _estimate_vmem(th, W, K, Cin_p, bc)
            TH, BCout, need = th, bc, nd
            if nd <= budget:
                return TH, BCout, need, budget
    return TH, BCout, need, budget


def cbl_forward(x_nchw, weight_oihw, gamma, beta, running_mean, running_var,
                eps=1e-5):
    """CBL forward. x_nchw: (N, Cin, H, W) float32. Returns (N, Cout, H, W) float32."""
    N, Cin, H, W = x_nchw.shape
    Cout, Cin_w, K, K2 = weight_oihw.shape
    assert Cin == Cin_w and K == K2 and K % 2 == 1, "stride=1, odd K, 'same' padding only"
    pad = K // 2

    LANE = 128
    Cin_p = _round_up(Cin, LANE)
    Cout_p = _round_up(Cout, LANE)

    TH, BCout, need, budget = _choose_tiling(H, W, K, Cin_p, Cout_p)
    nH = H // TH
    nCo = Cout_p // BCout
    THK = TH + K - 1
    Wm = _round_up(W, 8)                  # matmul width (layout-clean reshape)
    Wb = _round_up(Wm + K - 1, 8)         # padded band width
    Hp = H + 2 * pad

    # TODO(synk): emit/consume NHWC with pre-padded channels upstream so these
    #             transpose/pad/cast passes fuse away.
    x_nhwc = jnp.transpose(x_nchw, (0, 2, 3, 1))
    x_pad = jnp.pad(x_nhwc, ((0, 0), (pad, pad), (pad, Wb - W - pad), (0, Cin_p - Cin)))
    x_pad = x_pad.astype(jnp.bfloat16)

    w_hwio = jnp.transpose(weight_oihw, (2, 3, 1, 0))
    w_hwio = jnp.pad(w_hwio, ((0, 0), (0, 0), (0, Cin_p - Cin), (0, Cout_p - Cout)))
    w_hwio = w_hwio.astype(jnp.bfloat16)

    scale = (gamma / jnp.sqrt(running_var + eps)).astype(jnp.float32)
    bias = (beta - running_mean * scale).astype(jnp.float32)
    scale2d = jnp.pad(scale, (0, Cout_p - Cout)).reshape(1, Cout_p)
    bias2d = jnp.pad(bias, (0, Cout_p - Cout)).reshape(1, Cout_p)

    grid = (N, nH, nCo)
    kernel = functools.partial(_cbl_kernel, K=K, TH=TH, W=W, Wm=Wm, Cin_p=Cin_p)

    vmem_limit = int(min(max(int(need * 1.25) + (4 << 20), 32 << 20), budget))

    x_bytes = int(x_pad.size * 2 * THK / TH)                 # band halo overlap
    w_bytes = int(w_hwio.size) * 2 * (N * nH if nCo > 1 else 1)
    o_bytes = N * H * W * Cout_p * 4
    cost = pl.CostEstimate(
        flops=2 * N * H * W * K * K * Cin_p * Cout_p,
        transcendentals=0,
        bytes_accessed=x_bytes + w_bytes + o_bytes)

    out_nhwc = pl.pallas_call(
        kernel,
        out_shape=jax.ShapeDtypeStruct((N, H, W, Cout_p), jnp.float32),
        grid_spec=pltpu.PrefetchScalarGridSpec(
            num_scalar_prefetch=0,
            grid=grid,
            in_specs=[
                pl.BlockSpec(memory_space=pl.ANY),                         # x in HBM
                pl.BlockSpec((K, K, Cin_p, BCout), lambda n, t, co: (0, 0, 0, co)),
                pl.BlockSpec((1, BCout), lambda n, t, co: (0, co)),
                pl.BlockSpec((1, BCout), lambda n, t, co: (0, co)),
            ],
            out_specs=pl.BlockSpec((1, TH, W, BCout),
                                   lambda n, t, co: (n, t, 0, co)),
            scratch_shapes=[
                pltpu.VMEM((THK, Wb, Cin_p), jnp.bfloat16),
                pltpu.SemaphoreType.DMA(()),
            ]),
        compiler_params=pltpu.CompilerParams(
            dimension_semantics=("parallel", "parallel", "arbitrary"),
            vmem_limit_bytes=vmem_limit),
        cost_estimate=cost,
    )(x_pad, w_hwio, scale2d, bias2d)

    out = out_nhwc[..., :Cout]                      # drop Cout lane padding
    return jnp.transpose(out, (0, 3, 1, 2))         # NHWC -> NCHW (PyTorch convention)


def _reference(x_nchw, weight_oihw, gamma, beta, mean, var, eps=1e-5):
    y = jax.lax.conv_general_dilated(
        x_nchw, weight_oihw, window_strides=(1, 1), padding="SAME",
        dimension_numbers=("NCHW", "OIHW", "NCHW"),
        precision=jax.lax.Precision.HIGHEST)
    s = gamma / jnp.sqrt(var + eps)
    b = beta - mean * s
    y = y * s[None, :, None, None] + b[None, :, None, None]
    return jnp.where(y > 0, y, 0.1 * y)


if __name__ == "__main__":
    key = jax.random.PRNGKey(0)
    k_x, k_w, k_g, k_b, k_m, k_v = jax.random.split(key, 6)

    N, Cin, Cout, H, W, K = 2, 4, 8, 16, 16, 3

    x = jax.random.normal(k_x, (N, Cin, H, W), dtype=jnp.float32)
    weight = 0.1 * jax.random.normal(k_w, (Cout, Cin, K, K), dtype=jnp.float32)
    gamma = 1.0 + 0.1 * jax.random.normal(k_g, (Cout,), dtype=jnp.float32)
    beta = 0.1 * jax.random.normal(k_b, (Cout,), dtype=jnp.float32)
    running_mean = 0.05 * jax.random.normal(k_m, (Cout,), dtype=jnp.float32)
    running_var = 1.0 + 0.1 * jax.random.uniform(k_v, (Cout,), dtype=jnp.float32)

    out = cbl_forward(x, weight, gamma, beta, running_mean, running_var)
    out = jax.block_until_ready(out)
    assert out.shape == (N, Cout, H, W)

    # Tight check vs. a reference computed on the same bf16-rounded inputs
    # (kernel does bf16 x bf16 -> f32 MXU accumulation).
    x_bf = x.astype(jnp.bfloat16).astype(jnp.float32)
    w_bf = weight.astype(jnp.bfloat16).astype(jnp.float32)
    ref_bf = _reference(x_bf, w_bf, gamma, beta, running_mean, running_var)
    assert jnp.allclose(out, ref_bf, atol=1e-3, rtol=1e-3)

    # Loose sanity check vs. the full-f32 module (bf16 input-rounding tolerance).
    ref = _reference(x, weight, gamma, beta, running_mean, running_var)
    assert jnp.allclose(out, ref, atol=5e-2, rtol=5e-2)

    print("KERNEL_OK")
</pallas_src>

<mosaic_0001>
module attributes {stable_mosaic.version = 11 : i64} {
  func.func @_cbl_kernel(%arg0: i32, %arg1: i32, %arg2: i32, %arg3: memref<2x18x24x128xbf16, #tpu.memory_space<any>>, %arg4: memref<3x3x128x128xbf16, #tpu.memory_space<vmem>>, %arg5: memref<1x128xf32, #tpu.memory_space<vmem>>, %arg6: memref<1x128xf32, #tpu.memory_space<vmem>>, %arg7: memref<1x16x16x128xf32, #tpu.memory_space<vmem>>, %arg8: memref<18x24x128xbf16, #tpu.memory_space<vmem>>, %arg9: memref<!tpu.dma_semaphore, #tpu.memory_space<semaphore_mem>>) attributes {dimension_semantics = [#tpu.dimension_semantics<parallel>, #tpu.dimension_semantics<parallel>, #tpu.dimension_semantics<arbitrary>], iteration_bounds = array<i64: 2, 1, 1>, scalar_prefetch = 0 : i64, scratch_operands = 2 : i64, tpu.core_type = #tpu.core_type<tc>, window_params = [{}, {transform_indices = @transform_1, window_bounds = array<i64: 3, 3, 128, 128>}, {transform_indices = @transform_2, window_bounds = array<i64: 1, 128>}, {transform_indices = @transform_3, window_bounds = array<i64: 1, 128>}, {transform_indices = @transform_4, window_bounds = array<i64: 1, 16, 16, 128>}]} {
    %c0_i32 = arith.constant 0 : i32
    %0 = arith.cmpi eq, %arg2, %c0_i32 : i32
    %1 = arith.extui %0 : i1 to i32
    %c0_i32_0 = arith.constant 0 : i32
    %2 = arith.cmpi ne, %1, %c0_i32_0 : i32
    scf.if %2 {
      %c16_i32 = arith.constant 16 : i32
      %73 = arith.muli %arg1, %c16_i32 : i32
      %74 = tpu.assume_multiple %73, 16 : i32
      %c0_i32_80 = arith.constant 0 : i32
      %c0_i32_81 = arith.constant 0 : i32
      %75 = tpu.memref_slice %arg3[%arg0, %74, %c0_i32_80, %c0_i32_81] : memref<2x18x24x128xbf16, #tpu.memory_space<any>> -> memref<1x18x24x128xbf16, #tpu.memory_space<any>>
      %76 = tpu.memref_squeeze %75 : memref<1x18x24x128xbf16, #tpu.memory_space<any>> -> memref<18x24x128xbf16, #tpu.memory_space<any>>
      tpu.enqueue_dma source(%76 : memref<18x24x128xbf16, #tpu.memory_space<any>>) target(%arg8 : memref<18x24x128xbf16, #tpu.memory_space<vmem>>) target_semaphore(%arg9 : memref<!tpu.dma_semaphore, #tpu.memory_space<semaphore_mem>>)
      %c0_i32_82 = arith.constant 0 : i32
      %c0_i32_83 = arith.constant 0 : i32
      %77 = tpu.memref_slice %arg3[%arg0, %74, %c0_i32_82, %c0_i32_83] : memref<2x18x24x128xbf16, #tpu.memory_space<any>> -> memref<1x18x24x128xbf16, #tpu.memory_space<any>>
      %78 = tpu.memref_squeeze %77 : memref<1x18x24x128xbf16, #tpu.memory_space<any>> -> memref<18x24x128xbf16, #tpu.memory_space<any>>
      tpu.wait_dma2 semaphore(%arg9 : memref<!tpu.dma_semaphore, #tpu.memory_space<semaphore_mem>>) src(%78 : memref<18x24x128xbf16, #tpu.memory_space<any>>) dst(%arg8 : memref<18x24x128xbf16, #tpu.memory_space<vmem>>)
    } else {
    }
    %cst = arith.constant 0.000000e+00 : f32
    %3 = vector.broadcast %cst : f32 to vector<256x128xf32>
    %c0 = arith.constant 0 : index
    %c0_1 = arith.constant 0 : index
    %c0_2 = arith.constant 0 : index
    %4 = vector.load %arg8[%c0, %c0_1, %c0_2] : memref<18x24x128xbf16, #tpu.memory_space<vmem>>, vector<16x16x128xbf16>
    %5 = vector.shape_cast %4 : vector<16x16x128xbf16> to vector<256x128xbf16>
    %c0_3 = arith.constant 0 : index
    %c0_4 = arith.constant 0 : index
    %c0_5 = arith.constant 0 : index
    %c0_6 = arith.constant 0 : index
    %6 = vector.load %arg4[%c0_3, %c0_4, %c0_5, %c0_6] : memref<3x3x128x128xbf16, #tpu.memory_space<vmem>>, vector<1x1x128x128xbf16>
    %7 = vector.shape_cast %6 : vector<1x1x128x128xbf16> to vector<128x128xbf16>
    %cst_7 = arith.constant dense<0.000000e+00> : vector<256x128xf32>
    %8 = tpu.matmul %5, %7, %cst_7 {dimension_numbers = #tpu.dot_dimension_numbers<[1], [0], [0], [1], [0, 0, 1, 1], [], []>} : vector<256x128xbf16>, vector<128x128xbf16>, vector<256x128xf32> -> vector<256x128xf32>
    %9 = arith.addf %3, %8 : vector<256x128xf32>
    %c0_8 = arith.constant 0 : index
    %c1 = arith.constant 1 : index
    %c0_9 = arith.constant 0 : index
    %10 = vector.load %arg8[%c0_8, %c1, %c0_9] : memref<18x24x128xbf16, #tpu.memory_space<vmem>>, vector<16x16x128xbf16>
    %11 = vector.shape_cast %10 : vector<16x16x128xbf16> to vector<256x128xbf16>
    %c0_10 = arith.constant 0 : index
    %c1_11 = arith.constant 1 : index
    %c0_12 = arith.constant 0 : index
    %c0_13 = arith.constant 0 : index
    %12 = vector.load %arg4[%c0_10, %c1_11, %c0_12, %c0_13] : memref<3x3x128x128xbf16, #tpu.memory_space<vmem>>, vector<1x1x128x128xbf16>
    %13 = vector.shape_cast %12 : vector<1x1x128x128xbf16> to vector<128x128xbf16>
    %cst_14 = arith.constant dense<0.000000e+00> : vector<256x128xf32>
    %14 = tpu.matmul %11, %13, %cst_14 {dimension_numbers = #tpu.dot_dimension_numbers<[1], [0], [0], [1], [0, 0, 1, 1], [], []>} : vector<256x128xbf16>, vector<128x128xbf16>, vector<256x128xf32> -> vector<256x128xf32>
    %15 = arith.addf %9, %14 : vector<256x128xf32>
    %c0_15 = arith.constant 0 : index
    %c2 = arith.constant 2 : index
    %c0_16 = arith.constant 0 : index
    %16 = vector.load %arg8[%c0_15, %c2, %c0_16] : memref<18x24x128xbf16, #tpu.memory_space<vmem>>, vector<16x16x128xbf16>
    %17 = vector.shape_cast %16 : vector<16x16x128xbf16> to vector<256x128xbf16>
    %c0_17 = arith.constant 0 : index
    %c2_18 = arith.constant 2 : index
    %c0_19 = arith.constant 0 : index
    %c0_20 = arith.constant 0 : index
    %18 = vector.load %arg4[%c0_17, %c2_18, %c0_19, %c0_20] : memref<3x3x128x128xbf16, #tpu.memory_space<vmem>>, vector<1x1x128x128xbf16>
    %19 = vector.shape_cast %18 : vector<1x1x128x128xbf16> to vector<128x128xbf16>
    %cst_21 = arith.constant dense<0.000000e+00> : vector<256x128xf32>
    %20 = tpu.matmul %17, %19, %cst_21 {dimension_numbers = #tpu.dot_dimension_numbers<[1], [0], [0], [1], [0, 0, 1, 1], [], []>} : vector<256x128xbf16>, vector<128x128xbf16>, vector<256x128xf32> -> vector<256x128xf32>
    %21 = arith.addf %15, %20 : vector<256x128xf32>
    %c1_22 = arith.constant 1 : index
    %c0_23 = arith.constant 0 : index
    %c0_24 = arith.constant 0 : index
    %22 = vector.load %arg8[%c1_22, %c0_23, %c0_24] : memref<18x24x128xbf16, #tpu.memory_space<vmem>>, vector<16x16x128xbf16>
    %23 = vector.shape_cast %22 : vector<16x16x128xbf16> to vector<256x128xbf16>
    %c1_25 = arith.constant 1 : index
    %c0_26 = arith.constant 0 : index
    %c0_27 = arith.constant 0 : index
    %c0_28 = arith.constant 0 : index
    %24 = vector.load %arg4[%c1_25, %c0_26, %c0_27, %c0_28] : memref<3x3x128x128xbf16, #tpu.memory_space<vmem>>, vector<1x1x128x128xbf16>
    %25 = vector.shape_cast %24 : vector<1x1x128x128xbf16> to vector<128x128xbf16>
    %cst_29 = arith.constant dense<0.000000e+00> : vector<256x128xf32>
    %26 = tpu.matmul %23, %25, %cst_29 {dimension_numbers = #tpu.dot_dimension_numbers<[1], [0], [0], [1], [0, 0, 1, 1], [], []>} : vector<256x128xbf16>, vector<128x128xbf16>, vector<256x128xf32> -> vector<256x128xf32>
    %27 = arith.addf %21, %26 : vector<256x128xf32>
    %c1_30 = arith.constant 1 : index
    %c1_31 = arith.constant 1 : index
    %c0_32 = arith.constant 0 : index
    %28 = vector.load %arg8[%c1_30, %c1_31, %c0_32] : memref<18x24x128xbf16, #tpu.memory_space<vmem>>, vector<16x16x128xbf16>
    %29 = vector.shape_cast %28 : vector<16x16x128xbf16> to vector<256x128xbf16>
    %c1_33 = arith.constant 1 : index
    %c1_34 = arith.constant 1 : index
    %c0_35 = arith.constant 0 : index
    %c0_36 = arith.constant 0 : index
    %30 = vector.load %arg4[%c1_33, %c1_34, %c0_35, %c0_36] : memref<3x3x128x128xbf16, #tpu.memory_space<vmem>>, vector<1x1x128x128xbf16>
    %31 = vector.shape_cast %30 : vector<1x1x128x128xbf16> to vector<128x128xbf16>
    %cst_37 = arith.constant dense<0.000000e+00> : vector<256x128xf32>
    %32 = tpu.matmul %29, %31, %cst_37 {dimension_numbers = #tpu.dot_dimension_numbers<[1], [0], [0], [1], [0, 0, 1, 1], [], []>} : vector<256x128xbf16>, vector<128x128xbf16>, vector<256x128xf32> -> vector<256x128xf32>
    %33 = arith.addf %27, %32 : vector<256x128xf32>
    %c1_38 = arith.constant 1 : index
    %c2_39 = arith.constant 2 : index
    %c0_40 = arith.constant 0 : index
    %34 = vector.load %arg8[%c1_38, %c2_39, %c0_40] : memref<18x24x128xbf16, #tpu.memory_space<vmem>>, vector<16x16x128xbf16>
    %35 = vector.shape_cast %34 : vector<16x16x128xbf16> to vector<256x128xbf16>
    %c1_41 = arith.constant 1 : index
    %c2_42 = arith.constant 2 : index
    %c0_43 = arith.constant 0 : index
    %c0_44 = arith.constant 0 : index
    %36 = vector.load %arg4[%c1_41, %c2_42, %c0_43, %c0_44] : memref<3x3x128x128xbf16, #tpu.memory_space<vmem>>, vector<1x1x128x128xbf16>
    %37 = vector.shape_cast %36 : vector<1x1x128x128xbf16> to vector<128x128xbf16>
    %cst_45 = arith.constant dense<0.000000e+00> : vector<256x128xf32>
    %38 = tpu.matmul %35, %37, %cst_45 {dimension_numbers = #tpu.dot_dimension_numbers<[1], [0], [0], [1], [0, 0, 1, 1], [], []>} : vector<256x128xbf16>, vector<128x128xbf16>, vector<256x128xf32> -> vector<256x128xf32>
    %39 = arith.addf %33, %38 : vector<256x128xf32>
    %c2_46 = arith.constant 2 : index
    %c0_47 = arith.constant 0 : index
    %c0_48 = arith.constant 0 : index
    %40 = vector.load %arg8[%c2_46, %c0_47, %c0_48] : memref<18x24x128xbf16, #tpu.memory_space<vmem>>, vector<16x16x128xbf16>
    %41 = vector.shape_cast %40 : vector<16x16x128xbf16> to vector<256x128xbf16>
    %c2_49 = arith.constant 2 : index
    %c0_50 = arith.constant 0 : index
    %c0_51 = arith.constant 0 : index
    %c0_52 = arith.constant 0 : index
    %42 = vector.load %arg4[%c2_49, %c0_50, %c0_51, %c0_52] : memref<3x3x128x128xbf16, #tpu.memory_space<vmem>>, vector<1x1x128x128xbf16>
    %43 = vector.shape_cast %42 : vector<1x1x128x128xbf16> to vector<128x128xbf16>
    %cst_53 = arith.constant dense<0.000000e+00> : vector<256x128xf32>
    %44 = tpu.matmul %41, %43, %cst_53 {dimension_numbers = #tpu.dot_dimension_numbers<[1], [0], [0], [1], [0, 0, 1, 1], [], []>} : vector<256x128xbf16>, vector<128x128xbf16>, vector<256x128xf32> -> vector<256x128xf32>
    %45 = arith.addf %39, %44 : vector<256x128xf32>
    %c2_54 = arith.constant 2 : index
    %c1_55 = arith.constant 1 : index
    %c0_56 = arith.constant 0 : index
    %46 = vector.load %arg8[%c2_54, %c1_55, %c0_56] : memref<18x24x128xbf16, #tpu.memory_space<vmem>>, vector<16x16x128xbf16>
    %47 = vector.shape_cast %46 : vector<16x16x128xbf16> to vector<256x128xbf16>
    %c2_57 = arith.constant 2 : index
    %c1_58 = arith.constant 1 : index
    %c0_59 = arith.constant 0 : index
    %c0_60 = arith.constant 0 : index
    %48 = vector.load %arg4[%c2_57, %c1_58, %c0_59, %c0_60] : memref<3x3x128x128xbf16, #tpu.memory_space<vmem>>, vector<1x1x128x128xbf16>
    %49 = vector.shape_cast %48 : vector<1x1x128x128xbf16> to vector<128x128xbf16>
    %cst_61 = arith.constant dense<0.000000e+00> : vector<256x128xf32>
    %50 = tpu.matmul %47, %49, %cst_61 {dimension_numbers = #tpu.dot_dimension_numbers<[1], [0], [0], [1], [0, 0, 1, 1], [], []>} : vector<256x128xbf16>, vector<128x128xbf16>, vector<256x128xf32> -> vector<256x128xf32>
    %51 = arith.addf %45, %50 : vector<256x128xf32>
    %c2_62 = arith.constant 2 : index
    %c2_63 = arith.constant 2 : index
    %c0_64 = arith.constant 0 : index
    %52 = vector.load %arg8[%c2_62, %c2_63, %c0_64] : memref<18x24x128xbf16, #tpu.memory_space<vmem>>, vector<16x16x128xbf16>
    %53 = vector.shape_cast %52 : vector<16x16x128xbf16> to vector<256x128xbf16>
    %c2_65 = arith.constant 2 : index
    %c2_66 = arith.constant 2 : index
    %c0_67 = arith.constant 0 : index
    %c0_68 = arith.constant 0 : index
    %54 = vector.load %arg4[%c2_65, %c2_66, %c0_67, %c0_68] : memref<3x3x128x128xbf16, #tpu.memory_space<vmem>>, vector<1x1x128x128xbf16>
    %55 = vector.shape_cast %54 : vector<1x1x128x128xbf16> to vector<128x128xbf16>
    %cst_69 = arith.constant dense<0.000000e+00> : vector<256x128xf32>
    %56 = tpu.matmul %53, %55, %cst_69 {dimension_numbers = #tpu.dot_dimension_numbers<[1], [0], [0], [1], [0, 0, 1, 1], [], []>} : vector<256x128xbf16>, vector<128x128xbf16>, vector<256x128xf32> -> vector<256x128xf32>
    %57 = arith.addf %51, %56 : vector<256x128xf32>
    %c0_70 = arith.constant 0 : index
    %c0_71 = arith.constant 0 : index
    %58 = vector.load %arg5[%c0_70, %c0_71] : memref<1x128xf32, #tpu.memory_space<vmem>>, vector<1x128xf32>
    %59 = vector.broadcast %58 : vector<1x128xf32> to vector<256x128xf32>
    %60 = arith.mulf %57, %59 : vector<256x128xf32>
    %c0_72 = arith.constant 0 : index
    %c0_73 = arith.constant 0 : index
    %61 = vector.load %arg6[%c0_72, %c0_73] : memref<1x128xf32, #tpu.memory_space<vmem>>, vector<1x128xf32>
    %62 = vector.broadcast %61 : vector<1x128xf32> to vector<256x128xf32>
    %63 = arith.addf %60, %62 : vector<256x128xf32>
    %cst_74 = arith.constant 0.000000e+00 : f32
    %64 = vector.broadcast %cst_74 : f32 to vector<256x128xf32>
    %65 = arith.cmpf ogt, %63, %64 : vector<256x128xf32>
    %cst_75 = arith.constant 1.000000e-01 : f32
    %66 = vector.broadcast %cst_75 : f32 to vector<256x128xf32>
    %67 = arith.mulf %66, %63 : vector<256x128xf32>
    %68 = arith.select %65, %63, %67 : vector<256x128xi1>, vector<256x128xf32>
    %69 = vector.shape_cast %68 : vector<256x128xf32> to vector<16x16x128xf32>
    %c0_76 = arith.constant 0 : index
    %c0_77 = arith.constant 0 : index
    %c0_78 = arith.constant 0 : index
    %c0_79 = arith.constant 0 : index
    %70 = vector.load %arg7[%c0_76, %c0_77, %c0_78, %c0_79] : memref<1x16x16x128xf32, #tpu.memory_space<vmem>>, vector<1x16x16x128xf32>
    %71 = vector.shape_cast %70 : vector<1x16x16x128xf32> to vector<16x16x128xf32>
    %72 = vector.shape_cast %69 : vector<16x16x128xf32> to vector<1x16x16x128xf32>
    tpu.vector_store %arg7[%c0_76, %c0_77, %c0_78, %c0_79], %72 {strides = array<i32>} : memref<1x16x16x128xf32, #tpu.memory_space<vmem>>, vector<1x16x16x128xf32>,
    return
  }
  func.func @transform_1(%arg0: i32, %arg1: i32, %arg2: i32) -> (i32, i32, i32, i32) {
    %c0_i32 = arith.constant 0 : i32
    %c0_i32_0 = arith.constant 0 : i32
    %c0_i32_1 = arith.constant 0 : i32
    %c0_i32_2 = arith.constant 0 : i32
    return %c0_i32, %c0_i32_0, %c0_i32_1, %arg2 : i32, i32, i32, i32
  }
  func.func @transform_2(%arg0: i32, %arg1: i32, %arg2: i32) -> (i32, i32) {
    %c0_i32 = arith.constant 0 : i32
    %c0_i32_0 = arith.constant 0 : i32
    return %c0_i32, %arg2 : i32, i32
  }
  func.func @transform_3(%arg0: i32, %arg1: i32, %arg2: i32) -> (i32, i32) {
    %c0_i32 = arith.constant 0 : i32
    %c0_i32_0 = arith.constant 0 : i32
    return %c0_i32, %arg2 : i32, i32
  }
  func.func @transform_4(%arg0: i32, %arg1: i32, %arg2: i32) -> (i32, i32, i32, i32) {
    %c0_i32 = arith.constant 0 : i32
    %c0_i32_0 = arith.constant 0 : i32
    return %arg0, %arg1, %c0_i32, %arg2 : i32, i32, i32, i32
  }
}

</mosaic_0001>

<llo_original>
// kernel: tpu_custom_call.1
$region0: #{tpu_custom_call.1}
  #allocation0 [shape = 'u32[]', space=smem, size = 0x4, offset = 0x4, fixed_abs, tag = 'smem constant byte address 0x4 - core index']
  #allocation1 [shape = 'u32[144,128]{1,0:T(1,128)}', space=vmem, size = 0x12000, scoped, tag = 'internal scratch']
  #allocation2 [shape = 'bf16[18,24,128]{2,1,0:T(8,128)(2,1)}', space=vmem, size = 0x1b000, scoped, tag = 'scratch operand']
  #allocation3 [shape = 's32[1]{0}', space=sflag, size = 0x4, scoped, tag = 'scratch operand']
  #allocation8 [shape = 's32[]', space=sflag, size = 0x4, offset = 0, fixed_abs, tag = 'sflag constant byte address 0x0 - dummy sync flag']
  #allocation9 [shape = 's32[]', space=sflag, size = 0x4, offset = 0, fixed_abs, tag = 'sflag constant byte address 0x0 - dummy sync flag']
  #allocation10 [shape = 'u32[]', space=smem, size = 0x4, offset = 0x44, fixed_abs, tag = 'smem constant byte address 0x44 - assertion arg 0']
  #allocation11 [shape = 'u32[]', space=smem, size = 0x4, offset = 0x48, fixed_abs, tag = 'smem constant byte address 0x48 - assertion arg 1']
  %s0 = inlined_call_operand.hbm [shape: bf16[2,18,24,128], index: 0, kind: input, shape index: {}]
  %s1 = inlined_call_operand.hbm [shape: bf16[3,3,128,128], index: 1, kind: input, shape index: {}]
  %s2 = inlined_call_operand.vmem [shape: f32[1,128], index: 2, kind: input, shape index: {}]
  %s3 = inlined_call_operand.vmem [shape: f32[1,128], index: 3, kind: input, shape index: {}]
  %s4 = inlined_call_operand.hbm [shape: f32[2,16,16,128], index: 4, kind: output, shape index: {}]
  %s5 = sld [smem:[#allocation0]]
  $region57: #{tpu_custom_call.1} parent=0
    _
  %s7 = ssub.s32 1, %s5
  %s8 = scalar_select 0, %s7, %s5
  $region1: #{tpu_custom_call.1} parent=0
    #allocation4 [shape = 'u8[294912]{0}', space=vmem, size = 0x48000, scoped, tag = 'input window, operand 1, single buffered']
    #allocation5 [shape = 's32[2]{0}', space=sflag, size = 0x8, scoped, tag = 'scoped memory for tpu_custom_call.1']
    #allocation6 [shape = 's32[2]{0}', space=sflag, size = 0x8, scoped, tag = 'scoped memory for tpu_custom_call.1']
    #allocation7 [shape = 'u8[262144]{0}', space=vmem, size = 0x40000, scoped, tag = 'output window, operand 0']
    %9 = vsyncpa [#allocation5], 0
    %10 = vsyncpa [#allocation6], 0
    %s11 = scalar_lea.sflag [#allocation6], 1
    %12 = vsyncpa %s11, 0
    loop: start=0, step=1, limit=4
    $region2: #{tpu_custom_call.1} parent=1 // loop_pre_header
      _
    $region3: #{tpu_custom_call.1} parent=1 // loop_header
      %s14 = sphi 0, %s18
      %p15 = scmp.ge.s32.totalorder %s14, 4
      %s21 = sphi 0, %s40
      %s22 = sphi 0, %s36
      %s23 = sphi 0, %s32
      %s24 = sphi 0, %s21
      %s25 = sphi 0, %s22
      %s26 = sphi 0, %s23
      %s27 = sphi 0, %s24
      %s28 = sphi 0, %s25
      %s29 = sphi 0, %s26
      %s43 = sphi 0, %s45
      %s46 = sphi 0, %s43
      %s47 = sphi 0, %s46
      %s63 = sphi 0, %s47
      %s69 = sphi 0, %s71
      %s72 = sphi 0, %s69
      %s73 = sphi 0, %s72
      %s89 = sphi 0, %s73
      %s95 = sphi 0, %s97
      %s98 = sphi 0, %s95
      %s99 = sphi 0, %s98
      %s115 = sphi 0, %s99
      %s125 = sphi 0, %s127
      %s128 = sphi 0, %s125
      %s129 = sphi 0, %s128
      %s145 = sphi 0, %s129
    $region4: #{tpu_custom_call.1} parent=1 // loop_header_branch
      %17 = sbr.rel (%p15) target = $region8
    $region5: #{tpu_custom_call.1} parent=1 // loop_body
      %s19 = ssub.s32 %s14, 1
      %s20 = ssub.s32 %s14, 2
      %s30 = sadd.s32 1, %s23
      %p31 = scmp.ge.s32.totalorder %s30, 1
      %s32 = scalar_select %p31, 0, %s30
      %s33 = sadd.s32 1, %s22
      %s34 = scalar_select %p31, %s33, %s22
      %p35 = scmp.ge.s32.totalorder %s34, 1
      %s36 = scalar_select %p35, 0, %s34
      %s37 = sadd.s32 1, %s21
      %s38 = scalar_select %p35, %s37, %s21
      %p39 = scmp.ge.s32.totalorder %s38, 2
      %s40 = scalar_select %p39, 0, %s38
      %s41 = ssub.s32 %s23, %s32
      %p42 = scmp.eq.s32.totalorder %s41, 0
      %s44 = sadd.s32 %s43, 1
      %s45 = scalar_select %p42, %s43, %s44
      %p48 = pneg %p42
      %p49 = scmp.eq.s32.totalorder %s14, 1
      %p50 = por %p48, %p49
      %p51 = scmp.ne.s32.totalorder %s43, %s46
      %p52 = scmp.eq.s32.totalorder %s14, 0
      %p53 = por %p51, %p52
      %p54 = scmp.ne.s32.totalorder %s43, %s46
      %p55 = scmp.eq.s32.totalorder %s19, 1
      %p56 = por %p54, %p55
      %p57 = scmp.ne.s32.totalorder %s46, %s47
      %p58 = scmp.eq.s32.totalorder %s19, 0
      %p59 = por %p57, %p58
      %p60 = scmp.ne.s32.totalorder %s46, %s47
      %p61 = scmp.eq.s32.totalorder %s20, 1
      %p62 = por %p60, %p61
      %p64 = scmp.ne.s32.totalorder %s47, %s63
      %p65 = scmp.eq.s32.totalorder %s20, 0
      %p66 = por %p64, %p65
      %s67 = ssub.s32 %s23, %s32
      %p68 = scmp.eq.s32.totalorder %s67, 0
      %s70 = sadd.s32 %s69, 1
      %s71 = scalar_select %p68, %s69, %s70
      %p74 = pneg %p68
      %p75 = scmp.eq.s32.totalorder %s14, 1
      %p76 = por %p74, %p75
      %p77 = scmp.ne.s32.totalorder %s69, %s72
      %p78 = scmp.eq.s32.totalorder %s14, 0
      %p79 = por %p77, %p78
      %p80 = scmp.ne.s32.totalorder %s69, %s72
      %p81 = scmp.eq.s32.totalorder %s19, 1
      %p82 = por %p80, %p81
      %p83 = scmp.ne.s32.totalorder %s72, %s73
      %p84 = scmp.eq.s32.totalorder %s19, 0
      %p85 = por %p83, %p84
      %p86 = scmp.ne.s32.totalorder %s72, %s73
      %p87 = scmp.eq.s32.totalorder %s20, 1
      %p88 = por %p86, %p87
      %p90 = scmp.ne.s32.totalorder %s73, %s89
      %p91 = scmp.eq.s32.totalorder %s20, 0
      %p92 = por %p90, %p91
      %s93 = ssub.s32 %s23, %s32
      %p94 = scmp.eq.s32.totalorder %s93, 0
      %s96 = sadd.s32 %s95, 1
      %s97 = scalar_select %p94, %s95, %s96
      %p100 = pneg %p94
      %p101 = scmp.eq.s32.totalorder %s14, 1
      %p102 = por %p100, %p101
      %p103 = scmp.ne.s32.totalorder %s95, %s98
      %p104 = scmp.eq.s32.totalorder %s14, 0
      %p105 = por %p103, %p104
      %p106 = scmp.ne.s32.totalorder %s95, %s98
      %p107 = scmp.eq.s32.totalorder %s19, 1
      %p108 = por %p106, %p107
      %p109 = scmp.ne.s32.totalorder %s98, %s99
      %p110 = scmp.eq.s32.totalorder %s19, 0
      %p111 = por %p109, %p110
      %p112 = scmp.ne.s32.totalorder %s98, %s99
      %p113 = scmp.eq.s32.totalorder %s20, 1
      %p114 = por %p112, %p113
      %p116 = scmp.ne.s32.totalorder %s99, %s115
      %p117 = scmp.eq.s32.totalorder %s20, 0
      %p118 = por %p116, %p117
      %s119 = ssub.s32 %s21, %s40
      %s120 = ssub.s32 %s22, %s36
      %s121 = sor.u32 %s119, %s120
      %s122 = ssub.s32 %s23, %s32
      %s123 = sor.u32 %s121, %s122
      %p124 = scmp.eq.s32.totalorder %s123, 0
      %s126 = sadd.s32 %s125, 1
      %s127 = scalar_select %p124, %s125, %s126
      %p130 = pneg %p124
      %p131 = scmp.eq.s32.totalorder %s14, 1
      %p132 = por %p130, %p131
      %p133 = scmp.ne.s32.totalorder %s125, %s128
      %p134 = scmp.eq.s32.totalorder %s14, 0
      %p135 = por %p133, %p134
      %p136 = scmp.ne.s32.totalorder %s125, %s128
      %p137 = scmp.eq.s32.totalorder %s19, 1
      %p138 = por %p136, %p137
      %p139 = scmp.ne.s32.totalorder %s128, %s129
      %p140 = scmp.eq.s32.totalorder %s19, 0
      %p141 = por %p139, %p140
      %p142 = scmp.ne.s32.totalorder %s128, %s129
      %p143 = scmp.eq.s32.totalorder %s20, 1
      %p144 = por %p142, %p143
      %p146 = scmp.ne.s32.totalorder %s129, %s145
      %p147 = scmp.eq.s32.totalorder %s20, 0
      %p148 = por %p146, %p147
      %p149 = scmp.le.s32.totalorder 1, %s14
      %p150 = scmp.lt.s32.totalorder %s14, 3
      %p151 = pnand %p149, %p150
      %p152 = pneg %p151
      // Predicated region
      $region9: #{tpu_custom_call.1} parent=5 // pred_check
        _
      $region10: #{tpu_custom_call.1} parent=5 // pred_check_branch
        %154 = sbr.rel (%p151) target = $region12
      $region11: #{tpu_custom_call.1} parent=5 // pred_region
        %s155 = ssub.s32 %s14, 1
        // Predicated region
        $region13: #{tpu_custom_call.1} parent=11 // pred_check
          %p156 = pneg %p59
        $region14: #{tpu_custom_call.1} parent=11 // pred_check_branch
          %158 = sbr.rel (%p156) target = $region16
        $region15: #{tpu_custom_call.1} parent=11 // pred_region
          %s160 = ssub.s32 9216, 9216
          %161 = vsyncadd [#allocation5], %s160
          %s162 = smul.addr %s26, 64
          %s163 = scalar_lea.hbm %s1, %s162
          %s164 = sshll.u32 [#allocation4], 4
          %s165 = int_to_ptr.vmem [resolvable:$true] %s164
          %170 = dma.hbm_to_vmem [thread:$0]  %s163, 9216, %s165, [#allocation5], 64, 64, 4
        $region16: #{tpu_custom_call.1} parent=11 // pred_fallthru
          _
        // Predicated region
        $region17: #{tpu_custom_call.1} parent=11 // pred_check
          %p171 = pneg %p85
        $region18: #{tpu_custom_call.1} parent=11 // pred_check_branch
          %173 = sbr.rel (%p171) target = $region20
        $region19: #{tpu_custom_call.1} parent=11 // pred_region
          %p174 = scmp.lt.s32.totalorder %s26, 0
          %s175 = scalar_select %p174, %s26, 0
          %s176 = scalar_lea.vmem %s2, %s175
        $region20: #{tpu_custom_call.1} parent=11 // pred_fallthru
          _
        // Predicated region
        $region21: #{tpu_custom_call.1} parent=11 // pred_check
          %p177 = pneg %p111
        $region22: #{tpu_custom_call.1} parent=11 // pred_check_branch
          %179 = sbr.rel (%p177) target = $region24
        $region23: #{tpu_custom_call.1} parent=11 // pred_region
          %p180 = scmp.lt.s32.totalorder %s26, 0
          %s181 = scalar_select %p180, %s26, 0
          %s182 = scalar_lea.vmem %s3, %s181
        $region24: #{tpu_custom_call.1} parent=11 // pred_fallthru
          _
      $region12: #{tpu_custom_call.1} parent=5 // pred_fallthru
        _
      %p183 = scmp.lt.s32.totalorder %s14, 2
      // Predicated region
      $region25: #{tpu_custom_call.1} parent=5 // pred_check
        %p184 = pneg %p183
      $region26: #{tpu_custom_call.1} parent=5 // pred_check_branch
        %186 = sbr.rel (%p184) target = $region28
      $region27: #{tpu_custom_call.1} parent=5 // pred_region
        _
      $region28: #{tpu_custom_call.1} parent=5 // pred_fallthru
        _
      %p187 = scmp.le.s32.totalorder 1, %s14
      %p188 = scmp.lt.s32.totalorder %s14, 3
      %p189 = pnand %p187, %p188
      %p190 = pneg %p189
      // Predicated region
      $region29: #{tpu_custom_call.1} parent=5 // pred_check
        _
      $region30: #{tpu_custom_call.1} parent=5 // pred_check_branch
        %192 = sbr.rel (%p189) target = $region32
      $region31: #{tpu_custom_call.1} parent=5 // pred_region
        %s193 = ssub.s32 %s14, 1
        // Predicated region
        $region33: #{tpu_custom_call.1} parent=31 // pred_check
          %p194 = pneg %p59
        $region34: #{tpu_custom_call.1} parent=31 // pred_check_branch
          %196 = sbr.rel (%p194) target = $region36
        $region35: #{tpu_custom_call.1} parent=31 // pred_region
          %197 = dma.done [#allocation5], 9216
        $region36: #{tpu_custom_call.1} parent=31 // pred_fallthru
          _
        %p198 = pneg %p59
        %p199 = pneg %p56
        %p200 = scmp.lt.s32.totalorder %s26, 0
        %s201 = scalar_select %p200, %s26, 0
        %s202 = scalar_lea.vmem %s2, %s201
        %p203 = pneg %p85
        %p204 = pneg %p82
        %p205 = scmp.lt.s32.totalorder %s26, 0
        %s206 = scalar_select %p205, %s26, 0
        %s207 = scalar_lea.vmem %s3, %s206
        %p208 = pneg %p111
        %p209 = pneg %p108
        %p210 = pneg %p141
        %p211 = pneg %p138
        %s212 = sand.u32 %s128, 1
        %s213 = scalar_lea.sflag [#allocation6], %s212
        %s214 = sand.u32 %s128, 1
        %s215 = smul.addr %s214, 256
        %s216 = scalar_lea.vmem [#allocation7], %s215
        %p217 = scmp.lt.s32.totalorder %s26, 0
        %s218 = scalar_select %p217, %s26, 0
        %s219 = scalar_lea.vmem %s2, %s218
        %p220 = scmp.lt.s32.totalorder %s26, 0
        %s221 = scalar_select %p220, %s26, 0
        %s222 = scalar_lea.vmem %s3, %s221
        %s223 = smul.u32 16, %s25
        %p225 = scmp.eq.s32.totalorder %s26, 0
        // Predicated region
        $region37: #{tpu_custom_call.1} parent=31 // pred_check
          %p226 = pneg %p225
        $region38: #{tpu_custom_call.1} parent=31 // pred_check_branch
          %228 = sbr.rel (%p226) target = $region40
        $region39: #{tpu_custom_call.1} parent=31 // pred_region
          %s229 = smul.u32 %s25, 16
          %s230 = smul.u32 %s229, 3
          %s231 = smul.u32 %s24, 54
          %s232 = sadd.s32 %s230, %s231
          %s233 = smul.addr %s232, 64
          %s234 = scalar_lea.hbm %s0, %s233
          // Predicated region
          $region41: #{tpu_custom_call.1} parent=39 // pred_check
            _
          $region42: #{tpu_custom_call.1} parent=39 // pred_check_branch
            %236 = sbr.rel target = $region44
          $region43: #{tpu_custom_call.1} parent=39 // pred_region
            %237 = sst [smem:[#allocation10]] [#allocation9]
            %238 = sst [smem:[#allocation11]] [#allocation8]
          $region44: #{tpu_custom_call.1} parent=39 // pred_fallthru
            _
          %240 = shalt.err (0)
          %s242 = sshll.u32 [#allocation2], 4
          %s243 = int_to_ptr.vmem [resolvable:$true] %s242
          %245 = dma.hbm_to_vmem [thread:$0]  %s234, 3456, %s243, [#allocation3]
          %s246 = smul.u32 4, 18
          %s247 = smul.u32 %s246, 3
          %s248 = smul.u32 %s247, 1
          %s249 = sshll.u32 %s248, 4
          %250 = dma.done [#allocation3], %s249
        $region40: #{tpu_custom_call.1} parent=31 // pred_fallthru
          _
        %v251 = vld [vmem:[#allocation2] sm:$0xf]
        %v252 = vld [vmem:[#allocation2 + $0x4] sm:$0xf]
        %v253 = vld [vmem:[#allocation2 + $0xc] sm:$0xf]
        %v254 = vld [vmem:[#allocation2 + $0x10] sm:$0xf]
        %v255 = vld [vmem:[#allocation2 + $0x18] sm:$0xf]
        %v256 = vld [vmem:[#allocation2 + $0x1c] sm:$0xf]
        %v257 = vld [vmem:[#allocation2 + $0x24] sm:$0xf]
        %v258 = vld [vmem:[#allocation2 + $0x28] sm:$0xf]
        %v259 = vld [vmem:[#allocation2 + $0x30] sm:$0xf]
        %v260 = vld [vmem:[#allocation2 + $0x34] sm:$0xf]
        %v261 = vld [vmem:[#allocation2 + $0x3c] sm:$0xf]
        %v262 = vld [vmem:[#allocation2 + $0x40] sm:$0xf]
        %v263 = vld [vmem:[#allocation2 + $0x48] sm:$0xf]
        %v264 = vld [vmem:[#allocation2 + $0x4c] sm:$0xf]
        %v265 = vld [vmem:[#allocation2 + $0x54] sm:$0xf]
        %v266 = vld [vmem:[#allocation2 + $0x58] sm:$0xf]
        %v267 = vld [vmem:[#allocation2 + $0x60] sm:$0xf]
        %v268 = vld [vmem:[#allocation2 + $0x64] sm:$0xf]
        %v269 = vld [vmem:[#allocation2 + $0x6c] sm:$0xf]
        %v270 = vld [vmem:[#allocation2 + $0x70] sm:$0xf]
        %v271 = vld [vmem:[#allocation2 + $0x78] sm:$0xf]
        %v272 = vld [vmem:[#allocation2 + $0x7c] sm:$0xf]
        %v273 = vld [vmem:[#allocation2 + $0x84] sm:$0xf]
        %v274 = vld [vmem:[#allocation2 + $0x88] sm:$0xf]
        %v275 = vld [vmem:[#allocation2 + $0x90] sm:$0xf]
        %v276 = vld [vmem:[#allocation2 + $0x94] sm:$0xf]
        %v277 = vld [vmem:[#allocation2 + $0x9c] sm:$0xf]
        %v278 = vld [vmem:[#allocation2 + $0xa0] sm:$0xf]
        %v279 = vld [vmem:[#allocation2 + $0xa8] sm:$0xf]
        %v280 = vld [vmem:[#allocation2 + $0xac] sm:$0xf]
        %v281 = vld [vmem:[#allocation2 + $0xb4] sm:$0xf]
        %v282 = vld [vmem:[#allocation2 + $0xb8] sm:$0xf]
        %v283 = vld [vmem:[#allocation4] sm:$0xf]
        %v284 = vld [vmem:[#allocation4 + $0x4] sm:$0xf]
        %v285 = vld [vmem:[#allocation4 + $0x8] sm:$0xf]
        %v286 = vld [vmem:[#allocation4 + $0xc] sm:$0xf]
        %v287 = vld [vmem:[#allocation4 + $0x10] sm:$0xf]
        %v288 = vld [vmem:[#allocation4 + $0x14] sm:$0xf]
        %v289 = vld [vmem:[#allocation4 + $0x18] sm:$0xf]
        %v290 = vld [vmem:[#allocation4 + $0x1c] sm:$0xf]
        %v291 = vld [vmem:[#allocation4 + $0x20] sm:$0xf]
        %v292 = vld [vmem:[#allocation4 + $0x24] sm:$0xf]
        %v293 = vld [vmem:[#allocation4 + $0x28] sm:$0xf]
        %v294 = vld [vmem:[#allocation4 + $0x2c] sm:$0xf]
        %v295 = vld [vmem:[#allocation4 + $0x30] sm:$0xf]
        %v296 = vld [vmem:[#allocation4 + $0x34] sm:$0xf]
        %v297 = vld [vmem:[#allocation4 + $0x38] sm:$0xf]
        %v298 = vld [vmem:[#allocation4 + $0x3c] sm:$0xf]
        %v299 = vld [vmem:[#allocation2 + $0x8] sm:$0x1]
        %v300 = vld [vmem:[#allocation2 + $0x14] sm:$0x1]
        %v301 = vld [vmem:[#allocation2 + $0x20] sm:$0x1]
        %v302 = vld [vmem:[#allocation2 + $0x2c] sm:$0x1]
        %v303 = vld [vmem:[#allocation2 + $0x38] sm:$0x1]
        %v304 = vld [vmem:[#allocation2 + $0x44] sm:$0x1]
        %v305 = vld [vmem:[#allocation2 + $0x50] sm:$0x1]
        %v306 = vld [vmem:[#allocation2 + $0x5c] sm:$0x1]
        %v307 = vld [vmem:[#allocation2 + $0x68] sm:$0x1]
        %v308 = vld [vmem:[#allocation2 + $0x74] sm:$0x1]
        %v309 = vld [vmem:[#allocation2 + $0x80] sm:$0x1]
        %v310 = vld [vmem:[#allocation2 + $0x8c] sm:$0x1]
        %v311 = vld [vmem:[#allocation2 + $0x98] sm:$0x1]
        %v312 = vld [vmem:[#allocation2 + $0xa4] sm:$0x1]
        %v313 = vld [vmem:[#allocation2 + $0xb0] sm:$0x1]
        %v314 = vld [vmem:[#allocation2 + $0xbc] sm:$0x1]
        %vm315 = vsmask.f32 3328
        %vm316 = vsmask.f32 7440
        %vm317 = vmor %vm315, %vm316
        %v319 = vshrl.u32 %v251, 16
        %v321 = vrot.slane %v319, 4
        %v322 = vshll.u32 %v251, 16
        %v324 = vrot.slane %v322, 5
        %v325 = vor.u32 %v321, %v324
        %v326 = vrot.slane %v325, 4
        %v328 = vshll.u32 %v252, 16
        %v330 = vrot.slane %v328, 5
        %v331 = vsel %vm317, %v326, %v330
        %v332 = vshrl.u32 %v252, 16
        %v334 = vrot.slane %v332, 4
        %v335 = vor.u32 %v334, %v330
        %v336 = vrot.slane %v335, 4
        %v338 = vshll.u32 %v299, 16
        %v340 = vrot.slane %v338, 5
        %v341 = vsel %vm317, %v336, %v340
        %v343 = vshrl.u32 %v253, 16
        %v345 = vrot.slane %v343, 4
        %v346 = vshll.u32 %v253, 16
        %v348 = vrot.slane %v346, 5
        %v349 = vor.u32 %v345, %v348
        %v350 = vrot.slane %v349, 4
        %v352 = vshll.u32 %v254, 16
        %v354 = vrot.slane %v352, 5
        %v355 = vsel %vm317, %v350, %v354
        %v356 = vshrl.u32 %v254, 16
        %v358 = vrot.slane %v356, 4
        %v359 = vor.u32 %v358, %v354
        %v360 = vrot.slane %v359, 4
        %v362 = vshll.u32 %v300, 16
        %v364 = vrot.slane %v362, 5
        %v365 = vsel %vm317, %v360, %v364
        %v367 = vshrl.u32 %v255, 16
        %v369 = vrot.slane %v367, 4
        %v370 = vshll.u32 %v255, 16
        %v372 = vrot.slane %v370, 5
        %v373 = vor.u32 %v369, %v372
        %v374 = vrot.slane %v373, 4
        %v376 = vshll.u32 %v256, 16
        %v378 = vrot.slane %v376, 5
        %v379 = vsel %vm317, %v374, %v378
        %v380 = vshrl.u32 %v256, 16
        %v382 = vrot.slane %v380, 4
        %v383 = vor.u32 %v382, %v378
        %v384 = vrot.slane %v383, 4
        %v386 = vshll.u32 %v301, 16
        %v388 = vrot.slane %v386, 5
        %v389 = vsel %vm317, %v384, %v388
        %v391 = vshrl.u32 %v257, 16
        %v393 = vrot.slane %v391, 4
        %v394 = vshll.u32 %v257, 16
        %v396 = vrot.slane %v394, 5
        %v397 = vor.u32 %v393, %v396
        %v398 = vrot.slane %v397, 4
        %v400 = vshll.u32 %v258, 16
        %v402 = vrot.slane %v400, 5
        %v403 = vsel %vm317, %v398, %v402
        %v404 = vshrl.u32 %v258, 16
        %v406 = vrot.slane %v404, 4
        %v407 = vor.u32 %v406, %v402
        %v408 = vrot.slane %v407, 4
        %v410 = vshll.u32 %v302, 16
        %v412 = vrot.slane %v410, 5
        %v413 = vsel %vm317, %v408, %v412
        %v415 = vshrl.u32 %v259, 16
        %v417 = vrot.slane %v415, 4
        %v418 = vshll.u32 %v259, 16
        %v420 = vrot.slane %v418, 5
        %v421 = vor.u32 %v417, %v420
        %v422 = vrot.slane %v421, 4
        %v424 = vshll.u32 %v260, 16
        %v426 = vrot.slane %v424, 5
        %v427 = vsel %vm317, %v422, %v426
        %v428 = vshrl.u32 %v260, 16
        %v430 = vrot.slane %v428, 4
        %v431 = vor.u32 %v430, %v426
        %v432 = vrot.slane %v431, 4
        %v434 = vshll.u32 %v303, 16
        %v436 = vrot.slane %v434, 5
        %v437 = vsel %vm317, %v432, %v436
        %v439 = vshrl.u32 %v261, 16
        %v441 = vrot.slane %v439, 4
        %v442 = vshll.u32 %v261, 16
        %v444 = vrot.slane %v442, 5
        %v445 = vor.u32 %v441, %v444
        %v446 = vrot.slane %v445, 4
        %v448 = vshll.u32 %v262, 16
        %v450 = vrot.slane %v448, 5
        %v451 = vsel %vm317, %v446, %v450
        %v452 = vshrl.u32 %v262, 16
        %v454 = vrot.slane %v452, 4
        %v455 = vor.u32 %v454, %v450
        %v456 = vrot.slane %v455, 4
        %v458 = vshll.u32 %v304, 16
        %v460 = vrot.slane %v458, 5
        %v461 = vsel %vm317, %v456, %v460
        %v463 = vshrl.u32 %v263, 16
        %v465 = vrot.slane %v463, 4
        %v466 = vshll.u32 %v263, 16
        %v468 = vrot.slane %v466, 5
        %v469 = vor.u32 %v465, %v468
        %v470 = vrot.slane %v469, 4
        %v472 = vshll.u32 %v264, 16
        %v474 = vrot.slane %v472, 5
        %v475 = vsel %vm317, %v470, %v474
        %v476 = vshrl.u32 %v264, 16
        %v478 = vrot.slane %v476, 4
        %v479 = vor.u32 %v478, %v474
        %v480 = vrot.slane %v479, 4
        %v482 = vshll.u32 %v305, 16
        %v484 = vrot.slane %v482, 5
        %v485 = vsel %vm317, %v480, %v484
        %v487 = vshrl.u32 %v265, 16
        %v489 = vrot.slane %v487, 4
        %v490 = vshll.u32 %v265, 16
        %v492 = vrot.slane %v490, 5
        %v493 = vor.u32 %v489, %v492
        %v494 = vrot.slane %v493, 4
        %v496 = vshll.u32 %v266, 16
        %v498 = vrot.slane %v496, 5
        %v499 = vsel %vm317, %v494, %v498
        %v500 = vshrl.u32 %v266, 16
        %v502 = vrot.slane %v500, 4
        %v503 = vor.u32 %v502, %v498
        %v504 = vrot.slane %v503, 4
        %v506 = vshll.u32 %v306, 16
        %v508 = vrot.slane %v506, 5
        %v509 = vsel %vm317, %v504, %v508
        %v511 = vshrl.u32 %v267, 16
        %v513 = vrot.slane %v511, 4
        %v514 = vshll.u32 %v267, 16
        %v516 = vrot.slane %v514, 5
        %v517 = vor.u32 %v513, %v516
        %v518 = vrot.slane %v517, 4
        %v520 = vshll.u32 %v268, 16
        %v522 = vrot.slane %v520, 5
        %v523 = vsel %vm317, %v518, %v522
        %v524 = vshrl.u32 %v268, 16
        %v526 = vrot.slane %v524, 4
        %v527 = vor.u32 %v526, %v522
        %v528 = vrot.slane %v527, 4
        %v530 = vshll.u32 %v307, 16
        %v532 = vrot.slane %v530, 5
        %v533 = vsel %vm317, %v528, %v532
        %v535 = vshrl.u32 %v269, 16
        %v537 = vrot.slane %v535, 4
        %v538 = vshll.u32 %v269, 16
        %v540 = vrot.slane %v538, 5
        %v541 = vor.u32 %v537, %v540
        %v542 = vrot.slane %v541, 4
        %v544 = vshll.u32 %v270, 16
        %v546 = vrot.slane %v544, 5
        %v547 = vsel %vm317, %v542, %v546
        %v548 = vshrl.u32 %v270, 16
        %v550 = vrot.slane %v548, 4
        %v551 = vor.u32 %v550, %v546
        %v552 = vrot.slane %v551, 4
        %v554 = vshll.u32 %v308, 16
        %v556 = vrot.slane %v554, 5
        %v557 = vsel %vm317, %v552, %v556
        %v559 = vshrl.u32 %v271, 16
        %v561 = vrot.slane %v559, 4
        %v562 = vshll.u32 %v271, 16
        %v564 = vrot.slane %v562, 5
        %v565 = vor.u32 %v561, %v564
        %v566 = vrot.slane %v565, 4
        %v568 = vshll.u32 %v272, 16
        %v570 = vrot.slane %v568, 5
        %v571 = vsel %vm317, %v566, %v570
        %v572 = vshrl.u32 %v272, 16
        %v574 = vrot.slane %v572, 4
        %v575 = vor.u32 %v574, %v570
        %v576 = vrot.slane %v575, 4
        %v578 = vshll.u32 %v309, 16
        %v580 = vrot.slane %v578, 5
        %v581 = vsel %vm317, %v576, %v580
        %v583 = vshrl.u32 %v273, 16
        %v585 = vrot.slane %v583, 4
        %v586 = vshll.u32 %v273, 16
        %v588 = vrot.slane %v586, 5
        %v589 = vor.u32 %v585, %v588
        %v590 = vrot.slane %v589, 4
        %v592 = vshll.u32 %v274, 16
        %v594 = vrot.slane %v592, 5
        %v595 = vsel %vm317, %v590, %v594
        %v596 = vshrl.u32 %v274, 16
        %v598 = vrot.slane %v596, 4
        %v599 = vor.u32 %v598, %v594
        %v600 = vrot.slane %v599, 4
        %v602 = vshll.u32 %v310, 16
        %v604 = vrot.slane %v602, 5
        %v605 = vsel %vm317, %v600, %v604
        %v607 = vshrl.u32 %v275, 16
        %v609 = vrot.slane %v607, 4
        %v610 = vshll.u32 %v275, 16
        %v612 = vrot.slane %v610, 5
        %v613 = vor.u32 %v609, %v612
        %v614 = vrot.slane %v613, 4
        %v616 = vshll.u32 %v276, 16
        %v618 = vrot.slane %v616, 5
        %v619 = vsel %vm317, %v614, %v618
        %v620 = vshrl.u32 %v276, 16
        %v622 = vrot.slane %v620, 4
        %v623 = vor.u32 %v622, %v618
        %v624 = vrot.slane %v623, 4
        %v626 = vshll.u32 %v311, 16
        %v628 = vrot.slane %v626, 5
        %v629 = vsel %vm317, %v624, %v628
        %v631 = vshrl.u32 %v277, 16
        %v633 = vrot.slane %v631, 4
        %v634 = vshll.u32 %v277, 16
        %v636 = vrot.slane %v634, 5
        %v637 = vor.u32 %v633, %v636
        %v638 = vrot.slane %v637, 4
        %v640 = vshll.u32 %v278, 16
        %v642 = vrot.slane %v640, 5
        %v643 = vsel %vm317, %v638, %v642
        %v644 = vshrl.u32 %v278, 16
        %v646 = vrot.slane %v644, 4
        %v647 = vor.u32 %v646, %v642
        %v648 = vrot.slane %v647, 4
        %v650 = vshll.u32 %v312, 16
        %v652 = vrot.slane %v650, 5
        %v653 = vsel %vm317, %v648, %v652
        %v655 = vshrl.u32 %v279, 16
        %v657 = vrot.slane %v655, 4
        %v658 = vshll.u32 %v279, 16
        %v660 = vrot.slane %v658, 5
        %v661 = vor.u32 %v657, %v660
        %v662 = vrot.slane %v661, 4
        %v664 = vshll.u32 %v280, 16
        %v666 = vrot.slane %v664, 5
        %v667 = vsel %vm317, %v662, %v666
        %v668 = vshrl.u32 %v280, 16
        %v670 = vrot.slane %v668, 4
        %v671 = vor.u32 %v670, %v666
        %v672 = vrot.slane %v671, 4
        %v674 = vshll.u32 %v313, 16
        %v676 = vrot.slane %v674, 5
        %v677 = vsel %vm317, %v672, %v676
        %v679 = vshrl.u32 %v281, 16
        %v681 = vrot.slane %v679, 4
        %v682 = vshll.u32 %v281, 16
        %v684 = vrot.slane %v682, 5
        %v685 = vor.u32 %v681, %v684
        %v686 = vrot.slane %v685, 4
        %v688 = vshll.u32 %v282, 16
        %v690 = vrot.slane %v688, 5
        %v691 = vsel %vm317, %v686, %v690
        %v692 = vshrl.u32 %v282, 16
        %v694 = vrot.slane %v692, 4
        %v695 = vor.u32 %v694, %v690
        %v696 = vrot.slane %v695, 4
        %v698 = vshll.u32 %v314, 16
        %v700 = vrot.slane %v698, 5
        %v701 = vsel %vm317, %v696, %v700
        %s702 = scalar_lea.vmem [#allocation4], 64
        %v703 = vld [vmem:[%s702] sm:$0xf]
        %v704 = vld [vmem:[%s702 + $0x4] sm:$0xf]
        %v705 = vld [vmem:[%s702 + $0x8] sm:$0xf]
        %v706 = vld [vmem:[%s702 + $0xc] sm:$0xf]
        %v707 = vld [vmem:[%s702 + $0x10] sm:$0xf]
        %v708 = vld [vmem:[%s702 + $0x14] sm:$0xf]
        %v709 = vld [vmem:[%s702 + $0x18] sm:$0xf]
        %v710 = vld [vmem:[%s702 + $0x1c] sm:$0xf]
        %v711 = vld [vmem:[%s702 + $0x20] sm:$0xf]
        %v712 = vld [vmem:[%s702 + $0x24] sm:$0xf]
        %v713 = vld [vmem:[%s702 + $0x28] sm:$0xf]
        %v714 = vld [vmem:[%s702 + $0x2c] sm:$0xf]
        %v715 = vld [vmem:[%s702 + $0x30] sm:$0xf]
        %v716 = vld [vmem:[%s702 + $0x34] sm:$0xf]
        %v717 = vld [vmem:[%s702 + $0x38] sm:$0xf]
        %v718 = vld [vmem:[%s702 + $0x3c] sm:$0xf]
        %v719 = vunpack.c.l.b16 %v331
        %v720 = vunpack.c.l.b16 %v341
        %v721 = vunpack.c.l.b16 %v355
        %v722 = vunpack.c.l.b16 %v365
        %v723 = vunpack.c.l.b16 %v379
        %v724 = vunpack.c.l.b16 %v389
        %v725 = vunpack.c.l.b16 %v403
        %v726 = vunpack.c.l.b16 %v413
        %v727 = vunpack.c.l.b16 %v427
        %v728 = vunpack.c.l.b16 %v437
        %v729 = vunpack.c.l.b16 %v451
        %v730 = vunpack.c.l.b16 %v461
        %v731 = vunpack.c.l.b16 %v475
        %v732 = vunpack.c.l.b16 %v485
        %v733 = vunpack.c.l.b16 %v499
        %v734 = vunpack.c.l.b16 %v509
        %v735 = vunpack.c.l.b16 %v523
        %v736 = vunpack.c.l.b16 %v533
        %v737 = vunpack.c.l.b16 %v547
        %v738 = vunpack.c.l.b16 %v557
        %v739 = vunpack.c.l.b16 %v571
        %v740 = vunpack.c.l.b16 %v581
        %v741 = vunpack.c.l.b16 %v595
        %v742 = vunpack.c.l.b16 %v605
        %v743 = vunpack.c.l.b16 %v619
        %v744 = vunpack.c.l.b16 %v629
        %v745 = vunpack.c.l.b16 %v643
        %v746 = vunpack.c.l.b16 %v653
        %v747 = vunpack.c.l.b16 %v667
        %v748 = vunpack.c.l.b16 %v677
        %v749 = vunpack.c.l.b16 %v691
        %v750 = vunpack.c.l.b16 %v701
        %v751 = vpack.c.b16 %v720, %v719
        %v752 = vpack.c.b16 %v722, %v721
        %v753 = vpack.c.b16 %v724, %v723
        %v754 = vpack.c.b16 %v726, %v725
        %v755 = vpack.c.b16 %v728, %v727
        %v756 = vpack.c.b16 %v730, %v729
        %v757 = vpack.c.b16 %v732, %v731
        %v758 = vpack.c.b16 %v734, %v733
        %v759 = vpack.c.b16 %v736, %v735
        %v760 = vpack.c.b16 %v738, %v737
        %v761 = vpack.c.b16 %v740, %v739
        %v762 = vpack.c.b16 %v742, %v741
        %v763 = vpack.c.b16 %v744, %v743
        %v764 = vpack.c.b16 %v746, %v745
        %v765 = vpack.c.b16 %v748, %v747
        %v766 = vpack.c.b16 %v750, %v749
        %v799 = vunpack.c.l.b16 %v703
        %v800 = vunpack.c.l.b16 %v704
        %v801 = vunpack.c.l.b16 %v705
        %v802 = vunpack.c.l.b16 %v706
        %v803 = vunpack.c.l.b16 %v707
        %v804 = vunpack.c.l.b16 %v708
        %v805 = vunpack.c.l.b16 %v709
        %v806 = vunpack.c.l.b16 %v710
        %v807 = vunpack.c.l.b16 %v711
        %v808 = vunpack.c.l.b16 %v712
        %v809 = vunpack.c.l.b16 %v713
        %v810 = vunpack.c.l.b16 %v714
        %v811 = vunpack.c.l.b16 %v715
        %v812 = vunpack.c.l.b16 %v716
        %v813 = vunpack.c.l.b16 %v717
        %v814 = vunpack.c.l.b16 %v718
        %v815 = vpack.c.b16 %v800, %v799
        %v816 = vpack.c.b16 %v802, %v801
        %v817 = vpack.c.b16 %v804, %v803
        %v818 = vpack.c.b16 %v806, %v805
        %v819 = vpack.c.b16 %v808, %v807
        %v820 = vpack.c.b16 %v810, %v809
        %v821 = vpack.c.b16 %v812, %v811
        %v822 = vpack.c.b16 %v814, %v813
        %831 = vmatprep.subr.bf16.mxu0 0
        %832 = vmatpush1.bf16.msra.mxu0 %v815
        %833 = vmatprep.subr.bf16.mxu0 0
        %834 = vmatpush1.bf16.msra.mxu0 %v816
        %835 = vmatprep.subr.bf16.mxu0 0
        %836 = vmatpush1.bf16.msra.mxu0 %v817
        %837 = vmatprep.subr.bf16.mxu0 0
        %838 = vmatpush1.bf16.msra.mxu0 %v818
        %839 = vmatprep.subr.bf16.mxu0 0
        %840 = vmatpush1.bf16.msra.mxu0 %v819
        %841 = vmatprep.subr.bf16.mxu0 0
        %842 = vmatpush1.bf16.msra.mxu0 %v820
        %843 = vmatprep.subr.bf16.mxu0 0
        %844 = vmatpush1.bf16.msra.mxu0 %v821
        %845 = vmatprep.subr.bf16.mxu0 0
        %846 = vmatpush1.bf16.msra.mxu0 %v822
        %847 = vmatprep.subr.bf16.mxu0 0
        %848 = vmatpush1.bf16.msra.mxu0 0
        %849 = vmatprep.subr.bf16.mxu0 0
        %850 = vmatpush1.bf16.msra.mxu0 0
        %851 = vmatprep.subr.bf16.mxu0 0
        %852 = vmatpush1.bf16.msra.mxu0 0
        %853 = vmatprep.subr.bf16.mxu0 0
        %854 = vmatpush1.bf16.msra.mxu0 0
        %855 = vmatprep.subr.bf16.mxu0 0
        %856 = vmatpush1.bf16.msra.mxu0 0
        %857 = vmatprep.subr.bf16.mxu0 0
        %858 = vmatpush1.bf16.msra.mxu0 0
        %859 = vmatprep.subr.bf16.mxu0 0
        %860 = vmatpush1.bf16.msra.mxu0 0
        %861 = vmatprep.subr.bf16.mxu0 0
        %862 = vmatpush1.bf16.msra.mxu0 0
        %863 = vmatprep.mubr.bf16.mxu0 0
        %864 = vmatmul.mubr.bf16.gmra.mrb[0].mxu0 %v751
        %v865 = vpop.f32.mrb[0].mxu0
        %v866 = vadd.f32 0.0, %v865
        %v867 = vpop.f32.mrb[0].mxu0
        %v868 = vpop.f32.mrb[0].mxu0
        %v869 = vadd.f32 0.0, %v868
        %v870 = vpop.f32.mrb[0].mxu0
        %871 = vmatprep.mubr.bf16.mxu0 0
        %872 = vmatmul.mubr.bf16.gmra.mrb[0].mxu0 %v752
        %v873 = vpop.f32.mrb[0].mxu0
        %v874 = vadd.f32 0.0, %v873
        %v875 = vpop.f32.mrb[0].mxu0
        %v876 = vpop.f32.mrb[0].mxu0
        %v877 = vadd.f32 0.0, %v876
        %v878 = vpop.f32.mrb[0].mxu0
        %879 = vmatprep.mubr.bf16.mxu0 0
        %880 = vmatmul.mubr.bf16.gmra.mrb[0].mxu0 %v753
        %v881 = vpop.f32.mrb[0].mxu0
        %v882 = vadd.f32 0.0, %v881
        %v883 = vpop.f32.mrb[0].mxu0
        %v884 = vpop.f32.mrb[0].mxu0
        %v885 = vadd.f32 0.0, %v884
        %v886 = vpop.f32.mrb[0].mxu0
        %887 = vmatprep.mubr.bf16.mxu0 0
        %888 = vmatmul.mubr.bf16.gmra.mrb[0].mxu0 %v754
        %v889 = vpop.f32.mrb[0].mxu0
        %v890 = vadd.f32 0.0, %v889
        %v891 = vpop.f32.mrb[0].mxu0
        %v892 = vpop.f32.mrb[0].mxu0
        %v893 = vadd.f32 0.0, %v892
        %v894 = vpop.f32.mrb[0].mxu0
        %895 = vmatprep.mubr.bf16.mxu0 0
        %896 = vmatmul.mubr.bf16.gmra.mrb[0].mxu0 %v755
        %v897 = vpop.f32.mrb[0].mxu0
        %v898 = vadd.f32 0.0, %v897
        %v899 = vpop.f32.mrb[0].mxu0
        %v900 = vpop.f32.mrb[0].mxu0
        %v901 = vadd.f32 0.0, %v900
        %v902 = vpop.f32.mrb[0].mxu0
        %903 = vmatprep.mubr.bf16.mxu0 0
        %904 = vmatmul.mubr.bf16.gmra.mrb[0].mxu0 %v756
        %v905 = vpop.f32.mrb[0].mxu0
        %v906 = vadd.f32 0.0, %v905
        %v907 = vpop.f32.mrb[0].mxu0
        %v908 = vpop.f32.mrb[0].mxu0
        %v909 = vadd.f32 0.0, %v908
        %v910 = vpop.f32.mrb[0].mxu0
        %911 = vmatprep.mubr.bf16.mxu0 0
        %912 = vmatmul.mubr.bf16.gmra.mrb[0].mxu0 %v757
        %v913 = vpop.f32.mrb[0].mxu0
        %v914 = vadd.f32 0.0, %v913
        %v915 = vpop.f32.mrb[0].mxu0
        %v916 = vpop.f32.mrb[0].mxu0
        %v917 = vadd.f32 0.0, %v916
        %v918 = vpop.f32.mrb[0].mxu0
        %919 = vmatprep.mubr.bf16.mxu0 0
        %920 = vmatmul.mubr.bf16.gmra.mrb[0].mxu0 %v758
        %v921 = vpop.f32.mrb[0].mxu0
        %v922 = vadd.f32 0.0, %v921
        %v923 = vpop.f32.mrb[0].mxu0
        %v924 = vpop.f32.mrb[0].mxu0
        %v925 = vadd.f32 0.0, %v924
        %v926 = vpop.f32.mrb[0].mxu0
        %927 = vmatprep.mubr.bf16.mxu0 0
        %928 = vmatmul.mubr.bf16.gmra.mrb[0].mxu0 %v759
        %v929 = vpop.f32.mrb[0].mxu0
        %v930 = vadd.f32 0.0, %v929
        %v931 = vpop.f32.mrb[0].mxu0
        %v932 = vpop.f32.mrb[0].mxu0
        %v933 = vadd.f32 0.0, %v932
        %v934 = vpop.f32.mrb[0].mxu0
        %935 = vmatprep.mubr.bf16.mxu0 0
        %936 = vmatmul.mubr.bf16.gmra.mrb[0].mxu0 %v760
        %v937 = vpop.f32.mrb[0].mxu0
        %v938 = vadd.f32 0.0, %v937
        %v939 = vpop.f32.mrb[0].mxu0
        %v940 = vpop.f32.mrb[0].mxu0
        %v941 = vadd.f32 0.0, %v940
        %v942 = vpop.f32.mrb[0].mxu0
        %943 = vmatprep.mubr.bf16.mxu0 0
        %944 = vmatmul.mubr.bf16.gmra.mrb[0].mxu0 %v761
        %v945 = vpop.f32.mrb[0].mxu0
        %v946 = vadd.f32 0.0, %v945
        %v947 = vpop.f32.mrb[0].mxu0
        %v948 = vpop.f32.mrb[0].mxu0
        %v949 = vadd.f32 0.0, %v948
        %v950 = vpop.f32.mrb[0].mxu0
        %951 = vmatprep.mubr.bf16.mxu0 0
        %952 = vmatmul.mubr.bf16.gmra.mrb[0].mxu0 %v762
        %v953 = vpop.f32.mrb[0].mxu0
        %v954 = vadd.f32 0.0, %v953
        %v955 = vpop.f32.mrb[0].mxu0
        %v956 = vpop.f32.mrb[0].mxu0
        %v957 = vadd.f32 0.0, %v956
        %v958 = vpop.f32.mrb[0].mxu0
        %959 = vmatprep.mubr.bf16.mxu0 0
        %960 = vmatmul.mubr.bf16.gmra.mrb[0].mxu0 %v763
        %v961 = vpop.f32.mrb[0].mxu0
        %v962 = vadd.f32 0.0, %v961
        %v963 = vpop.f32.mrb[0].mxu0
        %v964 = vpop.f32.mrb[0].mxu0
        %v965 = vadd.f32 0.0, %v964
        %v966 = vpop.f32.mrb[0].mxu0
        %967 = vmatprep.mubr.bf16.mxu0 0
        %968 = vmatmul.mubr.bf16.gmra.mrb[0].mxu0 %v764
        %v969 = vpop.f32.mrb[0].mxu0
        %v970 = vadd.f32 0.0, %v969
        %v971 = vpop.f32.mrb[0].mxu0
        %v972 = vpop.f32.mrb[0].mxu0
        %v973 = vadd.f32 0.0, %v972
        %v974 = vpop.f32.mrb[0].mxu0
        %975 = vmatprep.mubr.bf16.mxu0 0
        %976 = vmatmul.mubr.bf16.gmra.mrb[0].mxu0 %v765
        %v977 = vpop.f32.mrb[0].mxu0
        %v978 = vadd.f32 0.0, %v977
        %v979 = vpop.f32.mrb[0].mxu0
        %v980 = vpop.f32.mrb[0].mxu0
        %v981 = vadd.f32 0.0, %v980
        %v982 = vpop.f32.mrb[0].mxu0
        %983 = vmatprep.mubr.bf16.mxu0 0
        %984 = vmatmul.mubr.bf16.gmra.mrb[0].mxu0 %v766
        %v985 = vpop.f32.mrb[0].mxu0
        %v986 = vadd.f32 0.0, %v985
        %v987 = vpop.f32.mrb[0].mxu0
        %v988 = vpop.f32.mrb[0].mxu0
        %v989 = vadd.f32 0.0, %v988
        %v990 = vpop.f32.mrb[0].mxu0
        %991 = vdwg.mxu0
        %v1024 = vunpack.c.l.b16 %v251
        %v1025 = vunpack.c.l.b16 %v252
        %v1026 = vunpack.c.l.b16 %v253
        %v1027 = vunpack.c.l.b16 %v254
        %v1028 = vunpack.c.l.b16 %v255
        %v1029 = vunpack.c.l.b16 %v256
        %v1030 = vunpack.c.l.b16 %v257
        %v1031 = vunpack.c.l.b16 %v258
        %v1032 = vunpack.c.l.b16 %v259
        %v1033 = vunpack.c.l.b16 %v260
        %v1034 = vunpack.c.l.b16 %v261
        %v1035 = vunpack.c.l.b16 %v262
        %v1036 = vunpack.c.l.b16 %v263
        %v1037 = vunpack.c.l.b16 %v264
        %v1038 = vunpack.c.l.b16 %v265
        %v1039 = vunpack.c.l.b16 %v266
        %v1040 = vunpack.c.l.b16 %v267
        %v1041 = vunpack.c.l.b16 %v268
        %v1042 = vunpack.c.l.b16 %v269
        %v1043 = vunpack.c.l.b16 %v270
        %v1044 = vunpack.c.l.b16 %v271
        %v1045 = vunpack.c.l.b16 %v272
        %v1046 = vunpack.c.l.b16 %v273
        %v1047 = vunpack.c.l.b16 %v274
        %v1048 = vunpack.c.l.b16 %v275
        %v1049 = vunpack.c.l.b16 %v276
        %v1050 = vunpack.c.l.b16 %v277
        %v1051 = vunpack.c.l.b16 %v278
        %v1052 = vunpack.c.l.b16 %v279
        %v1053 = vunpack.c.l.b16 %v280
        %v1054 = vunpack.c.l.b16 %v281
        %v1055 = vunpack.c.l.b16 %v282
        %v1056 = vpack.c.b16 %v1025, %v1024
        %v1057 = vpack.c.b16 %v1027, %v1026
        %v1058 = vpack.c.b16 %v1029, %v1028
        %v1059 = vpack.c.b16 %v1031, %v1030
        %v1060 = vpack.c.b16 %v1033, %v1032
        %v1061 = vpack.c.b16 %v1035, %v1034
        %v1062 = vpack.c.b16 %v1037, %v1036
        %v1063 = vpack.c.b16 %v1039, %v1038
        %v1064 = vpack.c.b16 %v1041, %v1040
        %v1065 = vpack.c.b16 %v1043, %v1042
        %v1066 = vpack.c.b16 %v1045, %v1044
        %v1067 = vpack.c.b16 %v1047, %v1046
        %v1068 = vpack.c.b16 %v1049, %v1048
        %v1069 = vpack.c.b16 %v1051, %v1050
        %v1070 = vpack.c.b16 %v1053, %v1052
        %v1071 = vpack.c.b16 %v1055, %v1054
        %v1104 = vunpack.c.l.b16 %v283
        %v1105 = vunpack.c.l.b16 %v284
        %v1106 = vunpack.c.l.b16 %v285
        %v1107 = vunpack.c.l.b16 %v286
        %v1108 = vunpack.c.l.b16 %v287
        %v1109 = vunpack.c.l.b16 %v288
        %v1110 = vunpack.c.l.b16 %v289
        %v1111 = vunpack.c.l.b16 %v290
        %v1112 = vunpack.c.l.b16 %v291
        %v1113 = vunpack.c.l.b16 %v292
        %v1114 = vunpack.c.l.b16 %v293
        %v1115 = vunpack.c.l.b16 %v294
        %v1116 = vunpack.c.l.b16 %v295
        %v1117 = vunpack.c.l.b16 %v296
        %v1118 = vunpack.c.l.b16 %v297
        %v1119 = vunpack.c.l.b16 %v298
        %v1120 = vpack.c.b16 %v1105, %v1104
        %v1121 = vpack.c.b16 %v1107, %v1106
        %v1122 = vpack.c.b16 %v1109, %v1108
        %v1123 = vpack.c.b16 %v1111, %v1110
        %v1124 = vpack.c.b16 %v1113, %v1112
        %v1125 = vpack.c.b16 %v1115, %v1114
        %v1126 = vpack.c.b16 %v1117, %v1116
        %v1127 = vpack.c.b16 %v1119, %v1118
        %1136 = vmatprep.subr.bf16.mxu0 0
        %1137 = vmatpush1.bf16.msra.mxu0 %v1120
        %1138 = vmatprep.subr.bf16.mxu0 0
        %1139 = vmatpush1.bf16.msra.mxu0 %v1121
        %1140 = vmatprep.subr.bf16.mxu0 0
        %1141 = vmatpush1.bf16.msra.mxu0 %v1122
        %1142 = vmatprep.subr.bf16.mxu0 0
        %1143 = vmatpush1.bf16.msra.mxu0 %v1123
        %1144 = vmatprep.subr.bf16.mxu0 0
        %1145 = vmatpush1.bf16.msra.mxu0 %v1124
        %1146 = vmatprep.subr.bf16.mxu0 0
        %1147 = vmatpush1.bf16.msra.mxu0 %v1125
        %1148 = vmatprep.subr.bf16.mxu0 0
        %1149 = vmatpush1.bf16.msra.mxu0 %v1126
        %1150 = vmatprep.subr.bf16.mxu0 0
        %1151 = vmatpush1.bf16.msra.mxu0 %v1127
        %1152 = vmatprep.subr.bf16.mxu0 0
        %1153 = vmatpush1.bf16.msra.mxu0 0
        %1154 = vmatprep.subr.bf16.mxu0 0
        %1155 = vmatpush1.bf16.msra.mxu0 0
        %1156 = vmatprep.subr.bf16.mxu0 0
        %1157 = vmatpush1.bf16.msra.mxu0 0
        %1158 = vmatprep.subr.bf16.mxu0 0
        %1159 = vmatpush1.bf16.msra.mxu0 0
        %1160 = vmatprep.subr.bf16.mxu0 0
        %1161 = vmatpush1.bf16.msra.mxu0 0
        %1162 = vmatprep.subr.bf16.mxu0 0
        %1163 = vmatpush1.bf16.msra.mxu0 0
        %1164 = vmatprep.subr.bf16.mxu0 0
        %1165 = vmatpush1.bf16.msra.mxu0 0
        %1166 = vmatprep.subr.bf16.mxu0 0
        %1167 = vmatpush1.bf16.msra.mxu0 0
        %1168 = vmatprep.mubr.bf16.mxu0 0
        %1169 = vmatmul.mubr.bf16.gmra.mrb[0].mxu0 %v1056
        %v1170 = vpop.f32.mrb[0].mxu0
        %v1171 = vadd.f32 %v866, %v1170
        %v1172 = vpop.f32.mrb[0].mxu0
        %v1173 = vpop.f32.mrb[0].mxu0
        %v1174 = vadd.f32 %v869, %v1173
        %v1175 = vpop.f32.mrb[0].mxu0
        %1176 = vmatprep.mubr.bf16.mxu0 0
        %1177 = vmatmul.mubr.bf16.gmra.mrb[0].mxu0 %v1057
        %v1178 = vpop.f32.mrb[0].mxu0
        %v1179 = vadd.f32 %v874, %v1178
        %v1180 = vpop.f32.mrb[0].mxu0
        %v1181 = vpop.f32.mrb[0].mxu0
        %v1182 = vadd.f32 %v877, %v1181
        %v1183 = vpop.f32.mrb[0].mxu0
        %1184 = vmatprep.mubr.bf16.mxu0 0
        %1185 = vmatmul.mubr.bf16.gmra.mrb[0].mxu0 %v1058
        %v1186 = vpop.f32.mrb[0].mxu0
        %v1187 = vadd.f32 %v882, %v1186
        %v1188 = vpop.f32.mrb[0].mxu0
        %v1189 = vpop.f32.mrb[0].mxu0
        %v1190 = vadd.f32 %v885, %v1189
        %v1191 = vpop.f32.mrb[0].mxu0
        %1192 = vmatprep.mubr.bf16.mxu0 0
        %1193 = vmatmul.mubr.bf16.gmra.mrb[0].mxu0 %v1059
        %v1194 = vpop.f32.mrb[0].mxu0
        %v1195 = vadd.f32 %v890, %v1194
        %v1196 = vpop.f32.mrb[0].mxu0
        %v1197 = vpop.f32.mrb[0].mxu0
        %v1198 = vadd.f32 %v893, %v1197
        %v1199 = vpop.f32.mrb[0].mxu0
        %1200 = vmatprep.mubr.bf16.mxu0 0
        %1201 = vmatmul.mubr.bf16.gmra.mrb[0].mxu0 %v1060
        %v1202 = vpop.f32.mrb[0].mxu0
        %v1203 = vadd.f32 %v898, %v1202
        %v1204 = vpop.f32.mrb[0].mxu0
        %v1205 = vpop.f32.mrb[0].mxu0
        %v1206 = vadd.f32 %v901, %v1205
        %v1207 = vpop.f32.mrb[0].mxu0
        %1208 = vmatprep.mubr.bf16.mxu0 0
        %1209 = vmatmul.mubr.bf16.gmra.mrb[0].mxu0 %v1061
        %v1210 = vpop.f32.mrb[0].mxu0
        %v1211 = vadd.f32 %v906, %v1210
        %v1212 = vpop.f32.mrb[0].mxu0
        %v1213 = vpop.f32.mrb[0].mxu0
        %v1214 = vadd.f32 %v909, %v1213
        %v1215 = vpop.f32.mrb[0].mxu0
        %1216 = vmatprep.mubr.bf16.mxu0 0
        %1217 = vmatmul.mubr.bf16.gmra.mrb[0].mxu0 %v1062
        %v1218 = vpop.f32.mrb[0].mxu0
        %v1219 = vadd.f32 %v914, %v1218
        %v1220 = vpop.f32.mrb[0].mxu0
        %v1221 = vpop.f32.mrb[0].mxu0
        %v1222 = vadd.f32 %v917, %v1221
        %v1223 = vpop.f32.mrb[0].mxu0
        %1224 = vmatprep.mubr.bf16.mxu0 0
        %1225 = vmatmul.mubr.bf16.gmra.mrb[0].mxu0 %v1063
        %v1226 = vpop.f32.mrb[0].mxu0
        %v1227 = vadd.f32 %v922, %v1226
        %v1228 = vpop.f32.mrb[0].mxu0
        %v1229 = vpop.f32.mrb[0].mxu0
        %v1230 = vadd.f32 %v925, %v1229
        %v1231 = vpop.f32.mrb[0].mxu0
        %1232 = vmatprep.mubr.bf16.mxu0 0
        %1233 = vmatmul.mubr.bf16.gmra.mrb[0].mxu0 %v1064
        %v1234 = vpop.f32.mrb[0].mxu0
        %v1235 = vadd.f32 %v930, %v1234
        %v1236 = vpop.f32.mrb[0].mxu0
        %v1237 = vpop.f32.mrb[0].mxu0
        %v1238 = vadd.f32 %v933, %v1237
        %v1239 = vpop.f32.mrb[0].mxu0
        %1240 = vmatprep.mubr.bf16.mxu0 0
        %1241 = vmatmul.mubr.bf16.gmra.mrb[0].mxu0 %v1065
        %v1242 = vpop.f32.mrb[0].mxu0
        %v1243 = vadd.f32 %v938, %v1242
        %v1244 = vpop.f32.mrb[0].mxu0
        %v1245 = vpop.f32.mrb[0].mxu0
        %v1246 = vadd.f32 %v941, %v1245
        %v1247 = vpop.f32.mrb[0].mxu0
        %1248 = vmatprep.mubr.bf16.mxu0 0
        %1249 = vmatmul.mubr.bf16.gmra.mrb[0].mxu0 %v1066
        %v1250 = vpop.f32.mrb[0].mxu0
        %v1251 = vadd.f32 %v946, %v1250
        %v1252 = vpop.f32.mrb[0].mxu0
        %v1253 = vpop.f32.mrb[0].mxu0
        %v1254 = vadd.f32 %v949, %v1253
        %v1255 = vpop.f32.mrb[0].mxu0
        %1256 = vmatprep.mubr.bf16.mxu0 0
        %1257 = vmatmul.mubr.bf16.gmra.mrb[0].mxu0 %v1067
        %v1258 = vpop.f32.mrb[0].mxu0
        %v1259 = vadd.f32 %v954, %v1258
        %v1260 = vpop.f32.mrb[0].mxu0
        %v1261 = vpop.f32.mrb[0].mxu0
        %v1262 = vadd.f32 %v957, %v1261
        %v1263 = vpop.f32.mrb[0].mxu0
        %1264 = vmatprep.mubr.bf16.mxu0 0
        %1265 = vmatmul.mubr.bf16.gmra.mrb[0].mxu0 %v1068
        %v1266 = vpop.f32.mrb[0].mxu0
        %v1267 = vadd.f32 %v962, %v1266
        %v1268 = vpop.f32.mrb[0].mxu0
        %v1269 = vpop.f32.mrb[0].mxu0
        %v1270 = vadd.f32 %v965, %v1269
        %v1271 = vpop.f32.mrb[0].mxu0
        %1272 = vmatprep.mubr.bf16.mxu0 0
        %1273 = vmatmul.mubr.bf16.gmra.mrb[0].mxu0 %v1069
        %v1274 = vpop.f32.mrb[0].mxu0
        %v1275 = vadd.f32 %v970, %v1274
        %v1276 = vpop.f32.mrb[0].mxu0
        %v1277 = vpop.f32.mrb[0].mxu0
        %v1278 = vadd.f32 %v973, %v1277
        %v1279 = vpop.f32.mrb[0].mxu0
        %1280 = vmatprep.mubr.bf16.mxu0 0
        %1281 = vmatmul.mubr.bf16.gmra.mrb[0].mxu0 %v1070
        %v1282 = vpop.f32.mrb[0].mxu0
        %v1283 = vadd.f32 %v978, %v1282
        %v1284 = vpop.f32.mrb[0].mxu0
        %v1285 = vpop.f32.mrb[0].mxu0
        %v1286 = vadd.f32 %v981, %v1285
        %v1287 = vpop.f32.mrb[0].mxu0
        %1288 = vmatprep.mubr.bf16.mxu0 0
        %1289 = vmatmul.mubr.bf16.gmra.mrb[0].mxu0 %v1071
        %v1290 = vpop.f32.mrb[0].mxu0
        %v1291 = vadd.f32 %v986, %v1290
        %v1292 = vpop.f32.mrb[0].mxu0
        %v1293 = vpop.f32.mrb[0].mxu0
        %v1294 = vadd.f32 %v989, %v1293
        %v1295 = vpop.f32.mrb[0].mxu0
        %1296 = vdwg.mxu0
        %v1297 = vld [vmem:[#allocation2] sm:$0xe]
        %v1298 = vld [vmem:[#allocation2 + $0xc] sm:$0xe]
        %v1299 = vld [vmem:[#allocation2 + $0x18] sm:$0xe]
        %v1300 = vld [vmem:[#allocation2 + $0x24] sm:$0xe]
        %v1301 = vld [vmem:[#allocation2 + $0x30] sm:$0xe]
        %v1302 = vld [vmem:[#allocation2 + $0x3c] sm:$0xe]
        %v1303 = vld [vmem:[#allocation2 + $0x48] sm:$0xe]
        %v1304 = vld [vmem:[#allocation2 + $0x54] sm:$0xe]
        %v1305 = vld [vmem:[#allocation2 + $0x60] sm:$0xe]
        %v1306 = vld [vmem:[#allocation2 + $0x6c] sm:$0xe]
        %v1307 = vld [vmem:[#allocation2 + $0x78] sm:$0xe]
        %v1308 = vld [vmem:[#allocation2 + $0x84] sm:$0xe]
        %v1309 = vld [vmem:[#allocation2 + $0x90] sm:$0xe]
        %v1310 = vld [vmem:[#allocation2 + $0x9c] sm:$0xe]
        %v1311 = vld [vmem:[#allocation2 + $0xa8] sm:$0xe]
        %v1312 = vld [vmem:[#allocation2 + $0xb4] sm:$0xe]
        %vm1345 = vcmask 1042432
        %vm1346 = vcmask 1046532
        %vm1347 = vmor %vm1345, %vm1346
        %v1348 = vrot.slane %v1297, 5
        %v1349 = vrot.slane %v1348, 4
        %v1350 = vrot.slane %v252, 5
        %v1351 = vsel %vm1347, %v1349, %v1350
        %v1352 = vrot.slane %v1350, 4
        %v1353 = vrot.slane %v299, 5
        %v1354 = vsel %vm1347, %v1352, %v1353
        %v1355 = vrot.slane %v1298, 5
        %v1356 = vrot.slane %v1355, 4
        %v1357 = vrot.slane %v254, 5
        %v1358 = vsel %vm1347, %v1356, %v1357
        %v1359 = vrot.slane %v1357, 4
        %v1360 = vrot.slane %v300, 5
        %v1361 = vsel %vm1347, %v1359, %v1360
        %v1362 = vrot.slane %v1299, 5
        %v1363 = vrot.slane %v1362, 4
        %v1364 = vrot.slane %v256, 5
        %v1365 = vsel %vm1347, %v1363, %v1364
        %v1366 = vrot.slane %v1364, 4
        %v1367 = vrot.slane %v301, 5
        %v1368 = vsel %vm1347, %v1366, %v1367
        %v1369 = vrot.slane %v1300, 5
        %v1370 = vrot.slane %v1369, 4
        %v1371 = vrot.slane %v258, 5
        %v1372 = vsel %vm1347, %v1370, %v1371
        %v1373 = vrot.slane %v1371, 4
        %v1374 = vrot.slane %v302, 5
        %v1375 = vsel %vm1347, %v1373, %v1374
        %v1376 = vrot.slane %v1301, 5
        %v1377 = vrot.slane %v1376, 4
        %v1378 = vrot.slane %v260, 5
        %v1379 = vsel %vm1347, %v1377, %v1378
        %v1380 = vrot.slane %v1378, 4
        %v1381 = vrot.slane %v303, 5
        %v1382 = vsel %vm1347, %v1380, %v1381
        %v1383 = vrot.slane %v1302, 5
        %v1384 = vrot.slane %v1383, 4
        %v1385 = vrot.slane %v262, 5
        %v1386 = vsel %vm1347, %v1384, %v1385
        %v1387 = vrot.slane %v1385, 4
        %v1388 = vrot.slane %v304, 5
        %v1389 = vsel %vm1347, %v1387, %v1388
        %v1390 = vrot.slane %v1303, 5
        %v1391 = vrot.slane %v1390, 4
        %v1392 = vrot.slane %v264, 5
        %v1393 = vsel %vm1347, %v1391, %v1392
        %v1394 = vrot.slane %v1392, 4
        %v1395 = vrot.slane %v305, 5
        %v1396 = vsel %vm1347, %v1394, %v1395
        %v1397 = vrot.slane %v1304, 5
        %v1398 = vrot.slane %v1397, 4
        %v1399 = vrot.slane %v266, 5
        %v1400 = vsel %vm1347, %v1398, %v1399
        %v1401 = vrot.slane %v1399, 4
        %v1402 = vrot.slane %v306, 5
        %v1403 = vsel %vm1347, %v1401, %v1402
        %v1404 = vrot.slane %v1305, 5
        %v1405 = vrot.slane %v1404, 4
        %v1406 = vrot.slane %v268, 5
        %v1407 = vsel %vm1347, %v1405, %v1406
        %v1408 = vrot.slane %v1406, 4
        %v1409 = vrot.slane %v307, 5
        %v1410 = vsel %vm1347, %v1408, %v1409
        %v1411 = vrot.slane %v1306, 5
        %v1412 = vrot.slane %v1411, 4
        %v1413 = vrot.slane %v270, 5
        %v1414 = vsel %vm1347, %v1412, %v1413
        %v1415 = vrot.slane %v1413, 4
        %v1416 = vrot.slane %v308, 5
        %v1417 = vsel %vm1347, %v1415, %v1416
        %v1418 = vrot.slane %v1307, 5
        %v1419 = vrot.slane %v1418, 4
        %v1420 = vrot.slane %v272, 5
        %v1421 = vsel %vm1347, %v1419, %v1420
        %v1422 = vrot.slane %v1420, 4
        %v1423 = vrot.slane %v309, 5
        %v1424 = vsel %vm1347, %v1422, %v1423
        %v1425 = vrot.slane %v1308, 5
        %v1426 = vrot.slane %v1425, 4
        %v1427 = vrot.slane %v274, 5
        %v1428 = vsel %vm1347, %v1426, %v1427
        %v1429 = vrot.slane %v1427, 4
        %v1430 = vrot.slane %v310, 5
        %v1431 = vsel %vm1347, %v1429, %v1430
        %v1432 = vrot.slane %v1309, 5
        %v1433 = vrot.slane %v1432, 4
        %v1434 = vrot.slane %v276, 5
        %v1435 = vsel %vm1347, %v1433, %v1434
        %v1436 = vrot.slane %v1434, 4
        %v1437 = vrot.slane %v311, 5
        %v1438 = vsel %vm1347, %v1436, %v1437
        %v1439 = vrot.slane %v1310, 5
        %v1440 = vrot.slane %v1439, 4
        %v1441 = vrot.slane %v278, 5
        %v1442 = vsel %vm1347, %v1440, %v1441
        %v1443 = vrot.slane %v1441, 4
        %v1444 = vrot.slane %v312, 5
        %v1445 = vsel %vm1347, %v1443, %v1444
        %v1446 = vrot.slane %v1311, 5
        %v1447 = vrot.slane %v1446, 4
        %v1448 = vrot.slane %v280, 5
        %v1449 = vsel %vm1347, %v1447, %v1448
        %v1450 = vrot.slane %v1448, 4
        %v1451 = vrot.slane %v313, 5
        %v1452 = vsel %vm1347, %v1450, %v1451
        %v1453 = vrot.slane %v1312, 5
        %v1454 = vrot.slane %v1453, 4
        %v1455 = vrot.slane %v282, 5
        %v1456 = vsel %vm1347, %v1454, %v1455
        %v1457 = vrot.slane %v1455, 4
        %v1458 = vrot.slane %v314, 5
        %v1459 = vsel %vm1347, %v1457, %v1458
        %s1460 = scalar_lea.vmem [#allocation4], 128
        %v1461 = vld [vmem:[%s1460] sm:$0xf]
        %v1462 = vld [vmem:[%s1460 + $0x4] sm:$0xf]
        %v1463 = vld [vmem:[%s1460 + $0x8] sm:$0xf]
        %v1464 = vld [vmem:[%s1460 + $0xc] sm:$0xf]
        %v1465 = vld [vmem:[%s1460 + $0x10] sm:$0xf]
        %v1466 = vld [vmem:[%s1460 + $0x14] sm:$0xf]
        %v1467 = vld [vmem:[%s1460 + $0x18] sm:$0xf]
        %v1468 = vld [vmem:[%s1460 + $0x1c] sm:$0xf]
        %v1469 = vld [vmem:[%s1460 + $0x20] sm:$0xf]
        %v1470 = vld [vmem:[%s1460 + $0x24] sm:$0xf]
        %v1471 = vld [vmem:[%s1460 + $0x28] sm:$0xf]
        %v1472 = vld [vmem:[%s1460 + $0x2c] sm:$0xf]
        %v1473 = vld [vmem:[%s1460 + $0x30] sm:$0xf]
        %v1474 = vld [vmem:[%s1460 + $0x34] sm:$0xf]
        %v1475 = vld [vmem:[%s1460 + $0x38] sm:$0xf]
        %v1476 = vld [vmem:[%s1460 + $0x3c] sm:$0xf]
        %v1477 = vunpack.c.l.b16 %v1351
        %v1478 = vunpack.c.l.b16 %v1354
        %v1479 = vunpack.c.l.b16 %v1358
        %v1480 = vunpack.c.l.b16 %v1361
        %v1481 = vunpack.c.l.b16 %v1365
        %v1482 = vunpack.c.l.b16 %v1368
        %v1483 = vunpack.c.l.b16 %v1372
        %v1484 = vunpack.c.l.b16 %v1375
        %v1485 = vunpack.c.l.b16 %v1379
        %v1486 = vunpack.c.l.b16 %v1382
        %v1487 = vunpack.c.l.b16 %v1386
        %v1488 = vunpack.c.l.b16 %v1389
        %v1489 = vunpack.c.l.b16 %v1393
        %v1490 = vunpack.c.l.b16 %v1396
        %v1491 = vunpack.c.l.b16 %v1400
        %v1492 = vunpack.c.l.b16 %v1403
        %v1493 = vunpack.c.l.b16 %v1407
        %v1494 = vunpack.c.l.b16 %v1410
        %v1495 = vunpack.c.l.b16 %v1414
        %v1496 = vunpack.c.l.b16 %v1417
        %v1497 = vunpack.c.l.b16 %v1421
        %v1498 = vunpack.c.l.b16 %v1424
        %v1499 = vunpack.c.l.b16 %v1428
        %v1500 = vunpack.c.l.b16 %v1431
        %v1501 = vunpack.c.l.b16 %v1435
        %v1502 = vunpack.c.l.b16 %v1438
        %v1503 = vunpack.c.l.b16 %v1442
        %v1504 = vunpack.c.l.b16 %v1445
        %v1505 = vunpack.c.l.b16 %v1449
        %v1506 = vunpack.c.l.b16 %v1452
        %v1507 = vunpack.c.l.b16 %v1456
        %v1508 = vunpack.c.l.b16 %v1459
        %v1509 = vpack.c.b16 %v1478, %v1477
        %v1510 = vpack.c.b16 %v1480, %v1479
        %v1511 = vpack.c.b16 %v1482, %v1481
        %v1512 = vpack.c.b16 %v1484, %v1483
        %v1513 = vpack.c.b16 %v1486, %v1485
        %v1514 = vpack.c.b16 %v1488, %v1487
        %v1515 = vpack.c.b16 %v1490, %v1489
        %v1516 = vpack.c.b16 %v1492, %v1491
        %v1517 = vpack.c.b16 %v1494, %v1493
        %v1518 = vpack.c.b16 %v1496, %v1495
        %v1519 = vpack.c.b16 %v1498, %v1497
        %v1520 = vpack.c.b16 %v1500, %v1499
        %v1521 = vpack.c.b16 %v1502, %v1501
        %v1522 = vpack.c.b16 %v1504, %v1503
        %v1523 = vpack.c.b16 %v1506, %v1505
        %v1524 = vpack.c.b16 %v1508, %v1507
        %v1557 = vunpack.c.l.b16 %v1461
        %v1558 = vunpack.c.l.b16 %v1462
        %v1559 = vunpack.c.l.b16 %v1463
        %v1560 = vunpack.c.l.b16 %v1464
        %v1561 = vunpack.c.l.b16 %v1465
        %v1562 = vunpack.c.l.b16 %v1466
        %v1563 = vunpack.c.l.b16 %v1467
        %v1564 = vunpack.c.l.b16 %v1468
        %v1565 = vunpack.c.l.b16 %v1469
        %v1566 = vunpack.c.l.b16 %v1470
        %v1567 = vunpack.c.l.b16 %v1471
        %v1568 = vunpack.c.l.b16 %v1472
        %v1569 = vunpack.c.l.b16 %v1473
        %v1570 = vunpack.c.l.b16 %v1474
        %v1571 = vunpack.c.l.b16 %v1475
        %v1572 = vunpack.c.l.b16 %v1476
        %v1573 = vpack.c.b16 %v1558, %v1557
        %v1574 = vpack.c.b16 %v1560, %v1559
        %v1575 = vpack.c.b16 %v1562, %v1561
        %v1576 = vpack.c.b16 %v1564, %v1563
        %v1577 = vpack.c.b16 %v1566, %v1565
        %v1578 = vpack.c.b16 %v1568, %v1567
        %v1579 = vpack.c.b16 %v1570, %v1569
        %v1580 = vpack.c.b16 %v1572, %v1571
        %1589 = vmatprep.subr.bf16.mxu0 0
        %1590 = vmatpush1.bf16.msra.mxu0 %v1573
        %1591 = vmatprep.subr.bf16.mxu0 0
        %1592 = vmatpush1.bf16.msra.mxu0 %v1574
        %1593 = vmatprep.subr.bf16.mxu0 0
        %1594 = vmatpush1.bf16.msra.mxu0 %v1575
        %1595 = vmatprep.subr.bf16.mxu0 0
        %1596 = vmatpush1.bf16.msra.mxu0 %v1576
        %1597 = vmatprep.subr.bf16.mxu0 0
        %1598 = vmatpush1.bf16.msra.mxu0 %v1577
        %1599 = vmatprep.subr.bf16.mxu0 0
        %1600 = vmatpush1.bf16.msra.mxu0 %v1578
        %1601 = vmatprep.subr.bf16.mxu0 0
        %1602 = vmatpush1.bf16.msra.mxu0 %v1579
        %1603 = vmatprep.subr.bf16.mxu0 0
        %1604 = vmatpush1.bf16.msra.mxu0 %v1580
        %1605 = vmatprep.subr.bf16.mxu0 0
        %1606 = vmatpush1.bf16.msra.mxu0 0
        %1607 = vmatprep.subr.bf16.mxu0 0
        %1608 = vmatpush1.bf16.msra.mxu0 0
        %1609 = vmatprep.subr.bf16.mxu0 0
        %1610 = vmatpush1.bf16.msra.mxu0 0
        %1611 = vmatprep.subr.bf16.mxu0 0
        %1612 = vmatpush1.bf16.msra.mxu0 0
        %1613 = vmatprep.subr.bf16.mxu0 0
        %1614 = vmatpush1.bf16.msra.mxu0 0
        %1615 = vmatprep.subr.bf16.mxu0 0
        %1616 = vmatpush1.bf16.msra.mxu0 0
        %1617 = vmatprep.subr.bf16.mxu0 0
        %1618 = vmatpush1.bf16.msra.mxu0 0
        %1619 = vmatprep.subr.bf16.mxu0 0
        %1620 = vmatpush1.bf16.msra.mxu0 0
        %1621 = vmatprep.mubr.bf16.mxu0 0
        %1622 = vmatmul.mubr.bf16.gmra.mrb[0].mxu0 %v1509
        %v1623 = vpop.f32.mrb[0].mxu0
        %v1624 = vadd.f32 0.0, %v1623
        %v1625 = vpop.f32.mrb[0].mxu0
        %v1626 = vpop.f32.mrb[0].mxu0
        %v1627 = vadd.f32 0.0, %v1626
        %v1628 = vpop.f32.mrb[0].mxu0
        %1629 = vmatprep.mubr.bf16.mxu0 0
        %1630 = vmatmul.mubr.bf16.gmra.mrb[0].mxu0 %v1510
        %v1631 = vpop.f32.mrb[0].mxu0
        %v1632 = vadd.f32 0.0, %v1631
        %v1633 = vpop.f32.mrb[0].mxu0
        %v1634 = vpop.f32.mrb[0].mxu0
        %v1635 = vadd.f32 0.0, %v1634
        %v1636 = vpop.f32.mrb[0].mxu0
        %1637 = vmatprep.mubr.bf16.mxu0 0
        %1638 = vmatmul.mubr.bf16.gmra.mrb[0].mxu0 %v1511
        %v1639 = vpop.f32.mrb[0].mxu0
        %v1640 = vadd.f32 0.0, %v1639
        %v1641 = vpop.f32.mrb[0].mxu0
        %v1642 = vpop.f32.mrb[0].mxu0
        %v1643 = vadd.f32 0.0, %v1642
        %v1644 = vpop.f32.mrb[0].mxu0
        %1645 = vmatprep.mubr.bf16.mxu0 0
        %1646 = vmatmul.mubr.bf16.gmra.mrb[0].mxu0 %v1512
        %v1647 = vpop.f32.mrb[0].mxu0
        %v1648 = vadd.f32 0.0, %v1647
        %v1649 = vpop.f32.mrb[0].mxu0
        %v1650 = vpop.f32.mrb[0].mxu0
        %v1651 = vadd.f32 0.0, %v1650
        %v1652 = vpop.f32.mrb[0].mxu0
        %1653 = vmatprep.mubr.bf16.mxu0 0
        %1654 = vmatmul.mubr.bf16.gmra.mrb[0].mxu0 %v1513
        %v1655 = vpop.f32.mrb[0].mxu0
        %v1656 = vadd.f32 0.0, %v1655
        %v1657 = vpop.f32.mrb[0].mxu0
        %v1658 = vpop.f32.mrb[0].mxu0
        %v1659 = vadd.f32 0.0, %v1658
        %v1660 = vpop.f32.mrb[0].mxu0
        %1661 = vmatprep.mubr.bf16.mxu0 0
        %1662 = vmatmul.mubr.bf16.gmra.mrb[0].mxu0 %v1514
        %v1663 = vpop.f32.mrb[0].mxu0
        %v1664 = vadd.f32 0.0, %v1663
        %v1665 = vpop.f32.mrb[0].mxu0
        %v1666 = vpop.f32.mrb[0].mxu0
        %v1667 = vadd.f32 0.0, %v1666
        %v1668 = vpop.f32.mrb[0].mxu0
        %1669 = vmatprep.mubr.bf16.mxu0 0
        %1670 = vmatmul.mubr.bf16.gmra.mrb[0].mxu0 %v1515
        %v1671 = vpop.f32.mrb[0].mxu0
        %v1672 = vadd.f32 0.0, %v1671
        %v1673 = vpop.f32.mrb[0].mxu0
        %v1674 = vpop.f32.mrb[0].mxu0
        %v1675 = vadd.f32 0.0, %v1674
        %v1676 = vpop.f32.mrb[0].mxu0
        %1677 = vmatprep.mubr.bf16.mxu0 0
        %1678 = vmatmul.mubr.bf16.gmra.mrb[0].mxu0 %v1516
        %v1679 = vpop.f32.mrb[0].mxu0
        %v1680 = vadd.f32 0.0, %v1679
        %v1681 = vpop.f32.mrb[0].mxu0
        %v1682 = vpop.f32.mrb[0].mxu0
        %v1683 = vadd.f32 0.0, %v1682
        %v1684 = vpop.f32.mrb[0].mxu0
        %1685 = vmatprep.mubr.bf16.mxu0 0
        %1686 = vmatmul.mubr.bf16.gmra.mrb[0].mxu0 %v1517
        %v1687 = vpop.f32.mrb[0].mxu0
        %v1688 = vadd.f32 0.0, %v1687
        %v1689 = vpop.f32.mrb[0].mxu0
        %v1690 = vpop.f32.mrb[0].mxu0
        %v1691 = vadd.f32 0.0, %v1690
        %v1692 = vpop.f32.mrb[0].mxu0
        %1693 = vmatprep.mubr.bf16.mxu0 0
        %1694 = vmatmul.mubr.bf16.gmra.mrb[0].mxu0 %v1518
        %v1695 = vpop.f32.mrb[0].mxu0
        %v1696 = vadd.f32 0.0, %v1695
        %v1697 = vpop.f32.mrb[0].mxu0
        %v1698 = vpop.f32.mrb[0].mxu0
        %v1699 = vadd.f32 0.0, %v1698
        %v1700 = vpop.f32.mrb[0].mxu0
        %1701 = vmatprep.mubr.bf16.mxu0 0
        %1702 = vmatmul.mubr.bf16.gmra.mrb[0].mxu0 %v1519
        %v1703 = vpop.f32.mrb[0].mxu0
        %v1704 = vadd.f32 0.0, %v1703
        %v1705 = vpop.f32.mrb[0].mxu0
        %v1706 = vpop.f32.mrb[0].mxu0
        %v1707 = vadd.f32 0.0, %v1706
        %v1708 = vpop.f32.mrb[0].mxu0
        %1709 = vmatprep.mubr.bf16.mxu0 0
        %1710 = vmatmul.mubr.bf16.gmra.mrb[0].mxu0 %v1520
        %v1711 = vpop.f32.mrb[0].mxu0
        %v1712 = vadd.f32 0.0, %v1711
        %v1713 = vpop.f32.mrb[0].mxu0
        %v1714 = vpop.f32.mrb[0].mxu0
        %v1715 = vadd.f32 0.0, %v1714
        %v1716 = vpop.f32.mrb[0].mxu0
        %1717 = vmatprep.mubr.bf16.mxu0 0
        %1718 = vmatmul.mubr.bf16.gmra.mrb[0].mxu0 %v1521
        %v1719 = vpop.f32.mrb[0].mxu0
        %v1720 = vadd.f32 0.0, %v1719
        %v1721 = vpop.f32.mrb[0].mxu0
        %v1722 = vpop.f32.mrb[0].mxu0
        %v1723 = vadd.f32 0.0, %v1722
        %v1724 = vpop.f32.mrb[0].mxu0
        %1725 = vmatprep.mubr.bf16.mxu0 0
        %1726 = vmatmul.mubr.bf16.gmra.mrb[0].mxu0 %v1522
        %v1727 = vpop.f32.mrb[0].mxu0
        %v1728 = vadd.f32 0.0, %v1727
        %v1729 = vpop.f32.mrb[0].mxu0
        %v1730 = vpop.f32.mrb[0].mxu0
        %v1731 = vadd.f32 0.0, %v1730
        %v1732 = vpop.f32.mrb[0].mxu0
        %1733 = vmatprep.mubr.bf16.mxu0 0
        %1734 = vmatmul.mubr.bf16.gmra.mrb[0].mxu0 %v1523
        %v1735 = vpop.f32.mrb[0].mxu0
        %v1736 = vadd.f32 0.0, %v1735
        %v1737 = vpop.f32.mrb[0].mxu0
        %v1738 = vpop.f32.mrb[0].mxu0
        %v1739 = vadd.f32 0.0, %v1738
        %v1740 = vpop.f32.mrb[0].mxu0
        %1741 = vmatprep.mubr.bf16.mxu0 0
        %1742 = vmatmul.mubr.bf16.gmra.mrb[0].mxu0 %v1524
        %v1743 = vpop.f32.mrb[0].mxu0
        %v1744 = vadd.f32 0.0, %v1743
        %v1745 = vpop.f32.mrb[0].mxu0
        %v1746 = vpop.f32.mrb[0].mxu0
        %v1747 = vadd.f32 0.0, %v1746
        %v1748 = vpop.f32.mrb[0].mxu0
        %1749 = vdwg.mxu0
        %v1750 = vadd.f32 %v1171, %v1624
        %v1751 = vadd.f32 %v1174, %v1627
        %v1752 = vadd.f32 %v1179, %v1632
        %v1753 = vadd.f32 %v1182, %v1635
        %v1754 = vadd.f32 %v1187, %v1640
        %v1755 = vadd.f32 %v1190, %v1643
        %v1756 = vadd.f32 %v1195, %v1648
        %v1757 = vadd.f32 %v1198, %v1651
        %v1758 = vadd.f32 %v1203, %v1656
        %v1759 = vadd.f32 %v1206, %v1659
        %v1760 = vadd.f32 %v1211, %v1664
        %v1761 = vadd.f32 %v1214, %v1667
        %v1762 = vadd.f32 %v1219, %v1672
        %v1763 = vadd.f32 %v1222, %v1675
        %v1764 = vadd.f32 %v1227, %v1680
        %v1765 = vadd.f32 %v1230, %v1683
        %v1766 = vadd.f32 %v1235, %v1688
        %v1767 = vadd.f32 %v1238, %v1691
        %v1768 = vadd.f32 %v1243, %v1696
        %v1769 = vadd.f32 %v1246, %v1699
        %v1770 = vadd.f32 %v1251, %v1704
        %v1771 = vadd.f32 %v1254, %v1707
        %v1772 = vadd.f32 %v1259, %v1712
        %v1773 = vadd.f32 %v1262, %v1715
        %v1774 = vadd.f32 %v1267, %v1720
        %v1775 = vadd.f32 %v1270, %v1723
        %v1776 = vadd.f32 %v1275, %v1728
        %v1777 = vadd.f32 %v1278, %v1731
        %v1778 = vadd.f32 %v1283, %v1736
        %v1779 = vadd.f32 %v1286, %v1739
        %v1780 = vadd.f32 %v1291, %v1744
        %v1781 = vadd.f32 %v1294, %v1747
        %s1782 = scalar_lea.vmem [#allocation2], 12
        %v1783 = vld [vmem:[%s1782] sm:$0xf]
        %v1784 = vld [vmem:[%s1782 + $0x4] sm:$0xf]
        %v1785 = vld [vmem:[%s1782 + $0xc] sm:$0xf]
        %v1786 = vld [vmem:[%s1782 + $0x10] sm:$0xf]
        %v1787 = vld [vmem:[%s1782 + $0x18] sm:$0xf]
        %v1788 = vld [vmem:[%s1782 + $0x1c] sm:$0xf]
        %v1789 = vld [vmem:[%s1782 + $0x24] sm:$0xf]
        %v1790 = vld [vmem:[%s1782 + $0x28] sm:$0xf]
        %v1791 = vld [vmem:[%s1782 + $0x30] sm:$0xf]
        %v1792 = vld [vmem:[%s1782 + $0x34] sm:$0xf]
        %v1793 = vld [vmem:[%s1782 + $0x3c] sm:$0xf]
        %v1794 = vld [vmem:[%s1782 + $0x40] sm:$0xf]
        %v1795 = vld [vmem:[%s1782 + $0x48] sm:$0xf]
        %v1796 = vld [vmem:[%s1782 + $0x4c] sm:$0xf]
        %v1797 = vld [vmem:[%s1782 + $0x54] sm:$0xf]
        %v1798 = vld [vmem:[%s1782 + $0x58] sm:$0xf]
        %v1799 = vld [vmem:[%s1782 + $0x60] sm:$0xf]
        %v1800 = vld [vmem:[%s1782 + $0x64] sm:$0xf]
        %v1801 = vld [vmem:[%s1782 + $0x6c] sm:$0xf]
        %v1802 = vld [vmem:[%s1782 + $0x70] sm:$0xf]
        %v1803 = vld [vmem:[%s1782 + $0x78] sm:$0xf]
        %v1804 = vld [vmem:[%s1782 + $0x7c] sm:$0xf]
        %v1805 = vld [vmem:[%s1782 + $0x84] sm:$0xf]
        %v1806 = vld [vmem:[%s1782 + $0x88] sm:$0xf]
        %v1807 = vld [vmem:[%s1782 + $0x90] sm:$0xf]
        %v1808 = vld [vmem:[%s1782 + $0x94] sm:$0xf]
        %v1809 = vld [vmem:[%s1782 + $0x9c] sm:$0xf]
        %v1810 = vld [vmem:[%s1782 + $0xa0] sm:$0xf]
        %v1811 = vld [vmem:[%s1782 + $0xa8] sm:$0xf]
        %v1812 = vld [vmem:[%s1782 + $0xac] sm:$0xf]
        %v1813 = vld [vmem:[%s1782 + $0xb4] sm:$0xf]
        %v1814 = vld [vmem:[%s1782 + $0xb8] sm:$0xf]
        %s1815 = scalar_lea.vmem [#allocation4], 192
        %v1816 = vld [vmem:[%s1815] sm:$0xf]
        %v1817 = vld [vmem:[%s1815 + $0x4] sm:$0xf]
        %v1818 = vld [vmem:[%s1815 + $0x8] sm:$0xf]
        %v1819 = vld [vmem:[%s1815 + $0xc] sm:$0xf]
        %v1820 = vld [vmem:[%s1815 + $0x10] sm:$0xf]
        %v1821 = vld [vmem:[%s1815 + $0x14] sm:$0xf]
        %v1822 = vld [vmem:[%s1815 + $0x18] sm:$0xf]
        %v1823 = vld [vmem:[%s1815 + $0x1c] sm:$0xf]
        %v1824 = vld [vmem:[%s1815 + $0x20] sm:$0xf]
        %v1825 = vld [vmem:[%s1815 + $0x24] sm:$0xf]
        %v1826 = vld [vmem:[%s1815 + $0x28] sm:$0xf]
        %v1827 = vld [vmem:[%s1815 + $0x2c] sm:$0xf]
        %v1828 = vld [vmem:[%s1815 + $0x30] sm:$0xf]
        %v1829 = vld [vmem:[%s1815 + $0x34] sm:$0xf]
        %v1830 = vld [vmem:[%s1815 + $0x38] sm:$0xf]
        %v1831 = vld [vmem:[%s1815 + $0x3c] sm:$0xf]
        %v1864 = vunpack.c.l.b16 %v1783
        %v1865 = vunpack.c.l.b16 %v1784
        %v1866 = vunpack.c.l.b16 %v1785
        %v1867 = vunpack.c.l.b16 %v1786
        %v1868 = vunpack.c.l.b16 %v1787
        %v1869 = vunpack.c.l.b16 %v1788
        %v1870 = vunpack.c.l.b16 %v1789
        %v1871 = vunpack.c.l.b16 %v1790
        %v1872 = vunpack.c.l.b16 %v1791
        %v1873 = vunpack.c.l.b16 %v1792
        %v1874 = vunpack.c.l.b16 %v1793
        %v1875 = vunpack.c.l.b16 %v1794
        %v1876 = vunpack.c.l.b16 %v1795
        %v1877 = vunpack.c.l.b16 %v1796
        %v1878 = vunpack.c.l.b16 %v1797
        %v1879 = vunpack.c.l.b16 %v1798
        %v1880 = vunpack.c.l.b16 %v1799
        %v1881 = vunpack.c.l.b16 %v1800
        %v1882 = vunpack.c.l.b16 %v1801
        %v1883 = vunpack.c.l.b16 %v1802
        %v1884 = vunpack.c.l.b16 %v1803
        %v1885 = vunpack.c.l.b16 %v1804
        %v1886 = vunpack.c.l.b16 %v1805
        %v1887 = vunpack.c.l.b16 %v1806
        %v1888 = vunpack.c.l.b16 %v1807
        %v1889 = vunpack.c.l.b16 %v1808
        %v1890 = vunpack.c.l.b16 %v1809
        %v1891 = vunpack.c.l.b16 %v1810
        %v1892 = vunpack.c.l.b16 %v1811
        %v1893 = vunpack.c.l.b16 %v1812
        %v1894 = vunpack.c.l.b16 %v1813
        %v1895 = vunpack.c.l.b16 %v1814
        %v1896 = vpack.c.b16 %v1865, %v1864
        %v1897 = vpack.c.b16 %v1867, %v1866
        %v1898 = vpack.c.b16 %v1869, %v1868
        %v1899 = vpack.c.b16 %v1871, %v1870
        %v1900 = vpack.c.b16 %v1873, %v1872
        %v1901 = vpack.c.b16 %v1875, %v1874
        %v1902 = vpack.c.b16 %v1877, %v1876
        %v1903 = vpack.c.b16 %v1879, %v1878
        %v1904 = vpack.c.b16 %v1881, %v1880
        %v1905 = vpack.c.b16 %v1883, %v1882
        %v1906 = vpack.c.b16 %v1885, %v1884
        %v1907 = vpack.c.b16 %v1887, %v1886
        %v1908 = vpack.c.b16 %v1889, %v1888
        %v1909 = vpack.c.b16 %v1891, %v1890
        %v1910 = vpack.c.b16 %v1893, %v1892
        %v1911 = vpack.c.b16 %v1895, %v1894
        %v1944 = vunpack.c.l.b16 %v1816
        %v1945 = vunpack.c.l.b16 %v1817
        %v1946 = vunpack.c.l.b16 %v1818
        %v1947 = vunpack.c.l.b16 %v1819
        %v1948 = vunpack.c.l.b16 %v1820
        %v1949 = vunpack.c.l.b16 %v1821
        %v1950 = vunpack.c.l.b16 %v1822
        %v1951 = vunpack.c.l.b16 %v1823
        %v1952 = vunpack.c.l.b16 %v1824
        %v1953 = vunpack.c.l.b16 %v1825
        %v1954 = vunpack.c.l.b16 %v1826
        %v1955 = vunpack.c.l.b16 %v1827
        %v1956 = vunpack.c.l.b16 %v1828
        %v1957 = vunpack.c.l.b16 %v1829
        %v1958 = vunpack.c.l.b16 %v1830
        %v1959 = vunpack.c.l.b16 %v1831
        %v1960 = vpack.c.b16 %v1945, %v1944
        %v1961 = vpack.c.b16 %v1947, %v1946
        %v1962 = vpack.c.b16 %v1949, %v1948
        %v1963 = vpack.c.b16 %v1951, %v1950
        %v1964 = vpack.c.b16 %v1953, %v1952
        %v1965 = vpack.c.b16 %v1955, %v1954
        %v1966 = vpack.c.b16 %v1957, %v1956
        %v1967 = vpack.c.b16 %v1959, %v1958
        %1976 = vmatprep.subr.bf16.mxu0 0
        %1977 = vmatpush1.bf16.msra.mxu0 %v1960
        %1978 = vmatprep.subr.bf16.mxu0 0
        %1979 = vmatpush1.bf16.msra.mxu0 %v1961
        %1980 = vmatprep.subr.bf16.mxu0 0
        %1981 = vmatpush1.bf16.msra.mxu0 %v1962
        %1982 = vmatprep.subr.bf16.mxu0 0
        %1983 = vmatpush1.bf16.msra.mxu0 %v1963
        %1984 = vmatprep.subr.bf16.mxu0 0
        %1985 = vmatpush1.bf16.msra.mxu0 %v1964
        %1986 = vmatprep.subr.bf16.mxu0 0
        %1987 = vmatpush1.bf16.msra.mxu0 %v1965
        %1988 = vmatprep.subr.bf16.mxu0 0
        %1989 = vmatpush1.bf16.msra.mxu0 %v1966
        %1990 = vmatprep.subr.bf16.mxu0 0
        %1991 = vmatpush1.bf16.msra.mxu0 %v1967
        %1992 = vmatprep.subr.bf16.mxu0 0
        %1993 = vmatpush1.bf16.msra.mxu0 0
        %1994 = vmatprep.subr.bf16.mxu0 0
        %1995 = vmatpush1.bf16.msra.mxu0 0
        %1996 = vmatprep.subr.bf16.mxu0 0
        %1997 = vmatpush1.bf16.msra.mxu0 0
        %1998 = vmatprep.subr.bf16.mxu0 0
        %1999 = vmatpush1.bf16.msra.mxu0 0
        %2000 = vmatprep.subr.bf16.mxu0 0
        %2001 = vmatpush1.bf16.msra.mxu0 0
        %2002 = vmatprep.subr.bf16.mxu0 0
        %2003 = vmatpush1.bf16.msra.mxu0 0
        %2004 = vmatprep.subr.bf16.mxu0 0
        %2005 = vmatpush1.bf16.msra.mxu0 0
        %2006 = vmatprep.subr.bf16.mxu0 0
        %2007 = vmatpush1.bf16.msra.mxu0 0
        %2008 = vmatprep.mubr.bf16.mxu0 0
        %2009 = vmatmul.mubr.bf16.gmra.mrb[0].mxu0 %v1896
        %v2010 = vpop.f32.mrb[0].mxu0
        %v2011 = vadd.f32 0.0, %v2010
        %v2012 = vpop.f32.mrb[0].mxu0
        %v2013 = vpop.f32.mrb[0].mxu0
        %v2014 = vadd.f32 0.0, %v2013
        %v2015 = vpop.f32.mrb[0].mxu0
        %2016 = vmatprep.mubr.bf16.mxu0 0
        %2017 = vmatmul.mubr.bf16.gmra.mrb[0].mxu0 %v1897
        %v2018 = vpop.f32.mrb[0].mxu0
        %v2019 = vadd.f32 0.0, %v2018
        %v2020 = vpop.f32.mrb[0].mxu0
        %v2021 = vpop.f32.mrb[0].mxu0
        %v2022 = vadd.f32 0.0, %v2021
        %v2023 = vpop.f32.mrb[0].mxu0
        %2024 = vmatprep.mubr.bf16.mxu0 0
        %2025 = vmatmul.mubr.bf16.gmra.mrb[0].mxu0 %v1898
        %v2026 = vpop.f32.mrb[0].mxu0
        %v2027 = vadd.f32 0.0, %v2026
        %v2028 = vpop.f32.mrb[0].mxu0
        %v2029 = vpop.f32.mrb[0].mxu0
        %v2030 = vadd.f32 0.0, %v2029
        %v2031 = vpop.f32.mrb[0].mxu0
        %2032 = vmatprep.mubr.bf16.mxu0 0
        %2033 = vmatmul.mubr.bf16.gmra.mrb[0].mxu0 %v1899
        %v2034 = vpop.f32.mrb[0].mxu0
        %v2035 = vadd.f32 0.0, %v2034
        %v2036 = vpop.f32.mrb[0].mxu0
        %v2037 = vpop.f32.mrb[0].mxu0
        %v2038 = vadd.f32 0.0, %v2037
        %v2039 = vpop.f32.mrb[0].mxu0
        %2040 = vmatprep.mubr.bf16.mxu0 0
        %2041 = vmatmul.mubr.bf16.gmra.mrb[0].mxu0 %v1900
        %v2042 = vpop.f32.mrb[0].mxu0
        %v2043 = vadd.f32 0.0, %v2042
        %v2044 = vpop.f32.mrb[0].mxu0
        %v2045 = vpop.f32.mrb[0].mxu0
        %v2046 = vadd.f32 0.0, %v2045
        %v2047 = vpop.f32.mrb[0].mxu0
        %2048 = vmatprep.mubr.bf16.mxu0 0
        %2049 = vmatmul.mubr.bf16.gmra.mrb[0].mxu0 %v1901
        %v2050 = vpop.f32.mrb[0].mxu0
        %v2051 = vadd.f32 0.0, %v2050
        %v2052 = vpop.f32.mrb[0].mxu0
        %v2053 = vpop.f32.mrb[0].mxu0
        %v2054 = vadd.f32 0.0, %v2053
        %v2055 = vpop.f32.mrb[0].mxu0
        %2056 = vmatprep.mubr.bf16.mxu0 0
        %2057 = vmatmul.mubr.bf16.gmra.mrb[0].mxu0 %v1902
        %v2058 = vpop.f32.mrb[0].mxu0
        %v2059 = vadd.f32 0.0, %v2058
        %v2060 = vpop.f32.mrb[0].mxu0
        %v2061 = vpop.f32.mrb[0].mxu0
        %v2062 = vadd.f32 0.0, %v2061
        %v2063 = vpop.f32.mrb[0].mxu0
        %2064 = vmatprep.mubr.bf16.mxu0 0
        %2065 = vmatmul.mubr.bf16.gmra.mrb[0].mxu0 %v1903
        %v2066 = vpop.f32.mrb[0].mxu0
        %v2067 = vadd.f32 0.0, %v2066
        %v2068 = vpop.f32.mrb[0].mxu0
        %v2069 = vpop.f32.mrb[0].mxu0
        %v2070 = vadd.f32 0.0, %v2069
        %v2071 = vpop.f32.mrb[0].mxu0
        %2072 = vmatprep.mubr.bf16.mxu0 0
        %2073 = vmatmul.mubr.bf16.gmra.mrb[0].mxu0 %v1904
        %v2074 = vpop.f32.mrb[0].mxu0
        %v2075 = vadd.f32 0.0, %v2074
        %v2076 = vpop.f32.mrb[0].mxu0
        %v2077 = vpop.f32.mrb[0].mxu0
        %v2078 = vadd.f32 0.0, %v2077
        %v2079 = vpop.f32.mrb[0].mxu0
        %2080 = vmatprep.mubr.bf16.mxu0 0
        %2081 = vmatmul.mubr.bf16.gmra.mrb[0].mxu0 %v1905
        %v2082 = vpop.f32.mrb[0].mxu0
        %v2083 = vadd.f32 0.0, %v2082
        %v2084 = vpop.f32.mrb[0].mxu0
        %v2085 = vpop.f32.mrb[0].mxu0
        %v2086 = vadd.f32 0.0, %v2085
        %v2087 = vpop.f32.mrb[0].mxu0
        %2088 = vmatprep.mubr.bf16.mxu0 0
        %2089 = vmatmul.mubr.bf16.gmra.mrb[0].mxu0 %v1906
        %v2090 = vpop.f32.mrb[0].mxu0
        %v2091 = vadd.f32 0.0, %v2090
        %v2092 = vpop.f32.mrb[0].mxu0
        %v2093 = vpop.f32.mrb[0].mxu0
        %v2094 = vadd.f32 0.0, %v2093
        %v2095 = vpop.f32.mrb[0].mxu0
        %2096 = vmatprep.mubr.bf16.mxu0 0
        %2097 = vmatmul.mubr.bf16.gmra.mrb[0].mxu0 %v1907
        %v2098 = vpop.f32.mrb[0].mxu0
        %v2099 = vadd.f32 0.0, %v2098
        %v2100 = vpop.f32.mrb[0].mxu0
        %v2101 = vpop.f32.mrb[0].mxu0
        %v2102 = vadd.f32 0.0, %v2101
        %v2103 = vpop.f32.mrb[0].mxu0
        %2104 = vmatprep.mubr.bf16.mxu0 0
        %2105 = vmatmul.mubr.bf16.gmra.mrb[0].mxu0 %v1908
        %v2106 = vpop.f32.mrb[0].mxu0
        %v2107 = vadd.f32 0.0, %v2106
        %v2108 = vpop.f32.mrb[0].mxu0
        %v2109 = vpop.f32.mrb[0].mxu0
        %v2110 = vadd.f32 0.0, %v2109
        %v2111 = vpop.f32.mrb[0].mxu0
        %2112 = vmatprep.mubr.bf16.mxu0 0
        %2113 = vmatmul.mubr.bf16.gmra.mrb[0].mxu0 %v1909
        %v2114 = vpop.f32.mrb[0].mxu0
        %v2115 = vadd.f32 0.0, %v2114
        %v2116 = vpop.f32.mrb[0].mxu0
        %v2117 = vpop.f32.mrb[0].mxu0
        %v2118 = vadd.f32 0.0, %v2117
        %v2119 = vpop.f32.mrb[0].mxu0
        %2120 = vmatprep.mubr.bf16.mxu0 0
        %2121 = vmatmul.mubr.bf16.gmra.mrb[0].mxu0 %v1910
        %v2122 = vpop.f32.mrb[0].mxu0
        %v2123 = vadd.f32 0.0, %v2122
        %v2124 = vpop.f32.mrb[0].mxu0
        %v2125 = vpop.f32.mrb[0].mxu0
        %v2126 = vadd.f32 0.0, %v2125
        %v2127 = vpop.f32.mrb[0].mxu0
        %2128 = vmatprep.mubr.bf16.mxu0 0
        %2129 = vmatmul.mubr.bf16.gmra.mrb[0].mxu0 %v1911
        %v2130 = vpop.f32.mrb[0].mxu0
        %v2131 = vadd.f32 0.0, %v2130
        %v2132 = vpop.f32.mrb[0].mxu0
        %v2133 = vpop.f32.mrb[0].mxu0
        %v2134 = vadd.f32 0.0, %v2133
        %v2135 = vpop.f32.mrb[0].mxu0
        %2136 = vdwg.mxu0
        %v2137 = vadd.f32 %v1750, %v2011
        %v2138 = vadd.f32 %v1751, %v2014
        %v2139 = vadd.f32 %v1752, %v2019
        %v2140 = vadd.f32 %v1753, %v2022
        %v2141 = vadd.f32 %v1754, %v2027
        %v2142 = vadd.f32 %v1755, %v2030
        %v2143 = vadd.f32 %v1756, %v2035
        %v2144 = vadd.f32 %v1757, %v2038
        %v2145 = vadd.f32 %v1758, %v2043
        %v2146 = vadd.f32 %v1759, %v2046
        %v2147 = vadd.f32 %v1760, %v2051
        %v2148 = vadd.f32 %v1761, %v2054
        %v2149 = vadd.f32 %v1762, %v2059
        %v2150 = vadd.f32 %v1763, %v2062
        %v2151 = vadd.f32 %v1764, %v2067
        %v2152 = vadd.f32 %v1765, %v2070
        %v2153 = vadd.f32 %v1766, %v2075
        %v2154 = vadd.f32 %v1767, %v2078
        %v2155 = vadd.f32 %v1768, %v2083
        %v2156 = vadd.f32 %v1769, %v2086
        %v2157 = vadd.f32 %v1770, %v2091
        %v2158 = vadd.f32 %v1771, %v2094
        %v2159 = vadd.f32 %v1772, %v2099
        %v2160 = vadd.f32 %v1773, %v2102
        %v2161 = vadd.f32 %v1774, %v2107
        %v2162 = vadd.f32 %v1775, %v2110
        %v2163 = vadd.f32 %v1776, %v2115
        %v2164 = vadd.f32 %v1777, %v2118
        %v2165 = vadd.f32 %v1778, %v2123
        %v2166 = vadd.f32 %v1779, %v2126
        %v2167 = vadd.f32 %v1780, %v2131
        %v2168 = vadd.f32 %v1781, %v2134
        %v2169 = vld [vmem:[%s1782] sm:$0xf]
        %v2170 = vld [vmem:[%s1782 + $0x4] sm:$0xf]
        %v2171 = vld [vmem:[%s1782 + $0x8] sm:$0x1]
        %v2172 = vld [vmem:[%s1782 + $0xc] sm:$0xf]
        %v2173 = vld [vmem:[%s1782 + $0x10] sm:$0xf]
        %v2174 = vld [vmem:[%s1782 + $0x14] sm:$0x1]
        %v2175 = vld [vmem:[%s1782 + $0x18] sm:$0xf]
        %v2176 = vld [vmem:[%s1782 + $0x1c] sm:$0xf]
        %v2177 = vld [vmem:[%s1782 + $0x20] sm:$0x1]
        %v2178 = vld [vmem:[%s1782 + $0x24] sm:$0xf]
        %v2179 = vld [vmem:[%s1782 + $0x28] sm:$0xf]
        %v2180 = vld [vmem:[%s1782 + $0x2c] sm:$0x1]
        %v2181 = vld [vmem:[%s1782 + $0x30] sm:$0xf]
        %v2182 = vld [vmem:[%s1782 + $0x34] sm:$0xf]
        %v2183 = vld [vmem:[%s1782 + $0x38] sm:$0x1]
        %v2184 = vld [vmem:[%s1782 + $0x3c] sm:$0xf]
        %v2185 = vld [vmem:[%s1782 + $0x40] sm:$0xf]
        %v2186 = vld [vmem:[%s1782 + $0x44] sm:$0x1]
        %v2187 = vld [vmem:[%s1782 + $0x48] sm:$0xf]
        %v2188 = vld [vmem:[%s1782 + $0x4c] sm:$0xf]
        %v2189 = vld [vmem:[%s1782 + $0x50] sm:$0x1]
        %v2190 = vld [vmem:[%s1782 + $0x54] sm:$0xf]
        %v2191 = vld [vmem:[%s1782 + $0x58] sm:$0xf]
        %v2192 = vld [vmem:[%s1782 + $0x5c] sm:$0x1]
        %v2193 = vld [vmem:[%s1782 + $0x60] sm:$0xf]
        %v2194 = vld [vmem:[%s1782 + $0x64] sm:$0xf]
        %v2195 = vld [vmem:[%s1782 + $0x68] sm:$0x1]
        %v2196 = vld [vmem:[%s1782 + $0x6c] sm:$0xf]
        %v2197 = vld [vmem:[%s1782 + $0x70] sm:$0xf]
        %v2198 = vld [vmem:[%s1782 + $0x74] sm:$0x1]
        %v2199 = vld [vmem:[%s1782 + $0x78] sm:$0xf]
        %v2200 = vld [vmem:[%s1782 + $0x7c] sm:$0xf]
        %v2201 = vld [vmem:[%s1782 + $0x80] sm:$0x1]
        %v2202 = vld [vmem:[%s1782 + $0x84] sm:$0xf]
        %v2203 = vld [vmem:[%s1782 + $0x88] sm:$0xf]
        %v2204 = vld [vmem:[%s1782 + $0x8c] sm:$0x1]
        %v2205 = vld [vmem:[%s1782 + $0x90] sm:$0xf]
        %v2206 = vld [vmem:[%s1782 + $0x94] sm:$0xf]
        %v2207 = vld [vmem:[%s1782 + $0x98] sm:$0x1]
        %v2208 = vld [vmem:[%s1782 + $0x9c] sm:$0xf]
        %v2209 = vld [vmem:[%s1782 + $0xa0] sm:$0xf]
        %v2210 = vld [vmem:[%s1782 + $0xa4] sm:$0x1]
        %v2211 = vld [vmem:[%s1782 + $0xa8] sm:$0xf]
        %v2212 = vld [vmem:[%s1782 + $0xac] sm:$0xf]
        %v2213 = vld [vmem:[%s1782 + $0xb0] sm:$0x1]
        %v2214 = vld [vmem:[%s1782 + $0xb4] sm:$0xf]
        %v2215 = vld [vmem:[%s1782 + $0xb8] sm:$0xf]
        %v2216 = vld [vmem:[%s1782 + $0xbc] sm:$0x1]
        %v2218 = vshrl.u32 %v2169, 16
        %v2220 = vrot.slane %v2218, 4
        %v2221 = vshll.u32 %v2169, 16
        %v2223 = vrot.slane %v2221, 5
        %v2224 = vor.u32 %v2220, %v2223
        %v2225 = vrot.slane %v2224, 4
        %v2227 = vshll.u32 %v2170, 16
        %v2229 = vrot.slane %v2227, 5
        %v2230 = vsel %vm317, %v2225, %v2229
        %v2231 = vshrl.u32 %v2170, 16
        %v2233 = vrot.slane %v2231, 4
        %v2234 = vor.u32 %v2233, %v2229
        %v2235 = vrot.slane %v2234, 4
        %v2237 = vshll.u32 %v2171, 16
        %v2239 = vrot.slane %v2237, 5
        %v2240 = vsel %vm317, %v2235, %v2239
        %v2242 = vshrl.u32 %v2172, 16
        %v2244 = vrot.slane %v2242, 4
        %v2245 = vshll.u32 %v2172, 16
        %v2247 = vrot.slane %v2245, 5
        %v2248 = vor.u32 %v2244, %v2247
        %v2249 = vrot.slane %v2248, 4
        %v2251 = vshll.u32 %v2173, 16
        %v2253 = vrot.slane %v2251, 5
        %v2254 = vsel %vm317, %v2249, %v2253
        %v2255 = vshrl.u32 %v2173, 16
        %v2257 = vrot.slane %v2255, 4
        %v2258 = vor.u32 %v2257, %v2253
        %v2259 = vrot.slane %v2258, 4
        %v2261 = vshll.u32 %v2174, 16
        %v2263 = vrot.slane %v2261, 5
        %v2264 = vsel %vm317, %v2259, %v2263
        %v2266 = vshrl.u32 %v2175, 16
        %v2268 = vrot.slane %v2266, 4
        %v2269 = vshll.u32 %v2175, 16
        %v2271 = vrot.slane %v2269, 5
        %v2272 = vor.u32 %v2268, %v2271
        %v2273 = vrot.slane %v2272, 4
        %v2275 = vshll.u32 %v2176, 16
        %v2277 = vrot.slane %v2275, 5
        %v2278 = vsel %vm317, %v2273, %v2277
        %v2279 = vshrl.u32 %v2176, 16
        %v2281 = vrot.slane %v2279, 4
        %v2282 = vor.u32 %v2281, %v2277
        %v2283 = vrot.slane %v2282, 4
        %v2285 = vshll.u32 %v2177, 16
        %v2287 = vrot.slane %v2285, 5
        %v2288 = vsel %vm317, %v2283, %v2287
        %v2290 = vshrl.u32 %v2178, 16
        %v2292 = vrot.slane %v2290, 4
        %v2293 = vshll.u32 %v2178, 16
        %v2295 = vrot.slane %v2293, 5
        %v2296 = vor.u32 %v2292, %v2295
        %v2297 = vrot.slane %v2296, 4
        %v2299 = vshll.u32 %v2179, 16
        %v2301 = vrot.slane %v2299, 5
        %v2302 = vsel %vm317, %v2297, %v2301
        %v2303 = vshrl.u32 %v2179, 16
        %v2305 = vrot.slane %v2303, 4
        %v2306 = vor.u32 %v2305, %v2301
        %v2307 = vrot.slane %v2306, 4
        %v2309 = vshll.u32 %v2180, 16
        %v2311 = vrot.slane %v2309, 5
        %v2312 = vsel %vm317, %v2307, %v2311
        %v2314 = vshrl.u32 %v2181, 16
        %v2316 = vrot.slane %v2314, 4
        %v2317 = vshll.u32 %v2181, 16
        %v2319 = vrot.slane %v2317, 5
        %v2320 = vor.u32 %v2316, %v2319
        %v2321 = vrot.slane %v2320, 4
        %v2323 = vshll.u32 %v2182, 16
        %v2325 = vrot.slane %v2323, 5
        %v2326 = vsel %vm317, %v2321, %v2325
        %v2327 = vshrl.u32 %v2182, 16
        %v2329 = vrot.slane %v2327, 4
        %v2330 = vor.u32 %v2329, %v2325
        %v2331 = vrot.slane %v2330, 4
        %v2333 = vshll.u32 %v2183, 16
        %v2335 = vrot.slane %v2333, 5
        %v2336 = vsel %vm317, %v2331, %v2335
        %v2338 = vshrl.u32 %v2184, 16
        %v2340 = vrot.slane %v2338, 4
        %v2341 = vshll.u32 %v2184, 16
        %v2343 = vrot.slane %v2341, 5
        %v2344 = vor.u32 %v2340, %v2343
        %v2345 = vrot.slane %v2344, 4
        %v2347 = vshll.u32 %v2185, 16
        %v2349 = vrot.slane %v2347, 5
        %v2350 = vsel %vm317, %v2345, %v2349
        %v2351 = vshrl.u32 %v2185, 16
        %v2353 = vrot.slane %v2351, 4
        %v2354 = vor.u32 %v2353, %v2349
        %v2355 = vrot.slane %v2354, 4
        %v2357 = vshll.u32 %v2186, 16
        %v2359 = vrot.slane %v2357, 5
        %v2360 = vsel %vm317, %v2355, %v2359
        %v2362 = vshrl.u32 %v2187, 16
        %v2364 = vrot.slane %v2362, 4
        %v2365 = vshll.u32 %v2187, 16
        %v2367 = vrot.slane %v2365, 5
        %v2368 = vor.u32 %v2364, %v2367
        %v2369 = vrot.slane %v2368, 4
        %v2371 = vshll.u32 %v2188, 16
        %v2373 = vrot.slane %v2371, 5
        %v2374 = vsel %vm317, %v2369, %v2373
        %v2375 = vshrl.u32 %v2188, 16
        %v2377 = vrot.slane %v2375, 4
        %v2378 = vor.u32 %v2377, %v2373
        %v2379 = vrot.slane %v2378, 4
        %v2381 = vshll.u32 %v2189, 16
        %v2383 = vrot.slane %v2381, 5
        %v2384 = vsel %vm317, %v2379, %v2383
        %v2386 = vshrl.u32 %v2190, 16
        %v2388 = vrot.slane %v2386, 4
        %v2389 = vshll.u32 %v2190, 16
        %v2391 = vrot.slane %v2389, 5
        %v2392 = vor.u32 %v2388, %v2391
        %v2393 = vrot.slane %v2392, 4
        %v2395 = vshll.u32 %v2191, 16
        %v2397 = vrot.slane %v2395, 5
        %v2398 = vsel %vm317, %v2393, %v2397
        %v2399 = vshrl.u32 %v2191, 16
        %v2401 = vrot.slane %v2399, 4
        %v2402 = vor.u32 %v2401, %v2397
        %v2403 = vrot.slane %v2402, 4
        %v2405 = vshll.u32 %v2192, 16
        %v2407 = vrot.slane %v2405, 5
        %v2408 = vsel %vm317, %v2403, %v2407
        %v2410 = vshrl.u32 %v2193, 16
        %v2412 = vrot.slane %v2410, 4
        %v2413 = vshll.u32 %v2193, 16
        %v2415 = vrot.slane %v2413, 5
        %v2416 = vor.u32 %v2412, %v2415
        %v2417 = vrot.slane %v2416, 4
        %v2419 = vshll.u32 %v2194, 16
        %v2421 = vrot.slane %v2419, 5
        %v2422 = vsel %vm317, %v2417, %v2421
        %v2423 = vshrl.u32 %v2194, 16
        %v2425 = vrot.slane %v2423, 4
        %v2426 = vor.u32 %v2425, %v2421
        %v2427 = vrot.slane %v2426, 4
        %v2429 = vshll.u32 %v2195, 16
        %v2431 = vrot.slane %v2429, 5
        %v2432 = vsel %vm317, %v2427, %v2431
        %v2434 = vshrl.u32 %v2196, 16
        %v2436 = vrot.slane %v2434, 4
        %v2437 = vshll.u32 %v2196, 16
        %v2439 = vrot.slane %v2437, 5
        %v2440 = vor.u32 %v2436, %v2439
        %v2441 = vrot.slane %v2440, 4
        %v2443 = vshll.u32 %v2197, 16
        %v2445 = vrot.slane %v2443, 5
        %v2446 = vsel %vm317, %v2441, %v2445
        %v2447 = vshrl.u32 %v2197, 16
        %v2449 = vrot.slane %v2447, 4
        %v2450 = vor.u32 %v2449, %v2445
        %v2451 = vrot.slane %v2450, 4
        %v2453 = vshll.u32 %v2198, 16
        %v2455 = vrot.slane %v2453, 5
        %v2456 = vsel %vm317, %v2451, %v2455
        %v2458 = vshrl.u32 %v2199, 16
        %v2460 = vrot.slane %v2458, 4
        %v2461 = vshll.u32 %v2199, 16
        %v2463 = vrot.slane %v2461, 5
        %v2464 = vor.u32 %v2460, %v2463
        %v2465 = vrot.slane %v2464, 4
        %v2467 = vshll.u32 %v2200, 16
        %v2469 = vrot.slane %v2467, 5
        %v2470 = vsel %vm317, %v2465, %v2469
        %v2471 = vshrl.u32 %v2200, 16
        %v2473 = vrot.slane %v2471, 4
        %v2474 = vor.u32 %v2473, %v2469
        %v2475 = vrot.slane %v2474, 4
        %v2477 = vshll.u32 %v2201, 16
        %v2479 = vrot.slane %v2477, 5
        %v2480 = vsel %vm317, %v2475, %v2479
        %v2482 = vshrl.u32 %v2202, 16
        %v2484 = vrot.slane %v2482, 4
        %v2485 = vshll.u32 %v2202, 16
        %v2487 = vrot.slane %v2485, 5
        %v2488 = vor.u32 %v2484, %v2487
        %v2489 = vrot.slane %v2488, 4
        %v2491 = vshll.u32 %v2203, 16
        %v2493 = vrot.slane %v2491, 5
        %v2494 = vsel %vm317, %v2489, %v2493
        %v2495 = vshrl.u32 %v2203, 16
        %v2497 = vrot.slane %v2495, 4
        %v2498 = vor.u32 %v2497, %v2493
        %v2499 = vrot.slane %v2498, 4
        %v2501 = vshll.u32 %v2204, 16
        %v2503 = vrot.slane %v2501, 5
        %v2504 = vsel %vm317, %v2499, %v2503
        %v2506 = vshrl.u32 %v2205, 16
        %v2508 = vrot.slane %v2506, 4
        %v2509 = vshll.u32 %v2205, 16
        %v2511 = vrot.slane %v2509, 5
        %v2512 = vor.u32 %v2508, %v2511
        %v2513 = vrot.slane %v2512, 4
        %v2515 = vshll.u32 %v2206, 16
        %v2517 = vrot.slane %v2515, 5
        %v2518 = vsel %vm317, %v2513, %v2517
        %v2519 = vshrl.u32 %v2206, 16
        %v2521 = vrot.slane %v2519, 4
        %v2522 = vor.u32 %v2521, %v2517
        %v2523 = vrot.slane %v2522, 4
        %v2525 = vshll.u32 %v2207, 16
        %v2527 = vrot.slane %v2525, 5
        %v2528 = vsel %vm317, %v2523, %v2527
        %v2530 = vshrl.u32 %v2208, 16
        %v2532 = vrot.slane %v2530, 4
        %v2533 = vshll.u32 %v2208, 16
        %v2535 = vrot.slane %v2533, 5
        %v2536 = vor.u32 %v2532, %v2535
        %v2537 = vrot.slane %v2536, 4
        %v2539 = vshll.u32 %v2209, 16
        %v2541 = vrot.slane %v2539, 5
        %v2542 = vsel %vm317, %v2537, %v2541
        %v2543 = vshrl.u32 %v2209, 16
        %v2545 = vrot.slane %v2543, 4
        %v2546 = vor.u32 %v2545, %v2541
        %v2547 = vrot.slane %v2546, 4
        %v2549 = vshll.u32 %v2210, 16
        %v2551 = vrot.slane %v2549, 5
        %v2552 = vsel %vm317, %v2547, %v2551
        %v2554 = vshrl.u32 %v2211, 16
        %v2556 = vrot.slane %v2554, 4
        %v2557 = vshll.u32 %v2211, 16
        %v2559 = vrot.slane %v2557, 5
        %v2560 = vor.u32 %v2556, %v2559
        %v2561 = vrot.slane %v2560, 4
        %v2563 = vshll.u32 %v2212, 16
        %v2565 = vrot.slane %v2563, 5
        %v2566 = vsel %vm317, %v2561, %v2565
        %v2567 = vshrl.u32 %v2212, 16
        %v2569 = vrot.slane %v2567, 4
        %v2570 = vor.u32 %v2569, %v2565
        %v2571 = vrot.slane %v2570, 4
        %v2573 = vshll.u32 %v2213, 16
        %v2575 = vrot.slane %v2573, 5
        %v2576 = vsel %vm317, %v2571, %v2575
        %v2578 = vshrl.u32 %v2214, 16
        %v2580 = vrot.slane %v2578, 4
        %v2581 = vshll.u32 %v2214, 16
        %v2583 = vrot.slane %v2581, 5
        %v2584 = vor.u32 %v2580, %v2583
        %v2585 = vrot.slane %v2584, 4
        %v2587 = vshll.u32 %v2215, 16
        %v2589 = vrot.slane %v2587, 5
        %v2590 = vsel %vm317, %v2585, %v2589
        %v2591 = vshrl.u32 %v2215, 16
        %v2593 = vrot.slane %v2591, 4
        %v2594 = vor.u32 %v2593, %v2589
        %v2595 = vrot.slane %v2594, 4
        %v2597 = vshll.u32 %v2216, 16
        %v2599 = vrot.slane %v2597, 5
        %v2600 = vsel %vm317, %v2595, %v2599
        %s2601 = scalar_lea.vmem [#allocation4], 256
        %v2602 = vld [vmem:[%s2601] sm:$0xf]
        %v2603 = vld [vmem:[%s2601 + $0x4] sm:$0xf]
        %v2604 = vld [vmem:[%s2601 + $0x8] sm:$0xf]
        %v2605 = vld [vmem:[%s2601 + $0xc] sm:$0xf]
        %v2606 = vld [vmem:[%s2601 + $0x10] sm:$0xf]
        %v2607 = vld [vmem:[%s2601 + $0x14] sm:$0xf]
        %v2608 = vld [vmem:[%s2601 + $0x18] sm:$0xf]
        %v2609 = vld [vmem:[%s2601 + $0x1c] sm:$0xf]
        %v2610 = vld [vmem:[%s2601 + $0x20] sm:$0xf]
        %v2611 = vld [vmem:[%s2601 + $0x24] sm:$0xf]
        %v2612 = vld [vmem:[%s2601 + $0x28] sm:$0xf]
        %v2613 = vld [vmem:[%s2601 + $0x2c] sm:$0xf]
        %v2614 = vld [vmem:[%s2601 + $0x30] sm:$0xf]
        %v2615 = vld [vmem:[%s2601 + $0x34] sm:$0xf]
        %v2616 = vld [vmem:[%s2601 + $0x38] sm:$0xf]
        %v2617 = vld [vmem:[%s2601 + $0x3c] sm:$0xf]
        %v2618 = vunpack.c.l.b16 %v2230
        %v2619 = vunpack.c.l.b16 %v2240
        %v2620 = vunpack.c.l.b16 %v2254
        %v2621 = vunpack.c.l.b16 %v2264
        %v2622 = vunpack.c.l.b16 %v2278
        %v2623 = vunpack.c.l.b16 %v2288
        %v2624 = vunpack.c.l.b16 %v2302
        %v2625 = vunpack.c.l.b16 %v2312
        %v2626 = vunpack.c.l.b16 %v2326
        %v2627 = vunpack.c.l.b16 %v2336
        %v2628 = vunpack.c.l.b16 %v2350
        %v2629 = vunpack.c.l.b16 %v2360
        %v2630 = vunpack.c.l.b16 %v2374
        %v2631 = vunpack.c.l.b16 %v2384
        %v2632 = vunpack.c.l.b16 %v2398
        %v2633 = vunpack.c.l.b16 %v2408
        %v2634 = vunpack.c.l.b16 %v2422
        %v2635 = vunpack.c.l.b16 %v2432
        %v2636 = vunpack.c.l.b16 %v2446
        %v2637 = vunpack.c.l.b16 %v2456
        %v2638 = vunpack.c.l.b16 %v2470
        %v2639 = vunpack.c.l.b16 %v2480
        %v2640 = vunpack.c.l.b16 %v2494
        %v2641 = vunpack.c.l.b16 %v2504
        %v2642 = vunpack.c.l.b16 %v2518
        %v2643 = vunpack.c.l.b16 %v2528
        %v2644 = vunpack.c.l.b16 %v2542
        %v2645 = vunpack.c.l.b16 %v2552
        %v2646 = vunpack.c.l.b16 %v2566
        %v2647 = vunpack.c.l.b16 %v2576
        %v2648 = vunpack.c.l.b16 %v2590
        %v2649 = vunpack.c.l.b16 %v2600
        %v2650 = vpack.c.b16 %v2619, %v2618
        %v2651 = vpack.c.b16 %v2621, %v2620
        %v2652 = vpack.c.b16 %v2623, %v2622
        %v2653 = vpack.c.b16 %v2625, %v2624
        %v2654 = vpack.c.b16 %v2627, %v2626
        %v2655 = vpack.c.b16 %v2629, %v2628
        %v2656 = vpack.c.b16 %v2631, %v2630
        %v2657 = vpack.c.b16 %v2633, %v2632
        %v2658 = vpack.c.b16 %v2635, %v2634
        %v2659 = vpack.c.b16 %v2637, %v2636
        %v2660 = vpack.c.b16 %v2639, %v2638
        %v2661 = vpack.c.b16 %v2641, %v2640
        %v2662 = vpack.c.b16 %v2643, %v2642
        %v2663 = vpack.c.b16 %v2645, %v2644
        %v2664 = vpack.c.b16 %v2647, %v2646
        %v2665 = vpack.c.b16 %v2649, %v2648
        %v2698 = vunpack.c.l.b16 %v2602
        %v2699 = vunpack.c.l.b16 %v2603
        %v2700 = vunpack.c.l.b16 %v2604
        %v2701 = vunpack.c.l.b16 %v2605
        %v2702 = vunpack.c.l.b16 %v2606
        %v2703 = vunpack.c.l.b16 %v2607
        %v2704 = vunpack.c.l.b16 %v2608
        %v2705 = vunpack.c.l.b16 %v2609
        %v2706 = vunpack.c.l.b16 %v2610
        %v2707 = vunpack.c.l.b16 %v2611
        %v2708 = vunpack.c.l.b16 %v2612
        %v2709 = vunpack.c.l.b16 %v2613
        %v2710 = vunpack.c.l.b16 %v2614
        %v2711 = vunpack.c.l.b16 %v2615
        %v2712 = vunpack.c.l.b16 %v2616
        %v2713 = vunpack.c.l.b16 %v2617
        %v2714 = vpack.c.b16 %v2699, %v2698
        %v2715 = vpack.c.b16 %v2701, %v2700
        %v2716 = vpack.c.b16 %v2703, %v2702
        %v2717 = vpack.c.b16 %v2705, %v2704
        %v2718 = vpack.c.b16 %v2707, %v2706
        %v2719 = vpack.c.b16 %v2709, %v2708
        %v2720 = vpack.c.b16 %v2711, %v2710
        %v2721 = vpack.c.b16 %v2713, %v2712
        %2730 = vmatprep.subr.bf16.mxu0 0
        %2731 = vmatpush1.bf16.msra.mxu0 %v2714
        %2732 = vmatprep.subr.bf16.mxu0 0
        %2733 = vmatpush1.bf16.msra.mxu0 %v2715
        %2734 = vmatprep.subr.bf16.mxu0 0
        %2735 = vmatpush1.bf16.msra.mxu0 %v2716
        %2736 = vmatprep.subr.bf16.mxu0 0
        %2737 = vmatpush1.bf16.msra.mxu0 %v2717
        %2738 = vmatprep.subr.bf16.mxu0 0
        %2739 = vmatpush1.bf16.msra.mxu0 %v2718
        %2740 = vmatprep.subr.bf16.mxu0 0
        %2741 = vmatpush1.bf16.msra.mxu0 %v2719
        %2742 = vmatprep.subr.bf16.mxu0 0
        %2743 = vmatpush1.bf16.msra.mxu0 %v2720
        %2744 = vmatprep.subr.bf16.mxu0 0
        %2745 = vmatpush1.bf16.msra.mxu0 %v2721
        %2746 = vmatprep.subr.bf16.mxu0 0
        %2747 = vmatpush1.bf16.msra.mxu0 0
        %2748 = vmatprep.subr.bf16.mxu0 0
        %2749 = vmatpush1.bf16.msra.mxu0 0
        %2750 = vmatprep.subr.bf16.mxu0 0
        %2751 = vmatpush1.bf16.msra.mxu0 0
        %2752 = vmatprep.subr.bf16.mxu0 0
        %2753 = vmatpush1.bf16.msra.mxu0 0
        %2754 = vmatprep.subr.bf16.mxu0 0
        %2755 = vmatpush1.bf16.msra.mxu0 0
        %2756 = vmatprep.subr.bf16.mxu0 0
        %2757 = vmatpush1.bf16.msra.mxu0 0
        %2758 = vmatprep.subr.bf16.mxu0 0
        %2759 = vmatpush1.bf16.msra.mxu0 0
        %2760 = vmatprep.subr.bf16.mxu0 0
        %2761 = vmatpush1.bf16.msra.mxu0 0
        %2762 = vmatprep.mubr.bf16.mxu0 0
        %2763 = vmatmul.mubr.bf16.gmra.mrb[0].mxu0 %v2650
        %v2764 = vpop.f32.mrb[0].mxu0
        %v2765 = vadd.f32 0.0, %v2764
        %v2766 = vpop.f32.mrb[0].mxu0
        %v2767 = vpop.f32.mrb[0].mxu0
        %v2768 = vadd.f32 0.0, %v2767
        %v2769 = vpop.f32.mrb[0].mxu0
        %2770 = vmatprep.mubr.bf16.mxu0 0
        %2771 = vmatmul.mubr.bf16.gmra.mrb[0].mxu0 %v2651
        %v2772 = vpop.f32.mrb[0].mxu0
        %v2773 = vadd.f32 0.0, %v2772
        %v2774 = vpop.f32.mrb[0].mxu0
        %v2775 = vpop.f32.mrb[0].mxu0
        %v2776 = vadd.f32 0.0, %v2775
        %v2777 = vpop.f32.mrb[0].mxu0
        %2778 = vmatprep.mubr.bf16.mxu0 0
        %2779 = vmatmul.mubr.bf16.gmra.mrb[0].mxu0 %v2652
        %v2780 = vpop.f32.mrb[0].mxu0
        %v2781 = vadd.f32 0.0, %v2780
        %v2782 = vpop.f32.mrb[0].mxu0
        %v2783 = vpop.f32.mrb[0].mxu0
        %v2784 = vadd.f32 0.0, %v2783
        %v2785 = vpop.f32.mrb[0].mxu0
        %2786 = vmatprep.mubr.bf16.mxu0 0
        %2787 = vmatmul.mubr.bf16.gmra.mrb[0].mxu0 %v2653
        %v2788 = vpop.f32.mrb[0].mxu0
        %v2789 = vadd.f32 0.0, %v2788
        %v2790 = vpop.f32.mrb[0].mxu0
        %v2791 = vpop.f32.mrb[0].mxu0
        %v2792 = vadd.f32 0.0, %v2791
        %v2793 = vpop.f32.mrb[0].mxu0
        %2794 = vmatprep.mubr.bf16.mxu0 0
        %2795 = vmatmul.mubr.bf16.gmra.mrb[0].mxu0 %v2654
        %v2796 = vpop.f32.mrb[0].mxu0
        %v2797 = vadd.f32 0.0, %v2796
        %v2798 = vpop.f32.mrb[0].mxu0
        %v2799 = vpop.f32.mrb[0].mxu0
        %v2800 = vadd.f32 0.0, %v2799
        %v2801 = vpop.f32.mrb[0].mxu0
        %2802 = vmatprep.mubr.bf16.mxu0 0
        %2803 = vmatmul.mubr.bf16.gmra.mrb[0].mxu0 %v2655
        %v2804 = vpop.f32.mrb[0].mxu0
        %v2805 = vadd.f32 0.0, %v2804
        %v2806 = vpop.f32.mrb[0].mxu0
        %v2807 = vpop.f32.mrb[0].mxu0
        %v2808 = vadd.f32 0.0, %v2807
        %v2809 = vpop.f32.mrb[0].mxu0
        %2810 = vmatprep.mubr.bf16.mxu0 0
        %2811 = vmatmul.mubr.bf16.gmra.mrb[0].mxu0 %v2656
        %v2812 = vpop.f32.mrb[0].mxu0
        %v2813 = vadd.f32 0.0, %v2812
        %v2814 = vpop.f32.mrb[0].mxu0
        %v2815 = vpop.f32.mrb[0].mxu0
        %v2816 = vadd.f32 0.0, %v2815
        %v2817 = vpop.f32.mrb[0].mxu0
        %2818 = vmatprep.mubr.bf16.mxu0 0
        %2819 = vmatmul.mubr.bf16.gmra.mrb[0].mxu0 %v2657
        %v2820 = vpop.f32.mrb[0].mxu0
        %v2821 = vadd.f32 0.0, %v2820
        %v2822 = vpop.f32.mrb[0].mxu0
        %v2823 = vpop.f32.mrb[0].mxu0
        %v2824 = vadd.f32 0.0, %v2823
        %v2825 = vpop.f32.mrb[0].mxu0
        %2826 = vmatprep.mubr.bf16.mxu0 0
        %2827 = vmatmul.mubr.bf16.gmra.mrb[0].mxu0 %v2658
        %v2828 = vpop.f32.mrb[0].mxu0
        %v2829 = vadd.f32 0.0, %v2828
        %v2830 = vpop.f32.mrb[0].mxu0
        %v2831 = vpop.f32.mrb[0].mxu0
        %v2832 = vadd.f32 0.0, %v2831
        %v2833 = vpop.f32.mrb[0].mxu0
        %2834 = vmatprep.mubr.bf16.mxu0 0
        %2835 = vmatmul.mubr.bf16.gmra.mrb[0].mxu0 %v2659
        %v2836 = vpop.f32.mrb[0].mxu0
        %v2837 = vadd.f32 0.0, %v2836
        %v2838 = vpop.f32.mrb[0].mxu0
        %v2839 = vpop.f32.mrb[0].mxu0
        %v2840 = vadd.f32 0.0, %v2839
        %v2841 = vpop.f32.mrb[0].mxu0
        %2842 = vmatprep.mubr.bf16.mxu0 0
        %2843 = vmatmul.mubr.bf16.gmra.mrb[0].mxu0 %v2660
        %v2844 = vpop.f32.mrb[0].mxu0
        %v2845 = vadd.f32 0.0, %v2844
        %v2846 = vpop.f32.mrb[0].mxu0
        %v2847 = vpop.f32.mrb[0].mxu0
        %v2848 = vadd.f32 0.0, %v2847
        %v2849 = vpop.f32.mrb[0].mxu0
        %2850 = vmatprep.mubr.bf16.mxu0 0
        %2851 = vmatmul.mubr.bf16.gmra.mrb[0].mxu0 %v2661
        %v2852 = vpop.f32.mrb[0].mxu0
        %v2853 = vadd.f32 0.0, %v2852
        %v2854 = vpop.f32.mrb[0].mxu0
        %v2855 = vpop.f32.mrb[0].mxu0
        %v2856 = vadd.f32 0.0, %v2855
        %v2857 = vpop.f32.mrb[0].mxu0
        %2858 = vmatprep.mubr.bf16.mxu0 0
        %2859 = vmatmul.mubr.bf16.gmra.mrb[0].mxu0 %v2662
        %v2860 = vpop.f32.mrb[0].mxu0
        %v2861 = vadd.f32 0.0, %v2860
        %v2862 = vpop.f32.mrb[0].mxu0
        %v2863 = vpop.f32.mrb[0].mxu0
        %v2864 = vadd.f32 0.0, %v2863
        %v2865 = vpop.f32.mrb[0].mxu0
        %2866 = vmatprep.mubr.bf16.mxu0 0
        %2867 = vmatmul.mubr.bf16.gmra.mrb[0].mxu0 %v2663
        %v2868 = vpop.f32.mrb[0].mxu0
        %v2869 = vadd.f32 0.0, %v2868
        %v2870 = vpop.f32.mrb[0].mxu0
        %v2871 = vpop.f32.mrb[0].mxu0
        %v2872 = vadd.f32 0.0, %v2871
        %v2873 = vpop.f32.mrb[0].mxu0
        %2874 = vmatprep.mubr.bf16.mxu0 0
        %2875 = vmatmul.mubr.bf16.gmra.mrb[0].mxu0 %v2664
        %v2876 = vpop.f32.mrb[0].mxu0
        %v2877 = vadd.f32 0.0, %v2876
        %v2878 = vpop.f32.mrb[0].mxu0
        %v2879 = vpop.f32.mrb[0].mxu0
        %v2880 = vadd.f32 0.0, %v2879
        %v2881 = vpop.f32.mrb[0].mxu0
        %2882 = vmatprep.mubr.bf16.mxu0 0
        %2883 = vmatmul.mubr.bf16.gmra.mrb[0].mxu0 %v2665
        %v2884 = vpop.f32.mrb[0].mxu0
        %v2885 = vadd.f32 0.0, %v2884
        %v2886 = vpop.f32.mrb[0].mxu0
        %v2887 = vpop.f32.mrb[0].mxu0
        %v2888 = vadd.f32 0.0, %v2887
        %v2889 = vpop.f32.mrb[0].mxu0
        %2890 = vdwg.mxu0
        %v2891 = vadd.f32 %v2137, %v2765
        %v2892 = vadd.f32 %v2138, %v2768
        %v2893 = vadd.f32 %v2139, %v2773
        %v2894 = vadd.f32 %v2140, %v2776
        %v2895 = vadd.f32 %v2141, %v2781
        %v2896 = vadd.f32 %v2142, %v2784
        %v2897 = vadd.f32 %v2143, %v2789
        %v2898 = vadd.f32 %v2144, %v2792
        %v2899 = vadd.f32 %v2145, %v2797
        %v2900 = vadd.f32 %v2146, %v2800
        %v2901 = vadd.f32 %v2147, %v2805
        %v2902 = vadd.f32 %v2148, %v2808
        %v2903 = vadd.f32 %v2149, %v2813
        %v2904 = vadd.f32 %v2150, %v2816
        %v2905 = vadd.f32 %v2151, %v2821
        %v2906 = vadd.f32 %v2152, %v2824
        %v2907 = vadd.f32 %v2153, %v2829
        %v2908 = vadd.f32 %v2154, %v2832
        %v2909 = vadd.f32 %v2155, %v2837
        %v2910 = vadd.f32 %v2156, %v2840
        %v2911 = vadd.f32 %v2157, %v2845
        %v2912 = vadd.f32 %v2158, %v2848
        %v2913 = vadd.f32 %v2159, %v2853
        %v2914 = vadd.f32 %v2160, %v2856
        %v2915 = vadd.f32 %v2161, %v2861
        %v2916 = vadd.f32 %v2162, %v2864
        %v2917 = vadd.f32 %v2163, %v2869
        %v2918 = vadd.f32 %v2164, %v2872
        %v2919 = vadd.f32 %v2165, %v2877
        %v2920 = vadd.f32 %v2166, %v2880
        %v2921 = vadd.f32 %v2167, %v2885
        %v2922 = vadd.f32 %v2168, %v2888
        %v2923 = vld [vmem:[%s1782] sm:$0xe]
        %v2924 = vld [vmem:[%s1782 + $0xc] sm:$0xe]
        %v2925 = vld [vmem:[%s1782 + $0x18] sm:$0xe]
        %v2926 = vld [vmem:[%s1782 + $0x24] sm:$0xe]
        %v2927 = vld [vmem:[%s1782 + $0x30] sm:$0xe]
        %v2928 = vld [vmem:[%s1782 + $0x3c] sm:$0xe]
        %v2929 = vld [vmem:[%s1782 + $0x48] sm:$0xe]
        %v2930 = vld [vmem:[%s1782 + $0x54] sm:$0xe]
        %v2931 = vld [vmem:[%s1782 + $0x60] sm:$0xe]
        %v2932 = vld [vmem:[%s1782 + $0x6c] sm:$0xe]
        %v2933 = vld [vmem:[%s1782 + $0x78] sm:$0xe]
        %v2934 = vld [vmem:[%s1782 + $0x84] sm:$0xe]
        %v2935 = vld [vmem:[%s1782 + $0x90] sm:$0xe]
        %v2936 = vld [vmem:[%s1782 + $0x9c] sm:$0xe]
        %v2937 = vld [vmem:[%s1782 + $0xa8] sm:$0xe]
        %v2938 = vld [vmem:[%s1782 + $0xb4] sm:$0xe]
        %v2987 = vrot.slane %v2923, 5
        %v2988 = vrot.slane %v2987, 4
        %v2989 = vrot.slane %v2170, 5
        %v2990 = vsel %vm1347, %v2988, %v2989
        %v2991 = vrot.slane %v2989, 4
        %v2992 = vrot.slane %v2171, 5
        %v2993 = vsel %vm1347, %v2991, %v2992
        %v2994 = vrot.slane %v2924, 5
        %v2995 = vrot.slane %v2994, 4
        %v2996 = vrot.slane %v2173, 5
        %v2997 = vsel %vm1347, %v2995, %v2996
        %v2998 = vrot.slane %v2996, 4
        %v2999 = vrot.slane %v2174, 5
        %v3000 = vsel %vm1347, %v2998, %v2999
        %v3001 = vrot.slane %v2925, 5
        %v3002 = vrot.slane %v3001, 4
        %v3003 = vrot.slane %v2176, 5
        %v3004 = vsel %vm1347, %v3002, %v3003
        %v3005 = vrot.slane %v3003, 4
        %v3006 = vrot.slane %v2177, 5
        %v3007 = vsel %vm1347, %v3005, %v3006
        %v3008 = vrot.slane %v2926, 5
        %v3009 = vrot.slane %v3008, 4
        %v3010 = vrot.slane %v2179, 5
        %v3011 = vsel %vm1347, %v3009, %v3010
        %v3012 = vrot.slane %v3010, 4
        %v3013 = vrot.slane %v2180, 5
        %v3014 = vsel %vm1347, %v3012, %v3013
        %v3015 = vrot.slane %v2927, 5
        %v3016 = vrot.slane %v3015, 4
        %v3017 = vrot.slane %v2182, 5
        %v3018 = vsel %vm1347, %v3016, %v3017
        %v3019 = vrot.slane %v3017, 4
        %v3020 = vrot.slane %v2183, 5
        %v3021 = vsel %vm1347, %v3019, %v3020
        %v3022 = vrot.slane %v2928, 5
        %v3023 = vrot.slane %v3022, 4
        %v3024 = vrot.slane %v2185, 5
        %v3025 = vsel %vm1347, %v3023, %v3024
        %v3026 = vrot.slane %v3024, 4
        %v3027 = vrot.slane %v2186, 5
        %v3028 = vsel %vm1347, %v3026, %v3027
        %v3029 = vrot.slane %v2929, 5
        %v3030 = vrot.slane %v3029, 4
        %v3031 = vrot.slane %v2188, 5
        %v3032 = vsel %vm1347, %v3030, %v3031
        %v3033 = vrot.slane %v3031, 4
        %v3034 = vrot.slane %v2189, 5
        %v3035 = vsel %vm1347, %v3033, %v3034
        %v3036 = vrot.slane %v2930, 5
        %v3037 = vrot.slane %v3036, 4
        %v3038 = vrot.slane %v2191, 5
        %v3039 = vsel %vm1347, %v3037, %v3038
        %v3040 = vrot.slane %v3038, 4
        %v3041 = vrot.slane %v2192, 5
        %v3042 = vsel %vm1347, %v3040, %v3041
        %v3043 = vrot.slane %v2931, 5
        %v3044 = vrot.slane %v3043, 4
        %v3045 = vrot.slane %v2194, 5
        %v3046 = vsel %vm1347, %v3044, %v3045
        %v3047 = vrot.slane %v3045, 4
        %v3048 = vrot.slane %v2195, 5
        %v3049 = vsel %vm1347, %v3047, %v3048
        %v3050 = vrot.slane %v2932, 5
        %v3051 = vrot.slane %v3050, 4
        %v3052 = vrot.slane %v2197, 5
        %v3053 = vsel %vm1347, %v3051, %v3052
        %v3054 = vrot.slane %v3052, 4
        %v3055 = vrot.slane %v2198, 5
        %v3056 = vsel %vm1347, %v3054, %v3055
        %v3057 = vrot.slane %v2933, 5
        %v3058 = vrot.slane %v3057, 4
        %v3059 = vrot.slane %v2200, 5
        %v3060 = vsel %vm1347, %v3058, %v3059
        %v3061 = vrot.slane %v3059, 4
        %v3062 = vrot.slane %v2201, 5
        %v3063 = vsel %vm1347, %v3061, %v3062
        %v3064 = vrot.slane %v2934, 5
        %v3065 = vrot.slane %v3064, 4
        %v3066 = vrot.slane %v2203, 5
        %v3067 = vsel %vm1347, %v3065, %v3066
        %v3068 = vrot.slane %v3066, 4
        %v3069 = vrot.slane %v2204, 5
        %v3070 = vsel %vm1347, %v3068, %v3069
        %v3071 = vrot.slane %v2935, 5
        %v3072 = vrot.slane %v3071, 4
        %v3073 = vrot.slane %v2206, 5
        %v3074 = vsel %vm1347, %v3072, %v3073
        %v3075 = vrot.slane %v3073, 4
        %v3076 = vrot.slane %v2207, 5
        %v3077 = vsel %vm1347, %v3075, %v3076
        %v3078 = vrot.slane %v2936, 5
        %v3079 = vrot.slane %v3078, 4
        %v3080 = vrot.slane %v2209, 5
        %v3081 = vsel %vm1347, %v3079, %v3080
        %v3082 = vrot.slane %v3080, 4
        %v3083 = vrot.slane %v2210, 5
        %v3084 = vsel %vm1347, %v3082, %v3083
        %v3085 = vrot.slane %v2937, 5
        %v3086 = vrot.slane %v3085, 4
        %v3087 = vrot.slane %v2212, 5
        %v3088 = vsel %vm1347, %v3086, %v3087
        %v3089 = vrot.slane %v3087, 4
        %v3090 = vrot.slane %v2213, 5
        %v3091 = vsel %vm1347, %v3089, %v3090
        %v3092 = vrot.slane %v2938, 5
        %v3093 = vrot.slane %v3092, 4
        %v3094 = vrot.slane %v2215, 5
        %v3095 = vsel %vm1347, %v3093, %v3094
        %v3096 = vrot.slane %v3094, 4
        %v3097 = vrot.slane %v2216, 5
        %v3098 = vsel %vm1347, %v3096, %v3097
        %s3099 = scalar_lea.vmem [#allocation4], 320
        %v3100 = vld [vmem:[%s3099] sm:$0xf]
        %v3101 = vld [vmem:[%s3099 + $0x4] sm:$0xf]
        %v3102 = vld [vmem:[%s3099 + $0x8] sm:$0xf]
        %v3103 = vld [vmem:[%s3099 + $0xc] sm:$0xf]
        %v3104 = vld [vmem:[%s3099 + $0x10] sm:$0xf]
        %v3105 = vld [vmem:[%s3099 + $0x14] sm:$0xf]
        %v3106 = vld [vmem:[%s3099 + $0x18] sm:$0xf]
        %v3107 = vld [vmem:[%s3099 + $0x1c] sm:$0xf]
        %v3108 = vld [vmem:[%s3099 + $0x20] sm:$0xf]
        %v3109 = vld [vmem:[%s3099 + $0x24] sm:$0xf]
        %v3110 = vld [vmem:[%s3099 + $0x28] sm:$0xf]
        %v3111 = vld [vmem:[%s3099 + $0x2c] sm:$0xf]
        %v3112 = vld [vmem:[%s3099 + $0x30] sm:$0xf]
        %v3113 = vld [vmem:[%s3099 + $0x34] sm:$0xf]
        %v3114 = vld [vmem:[%s3099 + $0x38] sm:$0xf]
        %v3115 = vld [vmem:[%s3099 + $0x3c] sm:$0xf]
        %v3116 = vunpack.c.l.b16 %v2990
        %v3117 = vunpack.c.l.b16 %v2993
        %v3118 = vunpack.c.l.b16 %v2997
        %v3119 = vunpack.c.l.b16 %v3000
        %v3120 = vunpack.c.l.b16 %v3004
        %v3121 = vunpack.c.l.b16 %v3007
        %v3122 = vunpack.c.l.b16 %v3011
        %v3123 = vunpack.c.l.b16 %v3014
        %v3124 = vunpack.c.l.b16 %v3018
        %v3125 = vunpack.c.l.b16 %v3021
        %v3126 = vunpack.c.l.b16 %v3025
        %v3127 = vunpack.c.l.b16 %v3028
        %v3128 = vunpack.c.l.b16 %v3032
        %v3129 = vunpack.c.l.b16 %v3035
        %v3130 = vunpack.c.l.b16 %v3039
        %v3131 = vunpack.c.l.b16 %v3042
        %v3132 = vunpack.c.l.b16 %v3046
        %v3133 = vunpack.c.l.b16 %v3049
        %v3134 = vunpack.c.l.b16 %v3053
        %v3135 = vunpack.c.l.b16 %v3056
        %v3136 = vunpack.c.l.b16 %v3060
        %v3137 = vunpack.c.l.b16 %v3063
        %v3138 = vunpack.c.l.b16 %v3067
        %v3139 = vunpack.c.l.b16 %v3070
        %v3140 = vunpack.c.l.b16 %v3074
        %v3141 = vunpack.c.l.b16 %v3077
        %v3142 = vunpack.c.l.b16 %v3081
        %v3143 = vunpack.c.l.b16 %v3084
        %v3144 = vunpack.c.l.b16 %v3088
        %v3145 = vunpack.c.l.b16 %v3091
        %v3146 = vunpack.c.l.b16 %v3095
        %v3147 = vunpack.c.l.b16 %v3098
        %v3148 = vpack.c.b16 %v3117, %v3116
        %v3149 = vpack.c.b16 %v3119, %v3118
        %v3150 = vpack.c.b16 %v3121, %v3120
        %v3151 = vpack.c.b16 %v3123, %v3122
        %v3152 = vpack.c.b16 %v3125, %v3124
        %v3153 = vpack.c.b16 %v3127, %v3126
        %v3154 = vpack.c.b16 %v3129, %v3128
        %v3155 = vpack.c.b16 %v3131, %v3130
        %v3156 = vpack.c.b16 %v3133, %v3132
        %v3157 = vpack.c.b16 %v3135, %v3134
        %v3158 = vpack.c.b16 %v3137, %v3136
        %v3159 = vpack.c.b16 %v3139, %v3138
        %v3160 = vpack.c.b16 %v3141, %v3140
        %v3161 = vpack.c.b16 %v3143, %v3142
        %v3162 = vpack.c.b16 %v3145, %v3144
        %v3163 = vpack.c.b16 %v3147, %v3146
        %v3196 = vunpack.c.l.b16 %v3100
        %v3197 = vunpack.c.l.b16 %v3101
        %v3198 = vunpack.c.l.b16 %v3102
        %v3199 = vunpack.c.l.b16 %v3103
        %v3200 = vunpack.c.l.b16 %v3104
        %v3201 = vunpack.c.l.b16 %v3105
        %v3202 = vunpack.c.l.b16 %v3106
        %v3203 = vunpack.c.l.b16 %v3107
        %v3204 = vunpack.c.l.b16 %v3108
        %v3205 = vunpack.c.l.b16 %v3109
        %v3206 = vunpack.c.l.b16 %v3110
        %v3207 = vunpack.c.l.b16 %v3111
        %v3208 = vunpack.c.l.b16 %v3112
        %v3209 = vunpack.c.l.b16 %v3113
        %v3210 = vunpack.c.l.b16 %v3114
        %v3211 = vunpack.c.l.b16 %v3115
        %v3212 = vpack.c.b16 %v3197, %v3196
        %v3213 = vpack.c.b16 %v3199, %v3198
        %v3214 = vpack.c.b16 %v3201, %v3200
        %v3215 = vpack.c.b16 %v3203, %v3202
        %v3216 = vpack.c.b16 %v3205, %v3204
        %v3217 = vpack.c.b16 %v3207, %v3206
        %v3218 = vpack.c.b16 %v3209, %v3208
        %v3219 = vpack.c.b16 %v3211, %v3210
        %3228 = vmatprep.subr.bf16.mxu0 0
        %3229 = vmatpush1.bf16.msra.mxu0 %v3212
        %3230 = vmatprep.subr.bf16.mxu0 0
        %3231 = vmatpush1.bf16.msra.mxu0 %v3213
        %3232 = vmatprep.subr.bf16.mxu0 0
        %3233 = vmatpush1.bf16.msra.mxu0 %v3214
        %3234 = vmatprep.subr.bf16.mxu0 0
        %3235 = vmatpush1.bf16.msra.mxu0 %v3215
        %3236 = vmatprep.subr.bf16.mxu0 0
        %3237 = vmatpush1.bf16.msra.mxu0 %v3216
        %3238 = vmatprep.subr.bf16.mxu0 0
        %3239 = vmatpush1.bf16.msra.mxu0 %v3217
        %3240 = vmatprep.subr.bf16.mxu0 0
        %3241 = vmatpush1.bf16.msra.mxu0 %v3218
        %3242 = vmatprep.subr.bf16.mxu0 0
        %3243 = vmatpush1.bf16.msra.mxu0 %v3219
        %3244 = vmatprep.subr.bf16.mxu0 0
        %3245 = vmatpush1.bf16.msra.mxu0 0
        %3246 = vmatprep.subr.bf16.mxu0 0
        %3247 = vmatpush1.bf16.msra.mxu0 0
        %3248 = vmatprep.subr.bf16.mxu0 0
        %3249 = vmatpush1.bf16.msra.mxu0 0
        %3250 = vmatprep.subr.bf16.mxu0 0
        %3251 = vmatpush1.bf16.msra.mxu0 0
        %3252 = vmatprep.subr.bf16.mxu0 0
        %3253 = vmatpush1.bf16.msra.mxu0 0
        %3254 = vmatprep.subr.bf16.mxu0 0
        %3255 = vmatpush1.bf16.msra.mxu0 0
        %3256 = vmatprep.subr.bf16.mxu0 0
        %3257 = vmatpush1.bf16.msra.mxu0 0
        %3258 = vmatprep.subr.bf16.mxu0 0
        %3259 = vmatpush1.bf16.msra.mxu0 0
        %3260 = vmatprep.mubr.bf16.mxu0 0
        %3261 = vmatmul.mubr.bf16.gmra.mrb[0].mxu0 %v3148
        %v3262 = vpop.f32.mrb[0].mxu0
        %v3263 = vadd.f32 0.0, %v3262
        %v3264 = vpop.f32.mrb[0].mxu0
        %v3265 = vpop.f32.mrb[0].mxu0
        %v3266 = vadd.f32 0.0, %v3265
        %v3267 = vpop.f32.mrb[0].mxu0
        %3268 = vmatprep.mubr.bf16.mxu0 0
        %3269 = vmatmul.mubr.bf16.gmra.mrb[0].mxu0 %v3149
        %v3270 = vpop.f32.mrb[0].mxu0
        %v3271 = vadd.f32 0.0, %v3270
        %v3272 = vpop.f32.mrb[0].mxu0
        %v3273 = vpop.f32.mrb[0].mxu0
        %v3274 = vadd.f32 0.0, %v3273
        %v3275 = vpop.f32.mrb[0].mxu0
        %3276 = vmatprep.mubr.bf16.mxu0 0
        %3277 = vmatmul.mubr.bf16.gmra.mrb[0].mxu0 %v3150
        %v3278 = vpop.f32.mrb[0].mxu0
        %v3279 = vadd.f32 0.0, %v3278
        %v3280 = vpop.f32.mrb[0].mxu0
        %v3281 = vpop.f32.mrb[0].mxu0
        %v3282 = vadd.f32 0.0, %v3281
        %v3283 = vpop.f32.mrb[0].mxu0
        %3284 = vmatprep.mubr.bf16.mxu0 0
        %3285 = vmatmul.mubr.bf16.gmra.mrb[0].mxu0 %v3151
        %v3286 = vpop.f32.mrb[0].mxu0
        %v3287 = vadd.f32 0.0, %v3286
        %v3288 = vpop.f32.mrb[0].mxu0
        %v3289 = vpop.f32.mrb[0].mxu0
        %v3290 = vadd.f32 0.0, %v3289
        %v3291 = vpop.f32.mrb[0].mxu0
        %3292 = vmatprep.mubr.bf16.mxu0 0
        %3293 = vmatmul.mubr.bf16.gmra.mrb[0].mxu0 %v3152
        %v3294 = vpop.f32.mrb[0].mxu0
        %v3295 = vadd.f32 0.0, %v3294
        %v3296 = vpop.f32.mrb[0].mxu0
        %v3297 = vpop.f32.mrb[0].mxu0
        %v3298 = vadd.f32 0.0, %v3297
        %v3299 = vpop.f32.mrb[0].mxu0
        %3300 = vmatprep.mubr.bf16.mxu0 0
        %3301 = vmatmul.mubr.bf16.gmra.mrb[0].mxu0 %v3153
        %v3302 = vpop.f32.mrb[0].mxu0
        %v3303 = vadd.f32 0.0, %v3302
        %v3304 = vpop.f32.mrb[0].mxu0
        %v3305 = vpop.f32.mrb[0].mxu0
        %v3306 = vadd.f32 0.0, %v3305
        %v3307 = vpop.f32.mrb[0].mxu0
        %3308 = vmatprep.mubr.bf16.mxu0 0
        %3309 = vmatmul.mubr.bf16.gmra.mrb[0].mxu0 %v3154
        %v3310 = vpop.f32.mrb[0].mxu0
        %v3311 = vadd.f32 0.0, %v3310
        %v3312 = vpop.f32.mrb[0].mxu0
        %v3313 = vpop.f32.mrb[0].mxu0
        %v3314 = vadd.f32 0.0, %v3313
        %v3315 = vpop.f32.mrb[0].mxu0
        %3316 = vmatprep.mubr.bf16.mxu0 0
        %3317 = vmatmul.mubr.bf16.gmra.mrb[0].mxu0 %v3155
        %v3318 = vpop.f32.mrb[0].mxu0
        %v3319 = vadd.f32 0.0, %v3318
        %v3320 = vpop.f32.mrb[0].mxu0
        %v3321 = vpop.f32.mrb[0].mxu0
        %v3322 = vadd.f32 0.0, %v3321
        %v3323 = vpop.f32.mrb[0].mxu0
        %3324 = vmatprep.mubr.bf16.mxu0 0
        %3325 = vmatmul.mubr.bf16.gmra.mrb[0].mxu0 %v3156
        %v3326 = vpop.f32.mrb[0].mxu0
        %v3327 = vadd.f32 0.0, %v3326
        %v3328 = vpop.f32.mrb[0].mxu0
        %v3329 = vpop.f32.mrb[0].mxu0
        %v3330 = vadd.f32 0.0, %v3329
        %v3331 = vpop.f32.mrb[0].mxu0
        %3332 = vmatprep.mubr.bf16.mxu0 0
        %3333 = vmatmul.mubr.bf16.gmra.mrb[0].mxu0 %v3157
        %v3334 = vpop.f32.mrb[0].mxu0
        %v3335 = vadd.f32 0.0, %v3334
        %v3336 = vpop.f32.mrb[0].mxu0
        %v3337 = vpop.f32.mrb[0].mxu0
        %v3338 = vadd.f32 0.0, %v3337
        %v3339 = vpop.f32.mrb[0].mxu0
        %3340 = vmatprep.mubr.bf16.mxu0 0
        %3341 = vmatmul.mubr.bf16.gmra.mrb[0].mxu0 %v3158
        %v3342 = vpop.f32.mrb[0].mxu0
        %v3343 = vadd.f32 0.0, %v3342
        %v3344 = vpop.f32.mrb[0].mxu0
        %v3345 = vpop.f32.mrb[0].mxu0
        %v3346 = vadd.f32 0.0, %v3345
        %v3347 = vpop.f32.mrb[0].mxu0
        %3348 = vmatprep.mubr.bf16.mxu0 0
        %3349 = vmatmul.mubr.bf16.gmra.mrb[0].mxu0 %v3159
        %v3350 = vpop.f32.mrb[0].mxu0
        %v3351 = vadd.f32 0.0, %v3350
        %v3352 = vpop.f32.mrb[0].mxu0
        %v3353 = vpop.f32.mrb[0].mxu0
        %v3354 = vadd.f32 0.0, %v3353
        %v3355 = vpop.f32.mrb[0].mxu0
        %3356 = vmatprep.mubr.bf16.mxu0 0
        %3357 = vmatmul.mubr.bf16.gmra.mrb[0].mxu0 %v3160
        %v3358 = vpop.f32.mrb[0].mxu0
        %v3359 = vadd.f32 0.0, %v3358
        %v3360 = vpop.f32.mrb[0].mxu0
        %v3361 = vpop.f32.mrb[0].mxu0
        %v3362 = vadd.f32 0.0, %v3361
        %v3363 = vpop.f32.mrb[0].mxu0
        %3364 = vmatprep.mubr.bf16.mxu0 0
        %3365 = vmatmul.mubr.bf16.gmra.mrb[0].mxu0 %v3161
        %v3366 = vpop.f32.mrb[0].mxu0
        %v3367 = vadd.f32 0.0, %v3366
        %v3368 = vpop.f32.mrb[0].mxu0
        %v3369 = vpop.f32.mrb[0].mxu0
        %v3370 = vadd.f32 0.0, %v3369
        %v3371 = vpop.f32.mrb[0].mxu0
        %3372 = vmatprep.mubr.bf16.mxu0 0
        %3373 = vmatmul.mubr.bf16.gmra.mrb[0].mxu0 %v3162
        %v3374 = vpop.f32.mrb[0].mxu0
        %v3375 = vadd.f32 0.0, %v3374
        %v3376 = vpop.f32.mrb[0].mxu0
        %v3377 = vpop.f32.mrb[0].mxu0
        %v3378 = vadd.f32 0.0, %v3377
        %v3379 = vpop.f32.mrb[0].mxu0
        %3380 = vmatprep.mubr.bf16.mxu0 0
        %3381 = vmatmul.mubr.bf16.gmra.mrb[0].mxu0 %v3163
        %v3382 = vpop.f32.mrb[0].mxu0
        %v3383 = vadd.f32 0.0, %v3382
        %v3384 = vpop.f32.mrb[0].mxu0
        %v3385 = vpop.f32.mrb[0].mxu0
        %v3386 = vadd.f32 0.0, %v3385
        %v3387 = vpop.f32.mrb[0].mxu0
        %3388 = vdwg.mxu0
        %v3389 = vadd.f32 %v2891, %v3263
        %v3390 = vadd.f32 %v2892, %v3266
        %v3391 = vadd.f32 %v2893, %v3271
        %v3392 = vadd.f32 %v2894, %v3274
        %v3393 = vadd.f32 %v2895, %v3279
        %v3394 = vadd.f32 %v2896, %v3282
        %v3395 = vadd.f32 %v2897, %v3287
        %v3396 = vadd.f32 %v2898, %v3290
        %v3397 = vadd.f32 %v2899, %v3295
        %v3398 = vadd.f32 %v2900, %v3298
        %v3399 = vadd.f32 %v2901, %v3303
        %v3400 = vadd.f32 %v2902, %v3306
        %v3401 = vadd.f32 %v2903, %v3311
        %v3402 = vadd.f32 %v2904, %v3314
        %v3403 = vadd.f32 %v2905, %v3319
        %v3404 = vadd.f32 %v2906, %v3322
        %v3405 = vadd.f32 %v2907, %v3327
        %v3406 = vadd.f32 %v2908, %v3330
        %v3407 = vadd.f32 %v2909, %v3335
        %v3408 = vadd.f32 %v2910, %v3338
        %v3409 = vadd.f32 %v2911, %v3343
        %v3410 = vadd.f32 %v2912, %v3346
        %v3411 = vadd.f32 %v2913, %v3351
        %v3412 = vadd.f32 %v2914, %v3354
        %v3413 = vadd.f32 %v2915, %v3359
        %v3414 = vadd.f32 %v2916, %v3362
        %v3415 = vadd.f32 %v2917, %v3367
        %v3416 = vadd.f32 %v2918, %v3370
        %v3417 = vadd.f32 %v2919, %v3375
        %v3418 = vadd.f32 %v2920, %v3378
        %v3419 = vadd.f32 %v2921, %v3383
        %v3420 = vadd.f32 %v2922, %v3386
        %s3421 = scalar_lea.vmem [#allocation2], 24
        %v3422 = vld [vmem:[%s3421] sm:$0xf]
        %v3423 = vld [vmem:[%s3421 + $0x4] sm:$0xf]
        %v3424 = vld [vmem:[%s3421 + $0xc] sm:$0xf]
        %v3425 = vld [vmem:[%s3421 + $0x10] sm:$0xf]
        %v3426 = vld [vmem:[%s3421 + $0x18] sm:$0xf]
        %v3427 = vld [vmem:[%s3421 + $0x1c] sm:$0xf]
        %v3428 = vld [vmem:[%s3421 + $0x24] sm:$0xf]
        %v3429 = vld [vmem:[%s3421 + $0x28] sm:$0xf]
        %v3430 = vld [vmem:[%s3421 + $0x30] sm:$0xf]
        %v3431 = vld [vmem:[%s3421 + $0x34] sm:$0xf]
        %v3432 = vld [vmem:[%s3421 + $0x3c] sm:$0xf]
        %v3433 = vld [vmem:[%s3421 + $0x40] sm:$0xf]
        %v3434 = vld [vmem:[%s3421 + $0x48] sm:$0xf]
        %v3435 = vld [vmem:[%s3421 + $0x4c] sm:$0xf]
        %v3436 = vld [vmem:[%s3421 + $0x54] sm:$0xf]
        %v3437 = vld [vmem:[%s3421 + $0x58] sm:$0xf]
        %v3438 = vld [vmem:[%s3421 + $0x60] sm:$0xf]
        %v3439 = vld [vmem:[%s3421 + $0x64] sm:$0xf]
        %v3440 = vld [vmem:[%s3421 + $0x6c] sm:$0xf]
        %v3441 = vld [vmem:[%s3421 + $0x70] sm:$0xf]
        %v3442 = vld [vmem:[%s3421 + $0x78] sm:$0xf]
        %v3443 = vld [vmem:[%s3421 + $0x7c] sm:$0xf]
        %v3444 = vld [vmem:[%s3421 + $0x84] sm:$0xf]
        %v3445 = vld [vmem:[%s3421 + $0x88] sm:$0xf]
        %v3446 = vld [vmem:[%s3421 + $0x90] sm:$0xf]
        %v3447 = vld [vmem:[%s3421 + $0x94] sm:$0xf]
        %v3448 = vld [vmem:[%s3421 + $0x9c] sm:$0xf]
        %v3449 = vld [vmem:[%s3421 + $0xa0] sm:$0xf]
        %v3450 = vld [vmem:[%s3421 + $0xa8] sm:$0xf]
        %v3451 = vld [vmem:[%s3421 + $0xac] sm:$0xf]
        %v3452 = vld [vmem:[%s3421 + $0xb4] sm:$0xf]
        %v3453 = vld [vmem:[%s3421 + $0xb8] sm:$0xf]
        %s3454 = scalar_lea.vmem [#allocation4], 384
        %v3455 = vld [vmem:[%s3454] sm:$0xf]
        %v3456 = vld [vmem:[%s3454 + $0x4] sm:$0xf]
        %v3457 = vld [vmem:[%s3454 + $0x8] sm:$0xf]
        %v3458 = vld [vmem:[%s3454 + $0xc] sm:$0xf]
        %v3459 = vld [vmem:[%s3454 + $0x10] sm:$0xf]
        %v3460 = vld [vmem:[%s3454 + $0x14] sm:$0xf]
        %v3461 = vld [vmem:[%s3454 + $0x18] sm:$0xf]
        %v3462 = vld [vmem:[%s3454 + $0x1c] sm:$0xf]
        %v3463 = vld [vmem:[%s3454 + $0x20] sm:$0xf]
        %v3464 = vld [vmem:[%s3454 + $0x24] sm:$0xf]
        %v3465 = vld [vmem:[%s3454 + $0x28] sm:$0xf]
        %v3466 = vld [vmem:[%s3454 + $0x2c] sm:$0xf]
        %v3467 = vld [vmem:[%s3454 + $0x30] sm:$0xf]
        %v3468 = vld [vmem:[%s3454 + $0x34] sm:$0xf]
        %v3469 = vld [vmem:[%s3454 + $0x38] sm:$0xf]
        %v3470 = vld [vmem:[%s3454 + $0x3c] sm:$0xf]
        %v3503 = vunpack.c.l.b16 %v3422
        %v3504 = vunpack.c.l.b16 %v3423
        %v3505 = vunpack.c.l.b16 %v3424
        %v3506 = vunpack.c.l.b16 %v3425
        %v3507 = vunpack.c.l.b16 %v3426
        %v3508 = vunpack.c.l.b16 %v3427
        %v3509 = vunpack.c.l.b16 %v3428
        %v3510 = vunpack.c.l.b16 %v3429
        %v3511 = vunpack.c.l.b16 %v3430
        %v3512 = vunpack.c.l.b16 %v3431
        %v3513 = vunpack.c.l.b16 %v3432
        %v3514 = vunpack.c.l.b16 %v3433
        %v3515 = vunpack.c.l.b16 %v3434
        %v3516 = vunpack.c.l.b16 %v3435
        %v3517 = vunpack.c.l.b16 %v3436
        %v3518 = vunpack.c.l.b16 %v3437
        %v3519 = vunpack.c.l.b16 %v3438
        %v3520 = vunpack.c.l.b16 %v3439
        %v3521 = vunpack.c.l.b16 %v3440
        %v3522 = vunpack.c.l.b16 %v3441
        %v3523 = vunpack.c.l.b16 %v3442
        %v3524 = vunpack.c.l.b16 %v3443
        %v3525 = vunpack.c.l.b16 %v3444
        %v3526 = vunpack.c.l.b16 %v3445
        %v3527 = vunpack.c.l.b16 %v3446
        %v3528 = vunpack.c.l.b16 %v3447
        %v3529 = vunpack.c.l.b16 %v3448
        %v3530 = vunpack.c.l.b16 %v3449
        %v3531 = vunpack.c.l.b16 %v3450
        %v3532 = vunpack.c.l.b16 %v3451
        %v3533 = vunpack.c.l.b16 %v3452
        %v3534 = vunpack.c.l.b16 %v3453
        %v3535 = vpack.c.b16 %v3504, %v3503
        %v3536 = vpack.c.b16 %v3506, %v3505
        %v3537 = vpack.c.b16 %v3508, %v3507
        %v3538 = vpack.c.b16 %v3510, %v3509
        %v3539 = vpack.c.b16 %v3512, %v3511
        %v3540 = vpack.c.b16 %v3514, %v3513
        %v3541 = vpack.c.b16 %v3516, %v3515
        %v3542 = vpack.c.b16 %v3518, %v3517
        %v3543 = vpack.c.b16 %v3520, %v3519
        %v3544 = vpack.c.b16 %v3522, %v3521
        %v3545 = vpack.c.b16 %v3524, %v3523
        %v3546 = vpack.c.b16 %v3526, %v3525
        %v3547 = vpack.c.b16 %v3528, %v3527
        %v3548 = vpack.c.b16 %v3530, %v3529
        %v3549 = vpack.c.b16 %v3532, %v3531
        %v3550 = vpack.c.b16 %v3534, %v3533
        %v3583 = vunpack.c.l.b16 %v3455
        %v3584 = vunpack.c.l.b16 %v3456
        %v3585 = vunpack.c.l.b16 %v3457
        %v3586 = vunpack.c.l.b16 %v3458
        %v3587 = vunpack.c.l.b16 %v3459
        %v3588 = vunpack.c.l.b16 %v3460
        %v3589 = vunpack.c.l.b16 %v3461
        %v3590 = vunpack.c.l.b16 %v3462
        %v3591 = vunpack.c.l.b16 %v3463
        %v3592 = vunpack.c.l.b16 %v3464
        %v3593 = vunpack.c.l.b16 %v3465
        %v3594 = vunpack.c.l.b16 %v3466
        %v3595 = vunpack.c.l.b16 %v3467
        %v3596 = vunpack.c.l.b16 %v3468
        %v3597 = vunpack.c.l.b16 %v3469
        %v3598 = vunpack.c.l.b16 %v3470
        %v3599 = vpack.c.b16 %v3584, %v3583
        %v3600 = vpack.c.b16 %v3586, %v3585
        %v3601 = vpack.c.b16 %v3588, %v3587
        %v3602 = vpack.c.b16 %v3590, %v3589
        %v3603 = vpack.c.b16 %v3592, %v3591
        %v3604 = vpack.c.b16 %v3594, %v3593
        %v3605 = vpack.c.b16 %v3596, %v3595
        %v3606 = vpack.c.b16 %v3598, %v3597
        %3615 = vmatprep.subr.bf16.mxu0 0
        %3616 = vmatpush1.bf16.msra.mxu0 %v3599
        %3617 = vmatprep.subr.bf16.mxu0 0
        %3618 = vmatpush1.bf16.msra.mxu0 %v3600
        %3619 = vmatprep.subr.bf16.mxu0 0
        %3620 = vmatpush1.bf16.msra.mxu0 %v3601
        %3621 = vmatprep.subr.bf16.mxu0 0
        %3622 = vmatpush1.bf16.msra.mxu0 %v3602
        %3623 = vmatprep.subr.bf16.mxu0 0
        %3624 = vmatpush1.bf16.msra.mxu0 %v3603
        %3625 = vmatprep.subr.bf16.mxu0 0
        %3626 = vmatpush1.bf16.msra.mxu0 %v3604
        %3627 = vmatprep.subr.bf16.mxu0 0
        %3628 = vmatpush1.bf16.msra.mxu0 %v3605
        %3629 = vmatprep.subr.bf16.mxu0 0
        %3630 = vmatpush1.bf16.msra.mxu0 %v3606
        %3631 = vmatprep.subr.bf16.mxu0 0
        %3632 = vmatpush1.bf16.msra.mxu0 0
        %3633 = vmatprep.subr.bf16.mxu0 0
        %3634 = vmatpush1.bf16.msra.mxu0 0
        %3635 = vmatprep.subr.bf16.mxu0 0
        %3636 = vmatpush1.bf16.msra.mxu0 0
        %3637 = vmatprep.subr.bf16.mxu0 0
        %3638 = vmatpush1.bf16.msra.mxu0 0
        %3639 = vmatprep.subr.bf16.mxu0 0
        %3640 = vmatpush1.bf16.msra.mxu0 0
        %3641 = vmatprep.subr.bf16.mxu0 0
        %3642 = vmatpush1.bf16.msra.mxu0 0
        %3643 = vmatprep.subr.bf16.mxu0 0
        %3644 = vmatpush1.bf16.msra.mxu0 0
        %3645 = vmatprep.subr.bf16.mxu0 0
        %3646 = vmatpush1.bf16.msra.mxu0 0
        %3647 = vmatprep.mubr.bf16.mxu0 0
        %3648 = vmatmul.mubr.bf16.gmra.mrb[0].mxu0 %v3535
        %v3649 = vpop.f32.mrb[0].mxu0
        %v3650 = vadd.f32 0.0, %v3649
        %v3651 = vpop.f32.mrb[0].mxu0
        %v3652 = vpop.f32.mrb[0].mxu0
        %v3653 = vadd.f32 0.0, %v3652
        %v3654 = vpop.f32.mrb[0].mxu0
        %3655 = vmatprep.mubr.bf16.mxu0 0
        %3656 = vmatmul.mubr.bf16.gmra.mrb[0].mxu0 %v3536
        %v3657 = vpop.f32.mrb[0].mxu0
        %v3658 = vadd.f32 0.0, %v3657
        %v3659 = vpop.f32.mrb[0].mxu0
        %v3660 = vpop.f32.mrb[0].mxu0
        %v3661 = vadd.f32 0.0, %v3660
        %v3662 = vpop.f32.mrb[0].mxu0
        %3663 = vmatprep.mubr.bf16.mxu0 0
        %3664 = vmatmul.mubr.bf16.gmra.mrb[0].mxu0 %v3537
        %v3665 = vpop.f32.mrb[0].mxu0
        %v3666 = vadd.f32 0.0, %v3665
        %v3667 = vpop.f32.mrb[0].mxu0
        %v3668 = vpop.f32.mrb[0].mxu0
        %v3669 = vadd.f32 0.0, %v3668
        %v3670 = vpop.f32.mrb[0].mxu0
        %3671 = vmatprep.mubr.bf16.mxu0 0
        %3672 = vmatmul.mubr.bf16.gmra.mrb[0].mxu0 %v3538
        %v3673 = vpop.f32.mrb[0].mxu0
        %v3674 = vadd.f32 0.0, %v3673
        %v3675 = vpop.f32.mrb[0].mxu0
        %v3676 = vpop.f32.mrb[0].mxu0
        %v3677 = vadd.f32 0.0, %v3676
        %v3678 = vpop.f32.mrb[0].mxu0
        %3679 = vmatprep.mubr.bf16.mxu0 0
        %3680 = vmatmul.mubr.bf16.gmra.mrb[0].mxu0 %v3539
        %v3681 = vpop.f32.mrb[0].mxu0
        %v3682 = vadd.f32 0.0, %v3681
        %v3683 = vpop.f32.mrb[0].mxu0
        %v3684 = vpop.f32.mrb[0].mxu0
        %v3685 = vadd.f32 0.0, %v3684
        %v3686 = vpop.f32.mrb[0].mxu0
        %3687 = vmatprep.mubr.bf16.mxu0 0
        %3688 = vmatmul.mubr.bf16.gmra.mrb[0].mxu0 %v3540
        %v3689 = vpop.f32.mrb[0].mxu0
        %v3690 = vadd.f32 0.0, %v3689
        %v3691 = vpop.f32.mrb[0].mxu0
        %v3692 = vpop.f32.mrb[0].mxu0
        %v3693 = vadd.f32 0.0, %v3692
        %v3694 = vpop.f32.mrb[0].mxu0
        %3695 = vmatprep.mubr.bf16.mxu0 0
        %3696 = vmatmul.mubr.bf16.gmra.mrb[0].mxu0 %v3541
        %v3697 = vpop.f32.mrb[0].mxu0
        %v3698 = vadd.f32 0.0, %v3697
        %v3699 = vpop.f32.mrb[0].mxu0
        %v3700 = vpop.f32.mrb[0].mxu0
        %v3701 = vadd.f32 0.0, %v3700
        %v3702 = vpop.f32.mrb[0].mxu0
        %3703 = vmatprep.mubr.bf16.mxu0 0
        %3704 = vmatmul.mubr.bf16.gmra.mrb[0].mxu0 %v3542
        %v3705 = vpop.f32.mrb[0].mxu0
        %v3706 = vadd.f32 0.0, %v3705
        %v3707 = vpop.f32.mrb[0].mxu0
        %v3708 = vpop.f32.mrb[0].mxu0
        %v3709 = vadd.f32 0.0, %v3708
        %v3710 = vpop.f32.mrb[0].mxu0
        %3711 = vmatprep.mubr.bf16.mxu0 0
        %3712 = vmatmul.mubr.bf16.gmra.mrb[0].mxu0 %v3543
        %v3713 = vpop.f32.mrb[0].mxu0
        %v3714 = vadd.f32 0.0, %v3713
        %v3715 = vpop.f32.mrb[0].mxu0
        %v3716 = vpop.f32.mrb[0].mxu0
        %v3717 = vadd.f32 0.0, %v3716
        %v3718 = vpop.f32.mrb[0].mxu0
        %3719 = vmatprep.mubr.bf16.mxu0 0
        %3720 = vmatmul.mubr.bf16.gmra.mrb[0].mxu0 %v3544
        %v3721 = vpop.f32.mrb[0].mxu0
        %v3722 = vadd.f32 0.0, %v3721
        %v3723 = vpop.f32.mrb[0].mxu0
        %v3724 = vpop.f32.mrb[0].mxu0
        %v3725 = vadd.f32 0.0, %v3724
        %v3726 = vpop.f32.mrb[0].mxu0
        %3727 = vmatprep.mubr.bf16.mxu0 0
        %3728 = vmatmul.mubr.bf16.gmra.mrb[0].mxu0 %v3545
        %v3729 = vpop.f32.mrb[0].mxu0
        %v3730 = vadd.f32 0.0, %v3729
        %v3731 = vpop.f32.mrb[0].mxu0
        %v3732 = vpop.f32.mrb[0].mxu0
        %v3733 = vadd.f32 0.0, %v3732
        %v3734 = vpop.f32.mrb[0].mxu0
        %3735 = vmatprep.mubr.bf16.mxu0 0
        %3736 = vmatmul.mubr.bf16.gmra.mrb[0].mxu0 %v3546
        %v3737 = vpop.f32.mrb[0].mxu0
        %v3738 = vadd.f32 0.0, %v3737
        %v3739 = vpop.f32.mrb[0].mxu0
        %v3740 = vpop.f32.mrb[0].mxu0
        %v3741 = vadd.f32 0.0, %v3740
        %v3742 = vpop.f32.mrb[0].mxu0
        %3743 = vmatprep.mubr.bf16.mxu0 0
        %3744 = vmatmul.mubr.bf16.gmra.mrb[0].mxu0 %v3547
        %v3745 = vpop.f32.mrb[0].mxu0
        %v3746 = vadd.f32 0.0, %v3745
        %v3747 = vpop.f32.mrb[0].mxu0
        %v3748 = vpop.f32.mrb[0].mxu0
        %v3749 = vadd.f32 0.0, %v3748
        %v3750 = vpop.f32.mrb[0].mxu0
        %3751 = vmatprep.mubr.bf16.mxu0 0
        %3752 = vmatmul.mubr.bf16.gmra.mrb[0].mxu0 %v3548
        %v3753 = vpop.f32.mrb[0].mxu0
        %v3754 = vadd.f32 0.0, %v3753
        %v3755 = vpop.f32.mrb[0].mxu0
        %v3756 = vpop.f32.mrb[0].mxu0
        %v3757 = vadd.f32 0.0, %v3756
        %v3758 = vpop.f32.mrb[0].mxu0
        %3759 = vmatprep.mubr.bf16.mxu0 0
        %3760 = vmatmul.mubr.bf16.gmra.mrb[0].mxu0 %v3549
        %v3761 = vpop.f32.mrb[0].mxu0
        %v3762 = vadd.f32 0.0, %v3761
        %v3763 = vpop.f32.mrb[0].mxu0
        %v3764 = vpop.f32.mrb[0].mxu0
        %v3765 = vadd.f32 0.0, %v3764
        %v3766 = vpop.f32.mrb[0].mxu0
        %3767 = vmatprep.mubr.bf16.mxu0 0
        %3768 = vmatmul.mubr.bf16.gmra.mrb[0].mxu0 %v3550
        %v3769 = vpop.f32.mrb[0].mxu0
        %v3770 = vadd.f32 0.0, %v3769
        %v3771 = vpop.f32.mrb[0].mxu0
        %v3772 = vpop.f32.mrb[0].mxu0
        %v3773 = vadd.f32 0.0, %v3772
        %v3774 = vpop.f32.mrb[0].mxu0
        %3775 = vdwg.mxu0
        %v3776 = vadd.f32 %v3389, %v3650
        %v3777 = vadd.f32 %v3390, %v3653
        %v3778 = vadd.f32 %v3391, %v3658
        %v3779 = vadd.f32 %v3392, %v3661
        %v3780 = vadd.f32 %v3393, %v3666
        %v3781 = vadd.f32 %v3394, %v3669
        %v3782 = vadd.f32 %v3395, %v3674
        %v3783 = vadd.f32 %v3396, %v3677
        %v3784 = vadd.f32 %v3397, %v3682
        %v3785 = vadd.f32 %v3398, %v3685
        %v3786 = vadd.f32 %v3399, %v3690
        %v3787 = vadd.f32 %v3400, %v3693
        %v3788 = vadd.f32 %v3401, %v3698
        %v3789 = vadd.f32 %v3402, %v3701
        %v3790 = vadd.f32 %v3403, %v3706
        %v3791 = vadd.f32 %v3404, %v3709
        %v3792 = vadd.f32 %v3405, %v3714
        %v3793 = vadd.f32 %v3406, %v3717
        %v3794 = vadd.f32 %v3407, %v3722
        %v3795 = vadd.f32 %v3408, %v3725
        %v3796 = vadd.f32 %v3409, %v3730
        %v3797 = vadd.f32 %v3410, %v3733
        %v3798 = vadd.f32 %v3411, %v3738
        %v3799 = vadd.f32 %v3412, %v3741
        %v3800 = vadd.f32 %v3413, %v3746
        %v3801 = vadd.f32 %v3414, %v3749
        %v3802 = vadd.f32 %v3415, %v3754
        %v3803 = vadd.f32 %v3416, %v3757
        %v3804 = vadd.f32 %v3417, %v3762
        %v3805 = vadd.f32 %v3418, %v3765
        %v3806 = vadd.f32 %v3419, %v3770
        %v3807 = vadd.f32 %v3420, %v3773
        %v3808 = vld [vmem:[%s3421] sm:$0xf]
        %v3809 = vld [vmem:[%s3421 + $0x4] sm:$0xf]
        %v3810 = vld [vmem:[%s3421 + $0x8] sm:$0x1]
        %v3811 = vld [vmem:[%s3421 + $0xc] sm:$0xf]
        %v3812 = vld [vmem:[%s3421 + $0x10] sm:$0xf]
        %v3813 = vld [vmem:[%s3421 + $0x14] sm:$0x1]
        %v3814 = vld [vmem:[%s3421 + $0x18] sm:$0xf]
        %v3815 = vld [vmem:[%s3421 + $0x1c] sm:$0xf]
        %v3816 = vld [vmem:[%s3421 + $0x20] sm:$0x1]
        %v3817 = vld [vmem:[%s3421 + $0x24] sm:$0xf]
        %v3818 = vld [vmem:[%s3421 + $0x28] sm:$0xf]
        %v3819 = vld [vmem:[%s3421 + $0x2c] sm:$0x1]
        %v3820 = vld [vmem:[%s3421 + $0x30] sm:$0xf]
        %v3821 = vld [vmem:[%s3421 + $0x34] sm:$0xf]
        %v3822 = vld [vmem:[%s3421 + $0x38] sm:$0x1]
        %v3823 = vld [vmem:[%s3421 + $0x3c] sm:$0xf]
        %v3824 = vld [vmem:[%s3421 + $0x40] sm:$0xf]
        %v3825 = vld [vmem:[%s3421 + $0x44] sm:$0x1]
        %v3826 = vld [vmem:[%s3421 + $0x48] sm:$0xf]
        %v3827 = vld [vmem:[%s3421 + $0x4c] sm:$0xf]
        %v3828 = vld [vmem:[%s3421 + $0x50] sm:$0x1]
        %v3829 = vld [vmem:[%s3421 + $0x54] sm:$0xf]
        %v3830 = vld [vmem:[%s3421 + $0x58] sm:$0xf]
        %v3831 = vld [vmem:[%s3421 + $0x5c] sm:$0x1]
        %v3832 = vld [vmem:[%s3421 + $0x60] sm:$0xf]
        %v3833 = vld [vmem:[%s3421 + $0x64] sm:$0xf]
        %v3834 = vld [vmem:[%s3421 + $0x68] sm:$0x1]
        %v3835 = vld [vmem:[%s3421 + $0x6c] sm:$0xf]
        %v3836 = vld [vmem:[%s3421 + $0x70] sm:$0xf]
        %v3837 = vld [vmem:[%s3421 + $0x74] sm:$0x1]
        %v3838 = vld [vmem:[%s3421 + $0x78] sm:$0xf]
        %v3839 = vld [vmem:[%s3421 + $0x7c] sm:$0xf]
        %v3840 = vld [vmem:[%s3421 + $0x80] sm:$0x1]
        %v3841 = vld [vmem:[%s3421 + $0x84] sm:$0xf]
        %v3842 = vld [vmem:[%s3421 + $0x88] sm:$0xf]
        %v3843 = vld [vmem:[%s3421 + $0x8c] sm:$0x1]
        %v3844 = vld [vmem:[%s3421 + $0x90] sm:$0xf]
        %v3845 = vld [vmem:[%s3421 + $0x94] sm:$0xf]
        %v3846 = vld [vmem:[%s3421 + $0x98] sm:$0x1]
        %v3847 = vld [vmem:[%s3421 + $0x9c] sm:$0xf]
        %v3848 = vld [vmem:[%s3421 + $0xa0] sm:$0xf]
        %v3849 = vld [vmem:[%s3421 + $0xa4] sm:$0x1]
        %v3850 = vld [vmem:[%s3421 + $0xa8] sm:$0xf]
        %v3851 = vld [vmem:[%s3421 + $0xac] sm:$0xf]
        %v3852 = vld [vmem:[%s3421 + $0xb0] sm:$0x1]
        %v3853 = vld [vmem:[%s3421 + $0xb4] sm:$0xf]
        %v3854 = vld [vmem:[%s3421 + $0xb8] sm:$0xf]
        %v3855 = vld [vmem:[%s3421 + $0xbc] sm:$0x1]
        %v3857 = vshrl.u32 %v3808, 16
        %v3859 = vrot.slane %v3857, 4
        %v3860 = vshll.u32 %v3808, 16
        %v3862 = vrot.slane %v3860, 5
        %v3863 = vor.u32 %v3859, %v3862
        %v3864 = vrot.slane %v3863, 4
        %v3866 = vshll.u32 %v3809, 16
        %v3868 = vrot.slane %v3866, 5
        %v3869 = vsel %vm317, %v3864, %v3868
        %v3870 = vshrl.u32 %v3809, 16
        %v3872 = vrot.slane %v3870, 4
        %v3873 = vor.u32 %v3872, %v3868
        %v3874 = vrot.slane %v3873, 4
        %v3876 = vshll.u32 %v3810, 16
        %v3878 = vrot.slane %v3876, 5
        %v3879 = vsel %vm317, %v3874, %v3878
        %v3881 = vshrl.u32 %v3811, 16
        %v3883 = vrot.slane %v3881, 4
        %v3884 = vshll.u32 %v3811, 16
        %v3886 = vrot.slane %v3884, 5
        %v3887 = vor.u32 %v3883, %v3886
        %v3888 = vrot.slane %v3887, 4
        %v3890 = vshll.u32 %v3812, 16
        %v3892 = vrot.slane %v3890, 5
        %v3893 = vsel %vm317, %v3888, %v3892
        %v3894 = vshrl.u32 %v3812, 16
        %v3896 = vrot.slane %v3894, 4
        %v3897 = vor.u32 %v3896, %v3892
        %v3898 = vrot.slane %v3897, 4
        %v3900 = vshll.u32 %v3813, 16
        %v3902 = vrot.slane %v3900, 5
        %v3903 = vsel %vm317, %v3898, %v3902
        %v3905 = vshrl.u32 %v3814, 16
        %v3907 = vrot.slane %v3905, 4
        %v3908 = vshll.u32 %v3814, 16
        %v3910 = vrot.slane %v3908, 5
        %v3911 = vor.u32 %v3907, %v3910
        %v3912 = vrot.slane %v3911, 4
        %v3914 = vshll.u32 %v3815, 16
        %v3916 = vrot.slane %v3914, 5
        %v3917 = vsel %vm317, %v3912, %v3916
        %v3918 = vshrl.u32 %v3815, 16
        %v3920 = vrot.slane %v3918, 4
        %v3921 = vor.u32 %v3920, %v3916
        %v3922 = vrot.slane %v3921, 4
        %v3924 = vshll.u32 %v3816, 16
        %v3926 = vrot.slane %v3924, 5
        %v3927 = vsel %vm317, %v3922, %v3926
        %v3929 = vshrl.u32 %v3817, 16
        %v3931 = vrot.slane %v3929, 4
        %v3932 = vshll.u32 %v3817, 16
        %v3934 = vrot.slane %v3932, 5
        %v3935 = vor.u32 %v3931, %v3934
        %v3936 = vrot.slane %v3935, 4
        %v3938 = vshll.u32 %v3818, 16
        %v3940 = vrot.slane %v3938, 5
        %v3941 = vsel %vm317, %v3936, %v3940
        %v3942 = vshrl.u32 %v3818, 16
        %v3944 = vrot.slane %v3942, 4
        %v3945 = vor.u32 %v3944, %v3940
        %v3946 = vrot.slane %v3945, 4
        %v3948 = vshll.u32 %v3819, 16
        %v3950 = vrot.slane %v3948, 5
        %v3951 = vsel %vm317, %v3946, %v3950
        %v3953 = vshrl.u32 %v3820, 16
        %v3955 = vrot.slane %v3953, 4
        %v3956 = vshll.u32 %v3820, 16
        %v3958 = vrot.slane %v3956, 5
        %v3959 = vor.u32 %v3955, %v3958
        %v3960 = vrot.slane %v3959, 4
        %v3962 = vshll.u32 %v3821, 16
        %v3964 = vrot.slane %v3962, 5
        %v3965 = vsel %vm317, %v3960, %v3964
        %v3966 = vshrl.u32 %v3821, 16
        %v3968 = vrot.slane %v3966, 4
        %v3969 = vor.u32 %v3968, %v3964
        %v3970 = vrot.slane %v3969, 4
        %v3972 = vshll.u32 %v3822, 16
        %v3974 = vrot.slane %v3972, 5
        %v3975 = vsel %vm317, %v3970, %v3974
        %v3977 = vshrl.u32 %v3823, 16
        %v3979 = vrot.slane %v3977, 4
        %v3980 = vshll.u32 %v3823, 16
        %v3982 = vrot.slane %v3980, 5
        %v3983 = vor.u32 %v3979, %v3982
        %v3984 = vrot.slane %v3983, 4
        %v3986 = vshll.u32 %v3824, 16
        %v3988 = vrot.slane %v3986, 5
        %v3989 = vsel %vm317, %v3984, %v3988
        %v3990 = vshrl.u32 %v3824, 16
        %v3992 = vrot.slane %v3990, 4
        %v3993 = vor.u32 %v3992, %v3988
        %v3994 = vrot.slane %v3993, 4
        %v3996 = vshll.u32 %v3825, 16
        %v3998 = vrot.slane %v3996, 5
        %v3999 = vsel %vm317, %v3994, %v3998
        %v4001 = vshrl.u32 %v3826, 16
        %v4003 = vrot.slane %v4001, 4
        %v4004 = vshll.u32 %v3826, 16
        %v4006 = vrot.slane %v4004, 5
        %v4007 = vor.u32 %v4003, %v4006
        %v4008 = vrot.slane %v4007, 4
        %v4010 = vshll.u32 %v3827, 16
        %v4012 = vrot.slane %v4010, 5
        %v4013 = vsel %vm317, %v4008, %v4012
        %v4014 = vshrl.u32 %v3827, 16
        %v4016 = vrot.slane %v4014, 4
        %v4017 = vor.u32 %v4016, %v4012
        %v4018 = vrot.slane %v4017, 4
        %v4020 = vshll.u32 %v3828, 16
        %v4022 = vrot.slane %v4020, 5
        %v4023 = vsel %vm317, %v4018, %v4022
        %v4025 = vshrl.u32 %v3829, 16
        %v4027 = vrot.slane %v4025, 4
        %v4028 = vshll.u32 %v3829, 16
        %v4030 = vrot.slane %v4028, 5
        %v4031 = vor.u32 %v4027, %v4030
        %v4032 = vrot.slane %v4031, 4
        %v4034 = vshll.u32 %v3830, 16
        %v4036 = vrot.slane %v4034, 5
        %v4037 = vsel %vm317, %v4032, %v4036
        %v4038 = vshrl.u32 %v3830, 16
        %v4040 = vrot.slane %v4038, 4
        %v4041 = vor.u32 %v4040, %v4036
        %v4042 = vrot.slane %v4041, 4
        %v4044 = vshll.u32 %v3831, 16
        %v4046 = vrot.slane %v4044, 5
        %v4047 = vsel %vm317, %v4042, %v4046
        %v4049 = vshrl.u32 %v3832, 16
        %v4051 = vrot.slane %v4049, 4
        %v4052 = vshll.u32 %v3832, 16
        %v4054 = vrot.slane %v4052, 5
        %v4055 = vor.u32 %v4051, %v4054
        %v4056 = vrot.slane %v4055, 4
        %v4058 = vshll.u32 %v3833, 16
        %v4060 = vrot.slane %v4058, 5
        %v4061 = vsel %vm317, %v4056, %v4060
        %v4062 = vshrl.u32 %v3833, 16
        %v4064 = vrot.slane %v4062, 4
        %v4065 = vor.u32 %v4064, %v4060
        %v4066 = vrot.slane %v4065, 4
        %v4068 = vshll.u32 %v3834, 16
        %v4070 = vrot.slane %v4068, 5
        %v4071 = vsel %vm317, %v4066, %v4070
        %v4073 = vshrl.u32 %v3835, 16
        %v4075 = vrot.slane %v4073, 4
        %v4076 = vshll.u32 %v3835, 16
        %v4078 = vrot.slane %v4076, 5
        %v4079 = vor.u32 %v4075, %v4078
        %v4080 = vrot.slane %v4079, 4
        %v4082 = vshll.u32 %v3836, 16
        %v4084 = vrot.slane %v4082, 5
        %v4085 = vsel %vm317, %v4080, %v4084
        %v4086 = vshrl.u32 %v3836, 16
        %v4088 = vrot.slane %v4086, 4
        %v4089 = vor.u32 %v4088, %v4084
        %v4090 = vrot.slane %v4089, 4
        %v4092 = vshll.u32 %v3837, 16
        %v4094 = vrot.slane %v4092, 5
        %v4095 = vsel %vm317, %v4090, %v4094
        %v4097 = vshrl.u32 %v3838, 16
        %v4099 = vrot.slane %v4097, 4
        %v4100 = vshll.u32 %v3838, 16
        %v4102 = vrot.slane %v4100, 5
        %v4103 = vor.u32 %v4099, %v4102
        %v4104 = vrot.slane %v4103, 4
        %v4106 = vshll.u32 %v3839, 16
        %v4108 = vrot.slane %v4106, 5
        %v4109 = vsel %vm317, %v4104, %v4108
        %v4110 = vshrl.u32 %v3839, 16
        %v4112 = vrot.slane %v4110, 4
        %v4113 = vor.u32 %v4112, %v4108
        %v4114 = vrot.slane %v4113, 4
        %v4116 = vshll.u32 %v3840, 16
        %v4118 = vrot.slane %v4116, 5
        %v4119 = vsel %vm317, %v4114, %v4118
        %v4121 = vshrl.u32 %v3841, 16
        %v4123 = vrot.slane %v4121, 4
        %v4124 = vshll.u32 %v3841, 16
        %v4126 = vrot.slane %v4124, 5
        %v4127 = vor.u32 %v4123, %v4126
        %v4128 = vrot.slane %v4127, 4
        %v4130 = vshll.u32 %v3842, 16
        %v4132 = vrot.slane %v4130, 5
        %v4133 = vsel %vm317, %v4128, %v4132
        %v4134 = vshrl.u32 %v3842, 16
        %v4136 = vrot.slane %v4134, 4
        %v4137 = vor.u32 %v4136, %v4132
        %v4138 = vrot.slane %v4137, 4
        %v4140 = vshll.u32 %v3843, 16
        %v4142 = vrot.slane %v4140, 5
        %v4143 = vsel %vm317, %v4138, %v4142
        %v4145 = vshrl.u32 %v3844, 16
        %v4147 = vrot.slane %v4145, 4
        %v4148 = vshll.u32 %v3844, 16
        %v4150 = vrot.slane %v4148, 5
        %v4151 = vor.u32 %v4147, %v4150
        %v4152 = vrot.slane %v4151, 4
        %v4154 = vshll.u32 %v3845, 16
        %v4156 = vrot.slane %v4154, 5
        %v4157 = vsel %vm317, %v4152, %v4156
        %v4158 = vshrl.u32 %v3845, 16
        %v4160 = vrot.slane %v4158, 4
        %v4161 = vor.u32 %v4160, %v4156
        %v4162 = vrot.slane %v4161, 4
        %v4164 = vshll.u32 %v3846, 16
        %v4166 = vrot.slane %v4164, 5
        %v4167 = vsel %vm317, %v4162, %v4166
        %v4169 = vshrl.u32 %v3847, 16
        %v4171 = vrot.slane %v4169, 4
        %v4172 = vshll.u32 %v3847, 16
        %v4174 = vrot.slane %v4172, 5
        %v4175 = vor.u32 %v4171, %v4174
        %v4176 = vrot.slane %v4175, 4
        %v4178 = vshll.u32 %v3848, 16
        %v4180 = vrot.slane %v4178, 5
        %v4181 = vsel %vm317, %v4176, %v4180
        %v4182 = vshrl.u32 %v3848, 16
        %v4184 = vrot.slane %v4182, 4
        %v4185 = vor.u32 %v4184, %v4180
        %v4186 = vrot.slane %v4185, 4
        %v4188 = vshll.u32 %v3849, 16
        %v4190 = vrot.slane %v4188, 5
        %v4191 = vsel %vm317, %v4186, %v4190
        %v4193 = vshrl.u32 %v3850, 16
        %v4195 = vrot.slane %v4193, 4
        %v4196 = vshll.u32 %v3850, 16
        %v4198 = vrot.slane %v4196, 5
        %v4199 = vor.u32 %v4195, %v4198
        %v4200 = vrot.slane %v4199, 4
        %v4202 = vshll.u32 %v3851, 16
        %v4204 = vrot.slane %v4202, 5
        %v4205 = vsel %vm317, %v4200, %v4204
        %v4206 = vshrl.u32 %v3851, 16
        %v4208 = vrot.slane %v4206, 4
        %v4209 = vor.u32 %v4208, %v4204
        %v4210 = vrot.slane %v4209, 4
        %v4212 = vshll.u32 %v3852, 16
        %v4214 = vrot.slane %v4212, 5
        %v4215 = vsel %vm317, %v4210, %v4214
        %v4217 = vshrl.u32 %v3853, 16
        %v4219 = vrot.slane %v4217, 4
        %v4220 = vshll.u32 %v3853, 16
        %v4222 = vrot.slane %v4220, 5
        %v4223 = vor.u32 %v4219, %v4222
        %v4224 = vrot.slane %v4223, 4
        %v4226 = vshll.u32 %v3854, 16
        %v4228 = vrot.slane %v4226, 5
        %v4229 = vsel %vm317, %v4224, %v4228
        %v4230 = vshrl.u32 %v3854, 16
        %v4232 = vrot.slane %v4230, 4
        %v4233 = vor.u32 %v4232, %v4228
        %v4234 = vrot.slane %v4233, 4
        %v4236 = vshll.u32 %v3855, 16
        %v4238 = vrot.slane %v4236, 5
        %v4239 = vsel %vm317, %v4234, %v4238
        %s4240 = scalar_lea.vmem [#allocation4], 448
        %v4241 = vld [vmem:[%s4240] sm:$0xf]
        %v4242 = vld [vmem:[%s4240 + $0x4] sm:$0xf]
        %v4243 = vld [vmem:[%s4240 + $0x8] sm:$0xf]
        %v4244 = vld [vmem:[%s4240 + $0xc] sm:$0xf]
        %v4245 = vld [vmem:[%s4240 + $0x10] sm:$0xf]
        %v4246 = vld [vmem:[%s4240 + $0x14] sm:$0xf]
        %v4247 = vld [vmem:[%s4240 + $0x18] sm:$0xf]
        %v4248 = vld [vmem:[%s4240 + $0x1c] sm:$0xf]
        %v4249 = vld [vmem:[%s4240 + $0x20] sm:$0xf]
        %v4250 = vld [vmem:[%s4240 + $0x24] sm:$0xf]
        %v4251 = vld [vmem:[%s4240 + $0x28] sm:$0xf]
        %v4252 = vld [vmem:[%s4240 + $0x2c] sm:$0xf]
        %v4253 = vld [vmem:[%s4240 + $0x30] sm:$0xf]
        %v4254 = vld [vmem:[%s4240 + $0x34] sm:$0xf]
        %v4255 = vld [vmem:[%s4240 + $0x38] sm:$0xf]
        %v4256 = vld [vmem:[%s4240 + $0x3c] sm:$0xf]
        %v4257 = vunpack.c.l.b16 %v3869
        %v4258 = vunpack.c.l.b16 %v3879
        %v4259 = vunpack.c.l.b16 %v3893
        %v4260 = vunpack.c.l.b16 %v3903
        %v4261 = vunpack.c.l.b16 %v3917
        %v4262 = vunpack.c.l.b16 %v3927
        %v4263 = vunpack.c.l.b16 %v3941
        %v4264 = vunpack.c.l.b16 %v3951
        %v4265 = vunpack.c.l.b16 %v3965
        %v4266 = vunpack.c.l.b16 %v3975
        %v4267 = vunpack.c.l.b16 %v3989
        %v4268 = vunpack.c.l.b16 %v3999
        %v4269 = vunpack.c.l.b16 %v4013
        %v4270 = vunpack.c.l.b16 %v4023
        %v4271 = vunpack.c.l.b16 %v4037
        %v4272 = vunpack.c.l.b16 %v4047
        %v4273 = vunpack.c.l.b16 %v4061
        %v4274 = vunpack.c.l.b16 %v4071
        %v4275 = vunpack.c.l.b16 %v4085
        %v4276 = vunpack.c.l.b16 %v4095
        %v4277 = vunpack.c.l.b16 %v4109
        %v4278 = vunpack.c.l.b16 %v4119
        %v4279 = vunpack.c.l.b16 %v4133
        %v4280 = vunpack.c.l.b16 %v4143
        %v4281 = vunpack.c.l.b16 %v4157
        %v4282 = vunpack.c.l.b16 %v4167
        %v4283 = vunpack.c.l.b16 %v4181
        %v4284 = vunpack.c.l.b16 %v4191
        %v4285 = vunpack.c.l.b16 %v4205
        %v4286 = vunpack.c.l.b16 %v4215
        %v4287 = vunpack.c.l.b16 %v4229
        %v4288 = vunpack.c.l.b16 %v4239
        %v4289 = vpack.c.b16 %v4258, %v4257
        %v4290 = vpack.c.b16 %v4260, %v4259
        %v4291 = vpack.c.b16 %v4262, %v4261
        %v4292 = vpack.c.b16 %v4264, %v4263
        %v4293 = vpack.c.b16 %v4266, %v4265
        %v4294 = vpack.c.b16 %v4268, %v4267
        %v4295 = vpack.c.b16 %v4270, %v4269
        %v4296 = vpack.c.b16 %v4272, %v4271
        %v4297 = vpack.c.b16 %v4274, %v4273
        %v4298 = vpack.c.b16 %v4276, %v4275
        %v4299 = vpack.c.b16 %v4278, %v4277
        %v4300 = vpack.c.b16 %v4280, %v4279
        %v4301 = vpack.c.b16 %v4282, %v4281
        %v4302 = vpack.c.b16 %v4284, %v4283
        %v4303 = vpack.c.b16 %v4286, %v4285
        %v4304 = vpack.c.b16 %v4288, %v4287
        %v4337 = vunpack.c.l.b16 %v4241
        %v4338 = vunpack.c.l.b16 %v4242
        %v4339 = vunpack.c.l.b16 %v4243
        %v4340 = vunpack.c.l.b16 %v4244
        %v4341 = vunpack.c.l.b16 %v4245
        %v4342 = vunpack.c.l.b16 %v4246
        %v4343 = vunpack.c.l.b16 %v4247
        %v4344 = vunpack.c.l.b16 %v4248
        %v4345 = vunpack.c.l.b16 %v4249
        %v4346 = vunpack.c.l.b16 %v4250
        %v4347 = vunpack.c.l.b16 %v4251
        %v4348 = vunpack.c.l.b16 %v4252
        %v4349 = vunpack.c.l.b16 %v4253
        %v4350 = vunpack.c.l.b16 %v4254
        %v4351 = vunpack.c.l.b16 %v4255
        %v4352 = vunpack.c.l.b16 %v4256
        %v4353 = vpack.c.b16 %v4338, %v4337
        %v4354 = vpack.c.b16 %v4340, %v4339
        %v4355 = vpack.c.b16 %v4342, %v4341
        %v4356 = vpack.c.b16 %v4344, %v4343
        %v4357 = vpack.c.b16 %v4346, %v4345
        %v4358 = vpack.c.b16 %v4348, %v4347
        %v4359 = vpack.c.b16 %v4350, %v4349
        %v4360 = vpack.c.b16 %v4352, %v4351
        %4369 = vmatprep.subr.bf16.mxu0 0
        %4370 = vmatpush1.bf16.msra.mxu0 %v4353
        %4371 = vmatprep.subr.bf16.mxu0 0
        %4372 = vmatpush1.bf16.msra.mxu0 %v4354
        %4373 = vmatprep.subr.bf16.mxu0 0
        %4374 = vmatpush1.bf16.msra.mxu0 %v4355
        %4375 = vmatprep.subr.bf16.mxu0 0
        %4376 = vmatpush1.bf16.msra.mxu0 %v4356
        %4377 = vmatprep.subr.bf16.mxu0 0
        %4378 = vmatpush1.bf16.msra.mxu0 %v4357
        %4379 = vmatprep.subr.bf16.mxu0 0
        %4380 = vmatpush1.bf16.msra.mxu0 %v4358
        %4381 = vmatprep.subr.bf16.mxu0 0
        %4382 = vmatpush1.bf16.msra.mxu0 %v4359
        %4383 = vmatprep.subr.bf16.mxu0 0
        %4384 = vmatpush1.bf16.msra.mxu0 %v4360
        %4385 = vmatprep.subr.bf16.mxu0 0
        %4386 = vmatpush1.bf16.msra.mxu0 0
        %4387 = vmatprep.subr.bf16.mxu0 0
        %4388 = vmatpush1.bf16.msra.mxu0 0
        %4389 = vmatprep.subr.bf16.mxu0 0
        %4390 = vmatpush1.bf16.msra.mxu0 0
        %4391 = vmatprep.subr.bf16.mxu0 0
        %4392 = vmatpush1.bf16.msra.mxu0 0
        %4393 = vmatprep.subr.bf16.mxu0 0
        %4394 = vmatpush1.bf16.msra.mxu0 0
        %4395 = vmatprep.subr.bf16.mxu0 0
        %4396 = vmatpush1.bf16.msra.mxu0 0
        %4397 = vmatprep.subr.bf16.mxu0 0
        %4398 = vmatpush1.bf16.msra.mxu0 0
        %4399 = vmatprep.subr.bf16.mxu0 0
        %4400 = vmatpush1.bf16.msra.mxu0 0
        %4401 = vmatprep.mubr.bf16.mxu0 0
        %4402 = vmatmul.mubr.bf16.gmra.mrb[0].mxu0 %v4289
        %v4403 = vpop.f32.mrb[0].mxu0
        %v4404 = vadd.f32 0.0, %v4403
        %v4405 = vpop.f32.mrb[0].mxu0
        %v4406 = vpop.f32.mrb[0].mxu0
        %v4407 = vadd.f32 0.0, %v4406
        %v4408 = vpop.f32.mrb[0].mxu0
        %4409 = vmatprep.mubr.bf16.mxu0 0
        %4410 = vmatmul.mubr.bf16.gmra.mrb[0].mxu0 %v4290
        %v4411 = vpop.f32.mrb[0].mxu0
        %v4412 = vadd.f32 0.0, %v4411
        %v4413 = vpop.f32.mrb[0].mxu0
        %v4414 = vpop.f32.mrb[0].mxu0
        %v4415 = vadd.f32 0.0, %v4414
        %v4416 = vpop.f32.mrb[0].mxu0
        %4417 = vmatprep.mubr.bf16.mxu0 0
        %4418 = vmatmul.mubr.bf16.gmra.mrb[0].mxu0 %v4291
        %v4419 = vpop.f32.mrb[0].mxu0
        %v4420 = vadd.f32 0.0, %v4419
        %v4421 = vpop.f32.mrb[0].mxu0
        %v4422 = vpop.f32.mrb[0].mxu0
        %v4423 = vadd.f32 0.0, %v4422
        %v4424 = vpop.f32.mrb[0].mxu0
        %4425 = vmatprep.mubr.bf16.mxu0 0
        %4426 = vmatmul.mubr.bf16.gmra.mrb[0].mxu0 %v4292
        %v4427 = vpop.f32.mrb[0].mxu0
        %v4428 = vadd.f32 0.0, %v4427
        %v4429 = vpop.f32.mrb[0].mxu0
        %v4430 = vpop.f32.mrb[0].mxu0
        %v4431 = vadd.f32 0.0, %v4430
        %v4432 = vpop.f32.mrb[0].mxu0
        %4433 = vmatprep.mubr.bf16.mxu0 0
        %4434 = vmatmul.mubr.bf16.gmra.mrb[0].mxu0 %v4293
        %v4435 = vpop.f32.mrb[0].mxu0
        %v4436 = vadd.f32 0.0, %v4435
        %v4437 = vpop.f32.mrb[0].mxu0
        %v4438 = vpop.f32.mrb[0].mxu0
        %v4439 = vadd.f32 0.0, %v4438
        %v4440 = vpop.f32.mrb[0].mxu0
        %4441 = vmatprep.mubr.bf16.mxu0 0
        %4442 = vmatmul.mubr.bf16.gmra.mrb[0].mxu0 %v4294
        %v4443 = vpop.f32.mrb[0].mxu0
        %v4444 = vadd.f32 0.0, %v4443
        %v4445 = vpop.f32.mrb[0].mxu0
        %v4446 = vpop.f32.mrb[0].mxu0
        %v4447 = vadd.f32 0.0, %v4446
        %v4448 = vpop.f32.mrb[0].mxu0
        %4449 = vmatprep.mubr.bf16.mxu0 0
        %4450 = vmatmul.mubr.bf16.gmra.mrb[0].mxu0 %v4295
        %v4451 = vpop.f32.mrb[0].mxu0
        %v4452 = vadd.f32 0.0, %v4451
        %v4453 = vpop.f32.mrb[0].mxu0
        %v4454 = vpop.f32.mrb[0].mxu0
        %v4455 = vadd.f32 0.0, %v4454
        %v4456 = vpop.f32.mrb[0].mxu0
        %4457 = vmatprep.mubr.bf16.mxu0 0
        %4458 = vmatmul.mubr.bf16.gmra.mrb[0].mxu0 %v4296
        %v4459 = vpop.f32.mrb[0].mxu0
        %v4460 = vadd.f32 0.0, %v4459
        %v4461 = vpop.f32.mrb[0].mxu0
        %v4462 = vpop.f32.mrb[0].mxu0
        %v4463 = vadd.f32 0.0, %v4462
        %v4464 = vpop.f32.mrb[0].mxu0
        %4465 = vmatprep.mubr.bf16.mxu0 0
        %4466 = vmatmul.mubr.bf16.gmra.mrb[0].mxu0 %v4297
        %v4467 = vpop.f32.mrb[0].mxu0
        %v4468 = vadd.f32 0.0, %v4467
        %v4469 = vpop.f32.mrb[0].mxu0
        %v4470 = vpop.f32.mrb[0].mxu0
        %v4471 = vadd.f32 0.0, %v4470
        %v4472 = vpop.f32.mrb[0].mxu0
        %4473 = vmatprep.mubr.bf16.mxu0 0
        %4474 = vmatmul.mubr.bf16.gmra.mrb[0].mxu0 %v4298
        %v4475 = vpop.f32.mrb[0].mxu0
        %v4476 = vadd.f32 0.0, %v4475
        %v4477 = vpop.f32.mrb[0].mxu0
        %v4478 = vpop.f32.mrb[0].mxu0
        %v4479 = vadd.f32 0.0, %v4478
        %v4480 = vpop.f32.mrb[0].mxu0
        %4481 = vmatprep.mubr.bf16.mxu0 0
        %4482 = vmatmul.mubr.bf16.gmra.mrb[0].mxu0 %v4299
        %v4483 = vpop.f32.mrb[0].mxu0
        %v4484 = vadd.f32 0.0, %v4483
        %v4485 = vpop.f32.mrb[0].mxu0
        %v4486 = vpop.f32.mrb[0].mxu0
        %v4487 = vadd.f32 0.0, %v4486
        %v4488 = vpop.f32.mrb[0].mxu0
        %4489 = vmatprep.mubr.bf16.mxu0 0
        %4490 = vmatmul.mubr.bf16.gmra.mrb[0].mxu0 %v4300
        %v4491 = vpop.f32.mrb[0].mxu0
        %v4492 = vadd.f32 0.0, %v4491
        %v4493 = vpop.f32.mrb[0].mxu0
        %v4494 = vpop.f32.mrb[0].mxu0
        %v4495 = vadd.f32 0.0, %v4494
        %v4496 = vpop.f32.mrb[0].mxu0
        %4497 = vmatprep.mubr.bf16.mxu0 0
        %4498 = vmatmul.mubr.bf16.gmra.mrb[0].mxu0 %v4301
        %v4499 = vpop.f32.mrb[0].mxu0
        %v4500 = vadd.f32 0.0, %v4499
        %v4501 = vpop.f32.mrb[0].mxu0
        %v4502 = vpop.f32.mrb[0].mxu0
        %v4503 = vadd.f32 0.0, %v4502
        %v4504 = vpop.f32.mrb[0].mxu0
        %4505 = vmatprep.mubr.bf16.mxu0 0
        %4506 = vmatmul.mubr.bf16.gmra.mrb[0].mxu0 %v4302
        %v4507 = vpop.f32.mrb[0].mxu0
        %v4508 = vadd.f32 0.0, %v4507
        %v4509 = vpop.f32.mrb[0].mxu0
        %v4510 = vpop.f32.mrb[0].mxu0
        %v4511 = vadd.f32 0.0, %v4510
        %v4512 = vpop.f32.mrb[0].mxu0
        %4513 = vmatprep.mubr.bf16.mxu0 0
        %4514 = vmatmul.mubr.bf16.gmra.mrb[0].mxu0 %v4303
        %v4515 = vpop.f32.mrb[0].mxu0
        %v4516 = vadd.f32 0.0, %v4515
        %v4517 = vpop.f32.mrb[0].mxu0
        %v4518 = vpop.f32.mrb[0].mxu0
        %v4519 = vadd.f32 0.0, %v4518
        %v4520 = vpop.f32.mrb[0].mxu0
        %4521 = vmatprep.mubr.bf16.mxu0 0
        %4522 = vmatmul.mubr.bf16.gmra.mrb[0].mxu0 %v4304
        %v4523 = vpop.f32.mrb[0].mxu0
        %v4524 = vadd.f32 0.0, %v4523
        %v4525 = vpop.f32.mrb[0].mxu0
        %v4526 = vpop.f32.mrb[0].mxu0
        %v4527 = vadd.f32 0.0, %v4526
        %v4528 = vpop.f32.mrb[0].mxu0
        %4529 = vdwg.mxu0
        %v4530 = vadd.f32 %v3776, %v4404
        %v4531 = vadd.f32 %v3777, %v4407
        %v4532 = vadd.f32 %v3778, %v4412
        %v4533 = vadd.f32 %v3779, %v4415
        %v4534 = vadd.f32 %v3780, %v4420
        %v4535 = vadd.f32 %v3781, %v4423
        %v4536 = vadd.f32 %v3782, %v4428
        %v4537 = vadd.f32 %v3783, %v4431
        %v4538 = vadd.f32 %v3784, %v4436
        %v4539 = vadd.f32 %v3785, %v4439
        %v4540 = vadd.f32 %v3786, %v4444
        %v4541 = vadd.f32 %v3787, %v4447
        %v4542 = vadd.f32 %v3788, %v4452
        %v4543 = vadd.f32 %v3789, %v4455
        %v4544 = vadd.f32 %v3790, %v4460
        %v4545 = vadd.f32 %v3791, %v4463
        %v4546 = vadd.f32 %v3792, %v4468
        %v4547 = vadd.f32 %v3793, %v4471
        %v4548 = vadd.f32 %v3794, %v4476
        %v4549 = vadd.f32 %v3795, %v4479
        %v4550 = vadd.f32 %v3796, %v4484
        %v4551 = vadd.f32 %v3797, %v4487
        %v4552 = vadd.f32 %v3798, %v4492
        %v4553 = vadd.f32 %v3799, %v4495
        %v4554 = vadd.f32 %v3800, %v4500
        %v4555 = vadd.f32 %v3801, %v4503
        %v4556 = vadd.f32 %v3802, %v4508
        %v4557 = vadd.f32 %v3803, %v4511
        %v4558 = vadd.f32 %v3804, %v4516
        %v4559 = vadd.f32 %v3805, %v4519
        %v4560 = vadd.f32 %v3806, %v4524
        %v4561 = vadd.f32 %v3807, %v4527
        %v4562 = vld [vmem:[%s3421] sm:$0xe]
        %v4563 = vld [vmem:[%s3421 + $0xc] sm:$0xe]
        %v4564 = vld [vmem:[%s3421 + $0x18] sm:$0xe]
        %v4565 = vld [vmem:[%s3421 + $0x24] sm:$0xe]
        %v4566 = vld [vmem:[%s3421 + $0x30] sm:$0xe]
        %v4567 = vld [vmem:[%s3421 + $0x3c] sm:$0xe]
        %v4568 = vld [vmem:[%s3421 + $0x48] sm:$0xe]
        %v4569 = vld [vmem:[%s3421 + $0x54] sm:$0xe]
        %v4570 = vld [vmem:[%s3421 + $0x60] sm:$0xe]
        %v4571 = vld [vmem:[%s3421 + $0x6c] sm:$0xe]
        %v4572 = vld [vmem:[%s3421 + $0x78] sm:$0xe]
        %v4573 = vld [vmem:[%s3421 + $0x84] sm:$0xe]
        %v4574 = vld [vmem:[%s3421 + $0x90] sm:$0xe]
        %v4575 = vld [vmem:[%s3421 + $0x9c] sm:$0xe]
        %v4576 = vld [vmem:[%s3421 + $0xa8] sm:$0xe]
        %v4577 = vld [vmem:[%s3421 + $0xb4] sm:$0xe]
        %v4626 = vrot.slane %v4562, 5
        %v4627 = vrot.slane %v4626, 4
        %v4628 = vrot.slane %v3809, 5
        %v4629 = vsel %vm1347, %v4627, %v4628
        %v4630 = vrot.slane %v4628, 4
        %v4631 = vrot.slane %v3810, 5
        %v4632 = vsel %vm1347, %v4630, %v4631
        %v4633 = vrot.slane %v4563, 5
        %v4634 = vrot.slane %v4633, 4
        %v4635 = vrot.slane %v3812, 5
        %v4636 = vsel %vm1347, %v4634, %v4635
        %v4637 = vrot.slane %v4635, 4
        %v4638 = vrot.slane %v3813, 5
        %v4639 = vsel %vm1347, %v4637, %v4638
        %v4640 = vrot.slane %v4564, 5
        %v4641 = vrot.slane %v4640, 4
        %v4642 = vrot.slane %v3815, 5
        %v4643 = vsel %vm1347, %v4641, %v4642
        %v4644 = vrot.slane %v4642, 4
        %v4645 = vrot.slane %v3816, 5
        %v4646 = vsel %vm1347, %v4644, %v4645
        %v4647 = vrot.slane %v4565, 5
        %v4648 = vrot.slane %v4647, 4
        %v4649 = vrot.slane %v3818, 5
        %v4650 = vsel %vm1347, %v4648, %v4649
        %v4651 = vrot.slane %v4649, 4
        %v4652 = vrot.slane %v3819, 5
        %v4653 = vsel %vm1347, %v4651, %v4652
        %v4654 = vrot.slane %v4566, 5
        %v4655 = vrot.slane %v4654, 4
        %v4656 = vrot.slane %v3821, 5
        %v4657 = vsel %vm1347, %v4655, %v4656
        %v4658 = vrot.slane %v4656, 4
        %v4659 = vrot.slane %v3822, 5
        %v4660 = vsel %vm1347, %v4658, %v4659
        %v4661 = vrot.slane %v4567, 5
        %v4662 = vrot.slane %v4661, 4
        %v4663 = vrot.slane %v3824, 5
        %v4664 = vsel %vm1347, %v4662, %v4663
        %v4665 = vrot.slane %v4663, 4
        %v4666 = vrot.slane %v3825, 5
        %v4667 = vsel %vm1347, %v4665, %v4666
        %v4668 = vrot.slane %v4568, 5
        %v4669 = vrot.slane %v4668, 4
        %v4670 = vrot.slane %v3827, 5
        %v4671 = vsel %vm1347, %v4669, %v4670
        %v4672 = vrot.slane %v4670, 4
        %v4673 = vrot.slane %v3828, 5
        %v4674 = vsel %vm1347, %v4672, %v4673
        %v4675 = vrot.slane %v4569, 5
        %v4676 = vrot.slane %v4675, 4
        %v4677 = vrot.slane %v3830, 5
        %v4678 = vsel %vm1347, %v4676, %v4677
        %v4679 = vrot.slane %v4677, 4
        %v4680 = vrot.slane %v3831, 5
        %v4681 = vsel %vm1347, %v4679, %v4680
        %v4682 = vrot.slane %v4570, 5
        %v4683 = vrot.slane %v4682, 4
        %v4684 = vrot.slane %v3833, 5
        %v4685 = vsel %vm1347, %v4683, %v4684
        %v4686 = vrot.slane %v4684, 4
        %v4687 = vrot.slane %v3834, 5
        %v4688 = vsel %vm1347, %v4686, %v4687
        %v4689 = vrot.slane %v4571, 5
        %v4690 = vrot.slane %v4689, 4
        %v4691 = vrot.slane %v3836, 5
        %v4692 = vsel %vm1347, %v4690, %v4691
        %v4693 = vrot.slane %v4691, 4
        %v4694 = vrot.slane %v3837, 5
        %v4695 = vsel %vm1347, %v4693, %v4694
        %v4696 = vrot.slane %v4572, 5
        %v4697 = vrot.slane %v4696, 4
        %v4698 = vrot.slane %v3839, 5
        %v4699 = vsel %vm1347, %v4697, %v4698
        %v4700 = vrot.slane %v4698, 4
        %v4701 = vrot.slane %v3840, 5
        %v4702 = vsel %vm1347, %v4700, %v4701
        %v4703 = vrot.slane %v4573, 5
        %v4704 = vrot.slane %v4703, 4
        %v4705 = vrot.slane %v3842, 5
        %v4706 = vsel %vm1347, %v4704, %v4705
        %v4707 = vrot.slane %v4705, 4
        %v4708 = vrot.slane %v3843, 5
        %v4709 = vsel %vm1347, %v4707, %v4708
        %v4710 = vrot.slane %v4574, 5
        %v4711 = vrot.slane %v4710, 4
        %v4712 = vrot.slane %v3845, 5
        %v4713 = vsel %vm1347, %v4711, %v4712
        %v4714 = vrot.slane %v4712, 4
        %v4715 = vrot.slane %v3846, 5
        %v4716 = vsel %vm1347, %v4714, %v4715
        %v4717 = vrot.slane %v4575, 5
        %v4718 = vrot.slane %v4717, 4
        %v4719 = vrot.slane %v3848, 5
        %v4720 = vsel %vm1347, %v4718, %v4719
        %v4721 = vrot.slane %v4719, 4
        %v4722 = vrot.slane %v3849, 5
        %v4723 = vsel %vm1347, %v4721, %v4722
        %v4724 = vrot.slane %v4576, 5
        %v4725 = vrot.slane %v4724, 4
        %v4726 = vrot.slane %v3851, 5
        %v4727 = vsel %vm1347, %v4725, %v4726
        %v4728 = vrot.slane %v4726, 4
        %v4729 = vrot.slane %v3852, 5
        %v4730 = vsel %vm1347, %v4728, %v4729
        %v4731 = vrot.slane %v4577, 5
        %v4732 = vrot.slane %v4731, 4
        %v4733 = vrot.slane %v3854, 5
        %v4734 = vsel %vm1347, %v4732, %v4733
        %v4735 = vrot.slane %v4733, 4
        %v4736 = vrot.slane %v3855, 5
        %v4737 = vsel %vm1347, %v4735, %v4736
        %s4738 = scalar_lea.vmem [#allocation4], 512
        %v4739 = vld [vmem:[%s4738] sm:$0xf]
        %v4740 = vld [vmem:[%s4738 + $0x4] sm:$0xf]
        %v4741 = vld [vmem:[%s4738 + $0x8] sm:$0xf]
        %v4742 = vld [vmem:[%s4738 + $0xc] sm:$0xf]
        %v4743 = vld [vmem:[%s4738 + $0x10] sm:$0xf]
        %v4744 = vld [vmem:[%s4738 + $0x14] sm:$0xf]
        %v4745 = vld [vmem:[%s4738 + $0x18] sm:$0xf]
        %v4746 = vld [vmem:[%s4738 + $0x1c] sm:$0xf]
        %v4747 = vld [vmem:[%s4738 + $0x20] sm:$0xf]
        %v4748 = vld [vmem:[%s4738 + $0x24] sm:$0xf]
        %v4749 = vld [vmem:[%s4738 + $0x28] sm:$0xf]
        %v4750 = vld [vmem:[%s4738 + $0x2c] sm:$0xf]
        %v4751 = vld [vmem:[%s4738 + $0x30] sm:$0xf]
        %v4752 = vld [vmem:[%s4738 + $0x34] sm:$0xf]
        %v4753 = vld [vmem:[%s4738 + $0x38] sm:$0xf]
        %v4754 = vld [vmem:[%s4738 + $0x3c] sm:$0xf]
        %v4755 = vunpack.c.l.b16 %v4629
        %v4756 = vunpack.c.l.b16 %v4632
        %v4757 = vunpack.c.l.b16 %v4636
        %v4758 = vunpack.c.l.b16 %v4639
        %v4759 = vunpack.c.l.b16 %v4643
        %v4760 = vunpack.c.l.b16 %v4646
        %v4761 = vunpack.c.l.b16 %v4650
        %v4762 = vunpack.c.l.b16 %v4653
        %v4763 = vunpack.c.l.b16 %v4657
        %v4764 = vunpack.c.l.b16 %v4660
        %v4765 = vunpack.c.l.b16 %v4664
        %v4766 = vunpack.c.l.b16 %v4667
        %v4767 = vunpack.c.l.b16 %v4671
        %v4768 = vunpack.c.l.b16 %v4674
        %v4769 = vunpack.c.l.b16 %v4678
        %v4770 = vunpack.c.l.b16 %v4681
        %v4771 = vunpack.c.l.b16 %v4685
        %v4772 = vunpack.c.l.b16 %v4688
        %v4773 = vunpack.c.l.b16 %v4692
        %v4774 = vunpack.c.l.b16 %v4695
        %v4775 = vunpack.c.l.b16 %v4699
        %v4776 = vunpack.c.l.b16 %v4702
        %v4777 = vunpack.c.l.b16 %v4706
        %v4778 = vunpack.c.l.b16 %v4709
        %v4779 = vunpack.c.l.b16 %v4713
        %v4780 = vunpack.c.l.b16 %v4716
        %v4781 = vunpack.c.l.b16 %v4720
        %v4782 = vunpack.c.l.b16 %v4723
        %v4783 = vunpack.c.l.b16 %v4727
        %v4784 = vunpack.c.l.b16 %v4730
        %v4785 = vunpack.c.l.b16 %v4734
        %v4786 = vunpack.c.l.b16 %v4737
        %v4787 = vpack.c.b16 %v4756, %v4755
        %v4788 = vpack.c.b16 %v4758, %v4757
        %v4789 = vpack.c.b16 %v4760, %v4759
        %v4790 = vpack.c.b16 %v4762, %v4761
        %v4791 = vpack.c.b16 %v4764, %v4763
        %v4792 = vpack.c.b16 %v4766, %v4765
        %v4793 = vpack.c.b16 %v4768, %v4767
        %v4794 = vpack.c.b16 %v4770, %v4769
        %v4795 = vpack.c.b16 %v4772, %v4771
        %v4796 = vpack.c.b16 %v4774, %v4773
        %v4797 = vpack.c.b16 %v4776, %v4775
        %v4798 = vpack.c.b16 %v4778, %v4777
        %v4799 = vpack.c.b16 %v4780, %v4779
        %v4800 = vpack.c.b16 %v4782, %v4781
        %v4801 = vpack.c.b16 %v4784, %v4783
        %v4802 = vpack.c.b16 %v4786, %v4785
        %v4835 = vunpack.c.l.b16 %v4739
        %v4836 = vunpack.c.l.b16 %v4740
        %v4837 = vunpack.c.l.b16 %v4741
        %v4838 = vunpack.c.l.b16 %v4742
        %v4839 = vunpack.c.l.b16 %v4743
        %v4840 = vunpack.c.l.b16 %v4744
        %v4841 = vunpack.c.l.b16 %v4745
        %v4842 = vunpack.c.l.b16 %v4746
        %v4843 = vunpack.c.l.b16 %v4747
        %v4844 = vunpack.c.l.b16 %v4748
        %v4845 = vunpack.c.l.b16 %v4749
        %v4846 = vunpack.c.l.b16 %v4750
        %v4847 = vunpack.c.l.b16 %v4751
        %v4848 = vunpack.c.l.b16 %v4752
        %v4849 = vunpack.c.l.b16 %v4753
        %v4850 = vunpack.c.l.b16 %v4754
        %v4851 = vpack.c.b16 %v4836, %v4835
        %v4852 = vpack.c.b16 %v4838, %v4837
        %v4853 = vpack.c.b16 %v4840, %v4839
        %v4854 = vpack.c.b16 %v4842, %v4841
        %v4855 = vpack.c.b16 %v4844, %v4843
        %v4856 = vpack.c.b16 %v4846, %v4845
        %v4857 = vpack.c.b16 %v4848, %v4847
        %v4858 = vpack.c.b16 %v4850, %v4849
        %4867 = vmatprep.subr.bf16.mxu0 0
        %4868 = vmatpush1.bf16.msra.mxu0 %v4851
        %4869 = vmatprep.subr.bf16.mxu0 0
        %4870 = vmatpush1.bf16.msra.mxu0 %v4852
        %4871 = vmatprep.subr.bf16.mxu0 0
        %4872 = vmatpush1.bf16.msra.mxu0 %v4853
        %4873 = vmatprep.subr.bf16.mxu0 0
        %4874 = vmatpush1.bf16.msra.mxu0 %v4854
        %4875 = vmatprep.subr.bf16.mxu0 0
        %4876 = vmatpush1.bf16.msra.mxu0 %v4855
        %4877 = vmatprep.subr.bf16.mxu0 0
        %4878 = vmatpush1.bf16.msra.mxu0 %v4856
        %4879 = vmatprep.subr.bf16.mxu0 0
        %4880 = vmatpush1.bf16.msra.mxu0 %v4857
        %4881 = vmatprep.subr.bf16.mxu0 0
        %4882 = vmatpush1.bf16.msra.mxu0 %v4858
        %4883 = vmatprep.subr.bf16.mxu0 0
        %4884 = vmatpush1.bf16.msra.mxu0 0
        %4885 = vmatprep.subr.bf16.mxu0 0
        %4886 = vmatpush1.bf16.msra.mxu0 0
        %4887 = vmatprep.subr.bf16.mxu0 0
        %4888 = vmatpush1.bf16.msra.mxu0 0
        %4889 = vmatprep.subr.bf16.mxu0 0
        %4890 = vmatpush1.bf16.msra.mxu0 0
        %4891 = vmatprep.subr.bf16.mxu0 0
        %4892 = vmatpush1.bf16.msra.mxu0 0
        %4893 = vmatprep.subr.bf16.mxu0 0
        %4894 = vmatpush1.bf16.msra.mxu0 0
        %4895 = vmatprep.subr.bf16.mxu0 0
        %4896 = vmatpush1.bf16.msra.mxu0 0
        %4897 = vmatprep.subr.bf16.mxu0 0
        %4898 = vmatpush1.bf16.msra.mxu0 0
        %4899 = vmatprep.mubr.bf16.mxu0 0
        %4900 = vmatmul.mubr.bf16.gmra.mrb[0].mxu0 %v4787
        %v4901 = vpop.f32.mrb[0].mxu0
        %v4902 = vadd.f32 0.0, %v4901
        %v4903 = vpop.f32.mrb[0].mxu0
        %v4904 = vpop.f32.mrb[0].mxu0
        %v4905 = vadd.f32 0.0, %v4904
        %v4906 = vpop.f32.mrb[0].mxu0
        %4907 = vmatprep.mubr.bf16.mxu0 0
        %4908 = vmatmul.mubr.bf16.gmra.mrb[0].mxu0 %v4788
        %v4909 = vpop.f32.mrb[0].mxu0
        %v4910 = vadd.f32 0.0, %v4909
        %v4911 = vpop.f32.mrb[0].mxu0
        %v4912 = vpop.f32.mrb[0].mxu0
        %v4913 = vadd.f32 0.0, %v4912
        %v4914 = vpop.f32.mrb[0].mxu0
        %4915 = vmatprep.mubr.bf16.mxu0 0
        %4916 = vmatmul.mubr.bf16.gmra.mrb[0].mxu0 %v4789
        %v4917 = vpop.f32.mrb[0].mxu0
        %v4918 = vadd.f32 0.0, %v4917
        %v4919 = vpop.f32.mrb[0].mxu0
        %v4920 = vpop.f32.mrb[0].mxu0
        %v4921 = vadd.f32 0.0, %v4920
        %v4922 = vpop.f32.mrb[0].mxu0
        %4923 = vmatprep.mubr.bf16.mxu0 0
        %4924 = vmatmul.mubr.bf16.gmra.mrb[0].mxu0 %v4790
        %v4925 = vpop.f32.mrb[0].mxu0
        %v4926 = vadd.f32 0.0, %v4925
        %v4927 = vpop.f32.mrb[0].mxu0
        %v4928 = vpop.f32.mrb[0].mxu0
        %v4929 = vadd.f32 0.0, %v4928
        %v4930 = vpop.f32.mrb[0].mxu0
        %4931 = vmatprep.mubr.bf16.mxu0 0
        %4932 = vmatmul.mubr.bf16.gmra.mrb[0].mxu0 %v4791
        %v4933 = vpop.f32.mrb[0].mxu0
        %v4934 = vadd.f32 0.0, %v4933
        %v4935 = vpop.f32.mrb[0].mxu0
        %v4936 = vpop.f32.mrb[0].mxu0
        %v4937 = vadd.f32 0.0, %v4936
        %v4938 = vpop.f32.mrb[0].mxu0
        %4939 = vmatprep.mubr.bf16.mxu0 0
        %4940 = vmatmul.mubr.bf16.gmra.mrb[0].mxu0 %v4792
        %v4941 = vpop.f32.mrb[0].mxu0
        %v4942 = vadd.f32 0.0, %v4941
        %v4943 = vpop.f32.mrb[0].mxu0
        %v4944 = vpop.f32.mrb[0].mxu0
        %v4945 = vadd.f32 0.0, %v4944
        %v4946 = vpop.f32.mrb[0].mxu0
        %4947 = vmatprep.mubr.bf16.mxu0 0
        %4948 = vmatmul.mubr.bf16.gmra.mrb[0].mxu0 %v4793
        %v4949 = vpop.f32.mrb[0].mxu0
        %v4950 = vadd.f32 0.0, %v4949
        %v4951 = vpop.f32.mrb[0].mxu0
        %v4952 = vpop.f32.mrb[0].mxu0
        %v4953 = vadd.f32 0.0, %v4952
        %v4954 = vpop.f32.mrb[0].mxu0
        %4955 = vmatprep.mubr.bf16.mxu0 0
        %4956 = vmatmul.mubr.bf16.gmra.mrb[0].mxu0 %v4794
        %v4957 = vpop.f32.mrb[0].mxu0
        %v4958 = vadd.f32 0.0, %v4957
        %v4959 = vpop.f32.mrb[0].mxu0
        %v4960 = vpop.f32.mrb[0].mxu0
        %v4961 = vadd.f32 0.0, %v4960
        %v4962 = vpop.f32.mrb[0].mxu0
        %4963 = vmatprep.mubr.bf16.mxu0 0
        %4964 = vmatmul.mubr.bf16.gmra.mrb[0].mxu0 %v4795
        %v4965 = vpop.f32.mrb[0].mxu0
        %v4966 = vadd.f32 0.0, %v4965
        %v4967 = vpop.f32.mrb[0].mxu0
        %v4968 = vpop.f32.mrb[0].mxu0
        %v4969 = vadd.f32 0.0, %v4968
        %v4970 = vpop.f32.mrb[0].mxu0
        %4971 = vmatprep.mubr.bf16.mxu0 0
        %4972 = vmatmul.mubr.bf16.gmra.mrb[0].mxu0 %v4796
        %v4973 = vpop.f32.mrb[0].mxu0
        %v4974 = vadd.f32 0.0, %v4973
        %v4975 = vpop.f32.mrb[0].mxu0
        %v4976 = vpop.f32.mrb[0].mxu0
        %v4977 = vadd.f32 0.0, %v4976
        %v4978 = vpop.f32.mrb[0].mxu0
        %4979 = vmatprep.mubr.bf16.mxu0 0
        %4980 = vmatmul.mubr.bf16.gmra.mrb[0].mxu0 %v4797
        %v4981 = vpop.f32.mrb[0].mxu0
        %v4982 = vadd.f32 0.0, %v4981
        %v4983 = vpop.f32.mrb[0].mxu0
        %v4984 = vpop.f32.mrb[0].mxu0
        %v4985 = vadd.f32 0.0, %v4984
        %v4986 = vpop.f32.mrb[0].mxu0
        %4987 = vmatprep.mubr.bf16.mxu0 0
        %4988 = vmatmul.mubr.bf16.gmra.mrb[0].mxu0 %v4798
        %v4989 = vpop.f32.mrb[0].mxu0
        %v4990 = vadd.f32 0.0, %v4989
        %v4991 = vpop.f32.mrb[0].mxu0
        %v4992 = vpop.f32.mrb[0].mxu0
        %v4993 = vadd.f32 0.0, %v4992
        %v4994 = vpop.f32.mrb[0].mxu0
        %4995 = vmatprep.mubr.bf16.mxu0 0
        %4996 = vmatmul.mubr.bf16.gmra.mrb[0].mxu0 %v4799
        %v4997 = vpop.f32.mrb[0].mxu0
        %v4998 = vadd.f32 0.0, %v4997
        %v4999 = vpop.f32.mrb[0].mxu0
        %v5000 = vpop.f32.mrb[0].mxu0
        %v5001 = vadd.f32 0.0, %v5000
        %v5002 = vpop.f32.mrb[0].mxu0
        %5003 = vmatprep.mubr.bf16.mxu0 0
        %5004 = vmatmul.mubr.bf16.gmra.mrb[0].mxu0 %v4800
        %v5005 = vpop.f32.mrb[0].mxu0
        %v5006 = vadd.f32 0.0, %v5005
        %v5007 = vpop.f32.mrb[0].mxu0
        %v5008 = vpop.f32.mrb[0].mxu0
        %v5009 = vadd.f32 0.0, %v5008
        %v5010 = vpop.f32.mrb[0].mxu0
        %5011 = vmatprep.mubr.bf16.mxu0 0
        %5012 = vmatmul.mubr.bf16.gmra.mrb[0].mxu0 %v4801
        %v5013 = vpop.f32.mrb[0].mxu0
        %v5014 = vadd.f32 0.0, %v5013
        %v5015 = vpop.f32.mrb[0].mxu0
        %v5016 = vpop.f32.mrb[0].mxu0
        %v5017 = vadd.f32 0.0, %v5016
        %v5018 = vpop.f32.mrb[0].mxu0
        %5019 = vmatprep.mubr.bf16.mxu0 0
        %5020 = vmatmul.mubr.bf16.gmra.mrb[0].mxu0 %v4802
        %v5021 = vpop.f32.mrb[0].mxu0
        %v5022 = vadd.f32 0.0, %v5021
        %v5023 = vpop.f32.mrb[0].mxu0
        %v5024 = vpop.f32.mrb[0].mxu0
        %v5025 = vadd.f32 0.0, %v5024
        %v5026 = vpop.f32.mrb[0].mxu0
        %5027 = vdwg.mxu0
        %v5028 = vadd.f32 %v4530, %v4902
        %v5029 = vadd.f32 %v4531, %v4905
        %v5030 = vadd.f32 %v4532, %v4910
        %v5031 = vadd.f32 %v4533, %v4913
        %v5032 = vadd.f32 %v4534, %v4918
        %v5033 = vadd.f32 %v4535, %v4921
        %v5034 = vadd.f32 %v4536, %v4926
        %v5035 = vadd.f32 %v4537, %v4929
        %v5036 = vadd.f32 %v4538, %v4934
        %v5037 = vadd.f32 %v4539, %v4937
        %v5038 = vadd.f32 %v4540, %v4942
        %v5039 = vadd.f32 %v4541, %v4945
        %v5040 = vadd.f32 %v4542, %v4950
        %v5041 = vadd.f32 %v4543, %v4953
        %v5042 = vadd.f32 %v4544, %v4958
        %v5043 = vadd.f32 %v4545, %v4961
        %v5044 = vadd.f32 %v4546, %v4966
        %v5045 = vadd.f32 %v4547, %v4969
        %v5046 = vadd.f32 %v4548, %v4974
        %v5047 = vadd.f32 %v4549, %v4977
        %v5048 = vadd.f32 %v4550, %v4982
        %v5049 = vadd.f32 %v4551, %v4985
        %v5050 = vadd.f32 %v4552, %v4990
        %v5051 = vadd.f32 %v4553, %v4993
        %v5052 = vadd.f32 %v4554, %v4998
        %v5053 = vadd.f32 %v4555, %v5001
        %v5054 = vadd.f32 %v4556, %v5006
        %v5055 = vadd.f32 %v4557, %v5009
        %v5056 = vadd.f32 %v4558, %v5014
        %v5057 = vadd.f32 %v4559, %v5017
        %v5058 = vadd.f32 %v4560, %v5022
        %v5059 = vadd.f32 %v4561, %v5025
        %v5060 = vld [vmem:[%s219] sm:$0x1]
        %v5062 = vlaneseq
        %v5063 = vshrl.u32 %v5062, 7
        %v5064 = vsub.s32 0, %v5063
        %v5065 = vrot.slane %v5060, %v5064
        %v5067 = vmul.f32 %v5028, %v5065
        %v5068 = vmul.f32 %v5029, %v5065
        %v5069 = vmul.f32 %v5030, %v5065
        %v5070 = vmul.f32 %v5031, %v5065
        %v5071 = vmul.f32 %v5032, %v5065
        %v5072 = vmul.f32 %v5033, %v5065
        %v5073 = vmul.f32 %v5034, %v5065
        %v5074 = vmul.f32 %v5035, %v5065
        %v5075 = vmul.f32 %v5036, %v5065
        %v5076 = vmul.f32 %v5037, %v5065
        %v5077 = vmul.f32 %v5038, %v5065
        %v5078 = vmul.f32 %v5039, %v5065
        %v5079 = vmul.f32 %v5040, %v5065
        %v5080 = vmul.f32 %v5041, %v5065
        %v5081 = vmul.f32 %v5042, %v5065
        %v5082 = vmul.f32 %v5043, %v5065
        %v5083 = vmul.f32 %v5044, %v5065
        %v5084 = vmul.f32 %v5045, %v5065
        %v5085 = vmul.f32 %v5046, %v5065
        %v5086 = vmul.f32 %v5047, %v5065
        %v5087 = vmul.f32 %v5048, %v5065
        %v5088 = vmul.f32 %v5049, %v5065
        %v5089 = vmul.f32 %v5050, %v5065
        %v5090 = vmul.f32 %v5051, %v5065
        %v5091 = vmul.f32 %v5052, %v5065
        %v5092 = vmul.f32 %v5053, %v5065
        %v5093 = vmul.f32 %v5054, %v5065
        %v5094 = vmul.f32 %v5055, %v5065
        %v5095 = vmul.f32 %v5056, %v5065
        %v5096 = vmul.f32 %v5057, %v5065
        %v5097 = vmul.f32 %v5058, %v5065
        %v5098 = vmul.f32 %v5059, %v5065
        %v5099 = vld [vmem:[%s222] sm:$0x1]
        %v5101 = vlaneseq
        %v5102 = vshrl.u32 %v5101, 7
        %v5103 = vsub.s32 0, %v5102
        %v5104 = vrot.slane %v5099, %v5103
        %v5106 = vadd.f32 %v5067, %v5104
        %v5107 = vadd.f32 %v5068, %v5104
        %v5108 = vadd.f32 %v5069, %v5104
        %v5109 = vadd.f32 %v5070, %v5104
        %v5110 = vadd.f32 %v5071, %v5104
        %v5111 = vadd.f32 %v5072, %v5104
        %v5112 = vadd.f32 %v5073, %v5104
        %v5113 = vadd.f32 %v5074, %v5104
        %v5114 = vadd.f32 %v5075, %v5104
        %v5115 = vadd.f32 %v5076, %v5104
        %v5116 = vadd.f32 %v5077, %v5104
        %v5117 = vadd.f32 %v5078, %v5104
        %v5118 = vadd.f32 %v5079, %v5104
        %v5119 = vadd.f32 %v5080, %v5104
        %v5120 = vadd.f32 %v5081, %v5104
        %v5121 = vadd.f32 %v5082, %v5104
        %v5122 = vadd.f32 %v5083, %v5104
        %v5123 = vadd.f32 %v5084, %v5104
        %v5124 = vadd.f32 %v5085, %v5104
        %v5125 = vadd.f32 %v5086, %v5104
        %v5126 = vadd.f32 %v5087, %v5104
        %v5127 = vadd.f32 %v5088, %v5104
        %v5128 = vadd.f32 %v5089, %v5104
        %v5129 = vadd.f32 %v5090, %v5104
        %v5130 = vadd.f32 %v5091, %v5104
        %v5131 = vadd.f32 %v5092, %v5104
        %v5132 = vadd.f32 %v5093, %v5104
        %v5133 = vadd.f32 %v5094, %v5104
        %v5134 = vadd.f32 %v5095, %v5104
        %v5135 = vadd.f32 %v5096, %v5104
        %v5136 = vadd.f32 %v5097, %v5104
        %v5137 = vadd.f32 %v5098, %v5104
        %vm5138 = vcmp.gt.f32.partialorder %v5106, 0.0
        %vm5139 = vcmp.gt.f32.partialorder %v5107, 0.0
        %vm5140 = vcmp.gt.f32.partialorder %v5108, 0.0
        %vm5141 = vcmp.gt.f32.partialorder %v5109, 0.0
        %vm5142 = vcmp.gt.f32.partialorder %v5110, 0.0
        %vm5143 = vcmp.gt.f32.partialorder %v5111, 0.0
        %vm5144 = vcmp.gt.f32.partialorder %v5112, 0.0
        %vm5145 = vcmp.gt.f32.partialorder %v5113, 0.0
        %vm5146 = vcmp.gt.f32.partialorder %v5114, 0.0
        %vm5147 = vcmp.gt.f32.partialorder %v5115, 0.0
        %vm5148 = vcmp.gt.f32.partialorder %v5116, 0.0
        %vm5149 = vcmp.gt.f32.partialorder %v5117, 0.0
        %vm5150 = vcmp.gt.f32.partialorder %v5118, 0.0
        %vm5151 = vcmp.gt.f32.partialorder %v5119, 0.0
        %vm5152 = vcmp.gt.f32.partialorder %v5120, 0.0
        %vm5153 = vcmp.gt.f32.partialorder %v5121, 0.0
        %vm5154 = vcmp.gt.f32.partialorder %v5122, 0.0
        %vm5155 = vcmp.gt.f32.partialorder %v5123, 0.0
        %vm5156 = vcmp.gt.f32.partialorder %v5124, 0.0
        %vm5157 = vcmp.gt.f32.partialorder %v5125, 0.0
        %vm5158 = vcmp.gt.f32.partialorder %v5126, 0.0
        %vm5159 = vcmp.gt.f32.partialorder %v5127, 0.0
        %vm5160 = vcmp.gt.f32.partialorder %v5128, 0.0
        %vm5161 = vcmp.gt.f32.partialorder %v5129, 0.0
        %vm5162 = vcmp.gt.f32.partialorder %v5130, 0.0
        %vm5163 = vcmp.gt.f32.partialorder %v5131, 0.0
        %vm5164 = vcmp.gt.f32.partialorder %v5132, 0.0
        %vm5165 = vcmp.gt.f32.partialorder %v5133, 0.0
        %vm5166 = vcmp.gt.f32.partialorder %v5134, 0.0
        %vm5167 = vcmp.gt.f32.partialorder %v5135, 0.0
        %vm5168 = vcmp.gt.f32.partialorder %v5136, 0.0
        %vm5169 = vcmp.gt.f32.partialorder %v5137, 0.0
        %v5170 = vmul.f32 %v5106, 0.1
        %v5171 = vmul.f32 %v5107, 0.1
        %v5172 = vmul.f32 %v5108, 0.1
        %v5173 = vmul.f32 %v5109, 0.1
        %v5174 = vmul.f32 %v5110, 0.1
        %v5175 = vmul.f32 %v5111, 0.1
        %v5176 = vmul.f32 %v5112, 0.1
        %v5177 = vmul.f32 %v5113, 0.1
        %v5178 = vmul.f32 %v5114, 0.1
        %v5179 = vmul.f32 %v5115, 0.1
        %v5180 = vmul.f32 %v5116, 0.1
        %v5181 = vmul.f32 %v5117, 0.1
        %v5182 = vmul.f32 %v5118, 0.1
        %v5183 = vmul.f32 %v5119, 0.1
        %v5184 = vmul.f32 %v5120, 0.1
        %v5185 = vmul.f32 %v5121, 0.1
        %v5186 = vmul.f32 %v5122, 0.1
        %v5187 = vmul.f32 %v5123, 0.1
        %v5188 = vmul.f32 %v5124, 0.1
        %v5189 = vmul.f32 %v5125, 0.1
        %v5190 = vmul.f32 %v5126, 0.1
        %v5191 = vmul.f32 %v5127, 0.1
        %v5192 = vmul.f32 %v5128, 0.1
        %v5193 = vmul.f32 %v5129, 0.1
        %v5194 = vmul.f32 %v5130, 0.1
        %v5195 = vmul.f32 %v5131, 0.1
        %v5196 = vmul.f32 %v5132, 0.1
        %v5197 = vmul.f32 %v5133, 0.1
        %v5198 = vmul.f32 %v5134, 0.1
        %v5199 = vmul.f32 %v5135, 0.1
        %v5200 = vmul.f32 %v5136, 0.1
        %v5201 = vmul.f32 %v5137, 0.1
        %v5202 = vsel %vm5138, %v5106, %v5170
        %v5203 = vsel %vm5139, %v5107, %v5171
        %v5204 = vsel %vm5140, %v5108, %v5172
        %v5205 = vsel %vm5141, %v5109, %v5173
        %v5206 = vsel %vm5142, %v5110, %v5174
        %v5207 = vsel %vm5143, %v5111, %v5175
        %v5208 = vsel %vm5144, %v5112, %v5176
        %v5209 = vsel %vm5145, %v5113, %v5177
        %v5210 = vsel %vm5146, %v5114, %v5178
        %v5211 = vsel %vm5147, %v5115, %v5179
        %v5212 = vsel %vm5148, %v5116, %v5180
        %v5213 = vsel %vm5149, %v5117, %v5181
        %v5214 = vsel %vm5150, %v5118, %v5182
        %v5215 = vsel %vm5151, %v5119, %v5183
        %v5216 = vsel %vm5152, %v5120, %v5184
        %v5217 = vsel %vm5153, %v5121, %v5185
        %v5218 = vsel %vm5154, %v5122, %v5186
        %v5219 = vsel %vm5155, %v5123, %v5187
        %v5220 = vsel %vm5156, %v5124, %v5188
        %v5221 = vsel %vm5157, %v5125, %v5189
        %v5222 = vsel %vm5158, %v5126, %v5190
        %v5223 = vsel %vm5159, %v5127, %v5191
        %v5224 = vsel %vm5160, %v5128, %v5192
        %v5225 = vsel %vm5161, %v5129, %v5193
        %v5226 = vsel %vm5162, %v5130, %v5194
        %v5227 = vsel %vm5163, %v5131, %v5195
        %v5228 = vsel %vm5164, %v5132, %v5196
        %v5229 = vsel %vm5165, %v5133, %v5197
        %v5230 = vsel %vm5166, %v5134, %v5198
        %v5231 = vsel %vm5167, %v5135, %v5199
        %v5232 = vsel %vm5168, %v5136, %v5200
        %v5233 = vsel %vm5169, %v5137, %v5201
        %5234 = vst [vmem:[%s216] sm:$0xff] %v5202
        %5235 = vst [vmem:[%s216 + $0x8] sm:$0xff] %v5203
        %5236 = vst [vmem:[%s216 + $0x10] sm:$0xff] %v5204
        %5237 = vst [vmem:[%s216 + $0x18] sm:$0xff] %v5205
        %5238 = vst [vmem:[%s216 + $0x20] sm:$0xff] %v5206
        %5239 = vst [vmem:[%s216 + $0x28] sm:$0xff] %v5207
        %5240 = vst [vmem:[%s216 + $0x30] sm:$0xff] %v5208
        %5241 = vst [vmem:[%s216 + $0x38] sm:$0xff] %v5209
        %5242 = vst [vmem:[%s216 + $0x40] sm:$0xff] %v5210
        %5243 = vst [vmem:[%s216 + $0x48] sm:$0xff] %v5211
        %5244 = vst [vmem:[%s216 + $0x50] sm:$0xff] %v5212
        %5245 = vst [vmem:[%s216 + $0x58] sm:$0xff] %v5213
        %5246 = vst [vmem:[%s216 + $0x60] sm:$0xff] %v5214
        %5247 = vst [vmem:[%s216 + $0x68] sm:$0xff] %v5215
        %5248 = vst [vmem:[%s216 + $0x70] sm:$0xff] %v5216
        %5249 = vst [vmem:[%s216 + $0x78] sm:$0xff] %v5217
        %5250 = vst [vmem:[%s216 + $0x80] sm:$0xff] %v5218
        %5251 = vst [vmem:[%s216 + $0x88] sm:$0xff] %v5219
        %5252 = vst [vmem:[%s216 + $0x90] sm:$0xff] %v5220
        %5253 = vst [vmem:[%s216 + $0x98] sm:$0xff] %v5221
        %5254 = vst [vmem:[%s216 + $0xa0] sm:$0xff] %v5222
        %5255 = vst [vmem:[%s216 + $0xa8] sm:$0xff] %v5223
        %5256 = vst [vmem:[%s216 + $0xb0] sm:$0xff] %v5224
        %5257 = vst [vmem:[%s216 + $0xb8] sm:$0xff] %v5225
        %5258 = vst [vmem:[%s216 + $0xc0] sm:$0xff] %v5226
        %5259 = vst [vmem:[%s216 + $0xc8] sm:$0xff] %v5227
        %5260 = vst [vmem:[%s216 + $0xd0] sm:$0xff] %v5228
        %5261 = vst [vmem:[%s216 + $0xd8] sm:$0xff] %v5229
        %5262 = vst [vmem:[%s216 + $0xe0] sm:$0xff] %v5230
        %5263 = vst [vmem:[%s216 + $0xe8] sm:$0xff] %v5231
        %5264 = vst [vmem:[%s216 + $0xf0] sm:$0xff] %v5232
        %5265 = vst [vmem:[%s216 + $0xf8] sm:$0xff] %v5233
        %s5266 = sand.u32 %s128, 1
        %s5267 = scalar_lea.sflag [#allocation6], %s5266
        %s5268 = sand.u32 %s128, 1
        %s5269 = smul.addr %s5268, 256
        %s5270 = scalar_lea.vmem [#allocation7], %s5269
        // Predicated region
        $region45: #{tpu_custom_call.1} parent=31 // pred_check
          %p5271 = pneg %p138
        $region46: #{tpu_custom_call.1} parent=31 // pred_check_branch
          %5273 = sbr.rel (%p5271) target = $region48
        $region47: #{tpu_custom_call.1} parent=31 // pred_region
          %s5274 = smul.u32 16, %s25
          %s5276 = ssub.s32 4096, 4096
          %5277 = vsyncadd %s5267, %s5276
          %s5278 = smul.addr %s5274, 2
          %s5279 = sadd.s32 %s26, %s5278
          %s5280 = smul.addr %s24, 32
          %s5281 = sadd.s32 %s5279, %s5280
          %s5282 = smul.addr %s5281, 128
          %s5283 = scalar_lea.hbm %s4, %s5282
          %s5284 = sshll.u32 %s5270, 4
          %s5285 = int_to_ptr.vmem [resolvable:$true] %s5284
          %5290 = dma.vmem_to_hbm [thread:$0]  %s5285, 4096, %s5283, %s5267, 128, 128, 8
        $region48: #{tpu_custom_call.1} parent=31 // pred_fallthru
          _
      $region32: #{tpu_custom_call.1} parent=5 // pred_fallthru
        _
      %p5291 = scmp.le.s32.totalorder 2, %s14
      // Predicated region
      $region49: #{tpu_custom_call.1} parent=5 // pred_check
        %p5292 = pneg %p5291
      $region50: #{tpu_custom_call.1} parent=5 // pred_check_branch
        %5294 = sbr.rel (%p5292) target = $region52
      $region51: #{tpu_custom_call.1} parent=5 // pred_region
        %s5295 = ssub.s32 %s14, 2
        // Predicated region
        $region53: #{tpu_custom_call.1} parent=51 // pred_check
          %p5296 = pneg %p144
        $region54: #{tpu_custom_call.1} parent=51 // pred_check_branch
          %5298 = sbr.rel (%p5296) target = $region56
        $region55: #{tpu_custom_call.1} parent=51 // pred_region
          %s5299 = sand.u32 %s129, 1
          %s5300 = scalar_lea.sflag [#allocation6], %s5299
          %s5301 = sand.u32 %s129, 1
          %s5302 = smul.addr %s5301, 256
          %s5303 = scalar_lea.vmem [#allocation7], %s5302
          %5304 = dma.done %s5300, 4096
        $region56: #{tpu_custom_call.1} parent=51 // pred_fallthru
          _
      $region52: #{tpu_custom_call.1} parent=5 // pred_fallthru
        _
    $region6: #{tpu_custom_call.1} parent=1 // loop_footer
      %s18 = sadd.s32 1, %s14
    $region7: #{tpu_custom_call.1} parent=1 // loop_footer_branch
      %13 = sbr.rel target = $region3
    $region8: #{tpu_custom_call.1} parent=1 // loop_exit
      _
    %5305 = vsyncpa [#allocation5], 1
    %s5306 = scalar_lea.sflag [#allocation5], 1
    %5307 = vsyncpa %s5306, 1
    %5308 = vsyncpa [#allocation6], 1
    %s5309 = scalar_lea.sflag [#allocation6], 1
    %5310 = vsyncpa %s5309, 1
  %5311 = vsyncmov [#allocation3]
  %s5312 = vpop.sfrf %5311
  %p5313 = scmp.eq.s32.totalorder %s5312, 0
  %p5314 = pneg %p5313
  %5316 = shalt.err (%p5314)

</llo_original>
